<compile_context>
chip_gen: v5e
topology: v5e:2x2
jax: 0.10.0
libtpu: 0.0.40
codegen_flags: <defaults>
</compile_context>

<pallas_src>
import numpy as np
import jax
import jax.numpy as jnp
from jax.experimental import pallas as pl
from jax.experimental.pallas import tpu as pltpu

# ----------------------------- config ---------------------------------------
VOCAB = 50
EMBED = 32
HIDDEN = 32
MAX_LEN = 8
PAD_IDX = 0
BATCH = 2

NEG_MASK = -1e30  # finite stand-in for -inf (robust to fully-padded rows)


# --------------------------- fused ESIM kernel -------------------------------
def _esim_kernel(len1_ref, len2_ref,                      # scalar-prefetch (SMEM)
                 emb1_ref, emb2_ref, m1_ref, m2_ref,
                 wih1f_ref, wih1b_ref, whh1_ref, b1_ref,
                 wih2f_ref, wih2b_ref, whh2_ref, b2_ref,
                 fw1_ref, fb1_ref, fw2_ref, fb2_ref,
                 out_ref):
    B, S, _E = emb1_ref.shape
    H = whh1_ref.shape[0] // 2
    R = 4 * B                                   # stacked rows: [s1f, s2f, s1b, s2b]

    # --- per-sequence reverse permutations & validity masks (from lengths) ---
    row_i = jax.lax.broadcasted_iota(jnp.int32, (S, S), 0)
    col_j = jax.lax.broadcasted_iota(jnp.int32, (S, S), 1)
    vcol = jax.lax.broadcasted_iota(jnp.int32, (S, 1), 0)

    def perm_valid(len_ref, b):
        L = len_ref[b]                                           # SMEM scalar
        rev = jnp.where(row_i < L, L - 1 - row_i, row_i)         # (S, S) int
        perm = (col_j == rev).astype(jnp.float32)                # (S, S) permutation
        valid = (vcol < L).astype(jnp.float32)                   # (S, 1)
        return perm, valid

    perm1, valid1, perm2, valid2 = [], [], [], []
    for b in range(B):
        p, v = perm_valid(len1_ref, b); perm1.append(p); valid1.append(v)
        p, v = perm_valid(len2_ref, b); perm2.append(p); valid2.append(v)

    # --- direction masks for the 4B-row stacked LSTM (rows < 2B are forward) ---
    rid = jax.lax.broadcasted_iota(jnp.int32, (R, 1), 0)
    fwd_m = (rid < 2 * B).astype(jnp.float32)                    # (R, 1)
    bwd_m = 1.0 - fwd_m

    def bilstm_layer(x_fwd_list, x_bwd_list, wihf_ref, wihb_ref, whh_ref, bias_ref):
        """x_*_list: python lists of 2B arrays, each (S, In).  Returns list of
        S arrays (R, H): hidden state of all 4B stacked rows per timestep."""
        two_b = len(x_fwd_list)
        hh = whh_ref.shape[0] // 2
        # one-shot input projection per direction (off the recurrence critical path)
        xf = jnp.concatenate(x_fwd_list, axis=0)                 # (2B*S, In)
        xb = jnp.concatenate(x_bwd_list, axis=0)
        gxf = jnp.dot(xf, wihf_ref[...], preferred_element_type=jnp.float32)
        gxb = jnp.dot(xb, wihb_ref[...], preferred_element_type=jnp.float32)
        bias = bias_ref[...]                                     # (R, 4H)
        whh = whh_ref[...]                                       # (2H, 4H)
        # per-timestep (R, 4H) input-gate slabs, rows = [fwd elems..., bwd elems...]
        gx_t = []
        for t in range(S):
            rows = ([gxf[r * S + t: r * S + t + 1, :] for r in range(two_b)]
                    + [gxb[r * S + t: r * S + t + 1, :] for r in range(two_b)])
            gx_t.append(jnp.concatenate(rows, axis=0) + bias)
        # fully-unrolled recurrence; single (R, 2H) @ (2H, 4H) GEMM per step
        h = jnp.zeros((R, hh), jnp.float32)
        c = jnp.zeros((R, hh), jnp.float32)
        hs = []
        for t in range(S):
            hbig = jnp.concatenate([h * fwd_m, h * bwd_m], axis=-1)       # (R, 2H)
            gates = gx_t[t] + jnp.dot(hbig, whh, preferred_element_type=jnp.float32)
            i_g = jax.nn.sigmoid(gates[:, 0:hh])
            f_g = jax.nn.sigmoid(gates[:, hh:2 * hh])
            g_g = jnp.tanh(gates[:, 2 * hh:3 * hh])
            o_g = jax.nn.sigmoid(gates[:, 3 * hh:4 * hh])
            c = f_g * c + i_g * g_g
            h = o_g * jnp.tanh(c)
            hs.append(h)
        return hs

    def dirseq(hs, row, perm=None):
        """Gather the (S, H) time sequence of one stacked row; optionally
        un-reverse it with the per-sequence permutation."""
        seq = jnp.concatenate([hs[t][row:row + 1, :] for t in range(S)], axis=0)
        if perm is not None:
            seq = jnp.dot(perm, seq, preferred_element_type=jnp.float32)
        return seq

    # ------------------------------ layer 1 -----------------------------------
    e1 = [emb1_ref[b] for b in range(B)]                          # (S, E)
    e2 = [emb2_ref[b] for b in range(B)]
    e1r = [jnp.dot(perm1[b], e1[b], preferred_element_type=jnp.float32) for b in range(B)]
    e2r = [jnp.dot(perm2[b], e2[b], preferred_element_type=jnp.float32) for b in range(B)]
    hs1 = bilstm_layer(e1 + e2, e1r + e2r, wih1f_ref, wih1b_ref, whh1_ref, b1_ref)

    o1 = [jnp.concatenate([dirseq(hs1, b), dirseq(hs1, 2 * B + b, perm1[b])],
                          axis=-1) * valid1[b] for b in range(B)]         # (S, 2H)
    o2 = [jnp.concatenate([dirseq(hs1, B + b), dirseq(hs1, 3 * B + b, perm2[b])],
                          axis=-1) * valid2[b] for b in range(B)]

    # ------------------------ soft-align attention -----------------------------
    def softmax_last(z):
        zm = jnp.max(z, axis=-1, keepdims=True)
        e = jnp.exp(z - zm)
        return e / jnp.sum(e, axis=-1, keepdims=True)

    x1c, x2c, x1cr, x2cr = [], [], [], []
    for b in range(B):
        m1 = m1_ref[pl.ds(b, 1), :]                               # (1, S) additive mask
        m2 = m2_ref[pl.ds(b, 1), :]
        att = jnp.dot(o1[b], o2[b].T, preferred_element_type=jnp.float32)   # (S, S)
        a1 = jnp.dot(softmax_last(att + m2), o2[b], preferred_element_type=jnp.float32)
        a2 = jnp.dot(softmax_last(att.T + m1), o1[b], preferred_element_type=jnp.float32)
        c1b = jnp.concatenate([o1[b], a1, o1[b] - a1, o1[b] * a1], axis=-1)  # (S, 8H)
        c2b = jnp.concatenate([o2[b], a2, o2[b] - a2, o2[b] * a2], axis=-1)
        x1c.append(c1b); x2c.append(c2b)
        x1cr.append(jnp.dot(perm1[b], c1b, preferred_element_type=jnp.float32))
        x2cr.append(jnp.dot(perm2[b], c2b, preferred_element_type=jnp.float32))

    # ------------------------------ layer 2 -----------------------------------
    hs2 = bilstm_layer(x1c + x2c, x1cr + x2cr, wih2f_ref, wih2b_ref, whh2_ref, b2_ref)
    comp1 = [jnp.concatenate([dirseq(hs2, b), dirseq(hs2, 2 * B + b, perm1[b])],
                             axis=-1) * valid1[b] for b in range(B)]       # (S, 2H)
    comp2 = [jnp.concatenate([dirseq(hs2, B + b), dirseq(hs2, 3 * B + b, perm2[b])],
                             axis=-1) * valid2[b] for b in range(B)]

    # -------------------------- pooling + FC head -------------------------------
    feats = []
    for b in range(B):
        p1 = jnp.concatenate([jnp.mean(comp1[b], axis=0, keepdims=True),
                              jnp.max(comp1[b], axis=0, keepdims=True)], axis=-1)
        p2 = jnp.concatenate([jnp.mean(comp2[b], axis=0, keepdims=True),
                              jnp.max(comp2[b], axis=0, keepdims=True)], axis=-1)
        feats.append(jnp.concatenate([p1, p2], axis=-1))          # (1, 8H)
    feat = jnp.concatenate(feats, axis=0)                         # (B, 8H)
    hfc = jnp.maximum(
        jnp.dot(feat, fw1_ref[...], preferred_element_type=jnp.float32) + fb1_ref[...],
        0.0)
    out_ref[...] = (jnp.dot(hfc, fw2_ref[...], preferred_element_type=jnp.float32)
                    + fb2_ref[...])


# ------------------------------ pallas wrapper --------------------------------
def esim_forward_pallas(params, x1, x2, len1, len2):
    B, S = x1.shape
    H = params["lstm1_f"]["WhhT"].shape[0]
    G = 4 * H

    # XLA glue: embedding gather, pad masks, static weight packing.
    emb1 = jnp.take(params["embedding"], x1, axis=0).astype(jnp.float32)
    emb2 = jnp.take(params["embedding"], x2, axis=0).astype(jnp.float32)
    m1add = jnp.where(x1 == PAD_IDX, NEG_MASK, 0.0).astype(jnp.float32)
    m2add = jnp.where(x2 == PAD_IDX, NEG_MASK, 0.0).astype(jnp.float32)

    def pack_layer(pf, pb):
        whh = jnp.concatenate([pf["WhhT"], pb["WhhT"]], axis=0)            # (2H, 4H)
        bias = jnp.concatenate([jnp.tile(pf["b"].reshape(1, G), (2 * B, 1)),
                                jnp.tile(pb["b"].reshape(1, G), (2 * B, 1))],
                               axis=0)                                      # (4B, 4H)
        return pf["WihT"], pb["WihT"], whh, bias

    w1f, w1b, whh1, b1big = pack_layer(params["lstm1_f"], params["lstm1_b"])
    w2f, w2b, whh2, b2big = pack_layer(params["lstm2_f"], params["lstm2_b"])
    fc = params["fc"]

    operands = (emb1, emb2, m1add, m2add,
                w1f, w1b, whh1, b1big,
                w2f, w2b, whh2, b2big,
                fc["W1T"], fc["b1"].reshape(1, H), fc["W2T"], fc["b2"].reshape(1, 2))

    def full_spec(a):
        zeros = (0,) * a.ndim
        return pl.BlockSpec(a.shape, lambda i, l1, l2: zeros)

    return pl.pallas_call(
        _esim_kernel,
        out_shape=jax.ShapeDtypeStruct((B, 2), jnp.float32),
        grid_spec=pltpu.PrefetchScalarGridSpec(
            num_scalar_prefetch=2,
            grid=(1,),
            in_specs=[full_spec(a) for a in operands],
            out_specs=pl.BlockSpec((B, 2), lambda i, l1, l2: (0, 0)),
        ),
        compiler_params=pltpu.CompilerParams(dimension_semantics=("arbitrary",)),
    )(len1.astype(jnp.int32), len2.astype(jnp.int32), *operands)


# ------------------------------ pure-JAX reference ----------------------------
def _lstm_ref(x, WihT, WhhT, b):
    B, S, _ = x.shape
    H = WhhT.shape[0]

    def step(carry, xt):
        h, c = carry
        gates = xt @ WihT + h @ WhhT + b
        i = jax.nn.sigmoid(gates[:, 0:H])
        f = jax.nn.sigmoid(gates[:, H:2 * H])
        g = jnp.tanh(gates[:, 2 * H:3 * H])
        o = jax.nn.sigmoid(gates[:, 3 * H:4 * H])
        c = f * c + i * g
        h = o * jnp.tanh(c)
        return (h, c), h

    init = (jnp.zeros((B, H), jnp.float32), jnp.zeros((B, H), jnp.float32))
    _, ys = jax.lax.scan(step, init, jnp.transpose(x, (1, 0, 2)))
    return jnp.transpose(ys, (1, 0, 2))


def _bilstm_ref(x, lengths, pf, pb):
    B, S, _ = x.shape
    pos = jnp.arange(S, dtype=jnp.int32)[None, :]
    valid = (pos < lengths[:, None]).astype(x.dtype)
    out_f = _lstm_ref(x, pf["WihT"], pf["WhhT"], pf["b"]) * valid[..., None]
    rev_idx = jnp.where(pos < lengths[:, None], lengths[:, None] - 1 - pos, pos)
    x_rev = jnp.take_along_axis(x, rev_idx[..., None], axis=1)
    out_b = _lstm_ref(x_rev, pb["WihT"], pb["WhhT"], pb["b"])
    out_b = jnp.take_along_axis(out_b, rev_idx[..., None], axis=1) * valid[..., None]
    return jnp.concatenate([out_f, out_b], axis=-1)


def _softmax_last(z):
    zm = jnp.max(z, axis=-1, keepdims=True)
    e = jnp.exp(z - zm)
    return e / jnp.sum(e, axis=-1, keepdims=True)


def esim_forward_ref(params, x1, x2, len1, len2):
    emb = params["embedding"]
    emb1 = jnp.take(emb, x1, axis=0)
    emb2 = jnp.take(emb, x2, axis=0)
    o1 = _bilstm_ref(emb1, len1, params["lstm1_f"], params["lstm1_b"])
    o2 = _bilstm_ref(emb2, len2, params["lstm1_f"], params["lstm1_b"])
    m1add = jnp.where(x1 == PAD_IDX, -jnp.inf, 0.0).astype(jnp.float32)
    m2add = jnp.where(x2 == PAD_IDX, -jnp.inf, 0.0).astype(jnp.float32)
    att = jnp.einsum("bsd,btd->bst", o1, o2)
    w1 = _softmax_last(att + m2add[:, None, :])
    a1 = jnp.einsum("bst,btd->bsd", w1, o2)
    w2 = _softmax_last(jnp.swapaxes(att, 1, 2) + m1add[:, None, :])
    a2 = jnp.einsum("bst,btd->bsd", w2, o1)
    x1c = jnp.concatenate([o1, a1, o1 - a1, o1 * a1], axis=-1)
    x2c = jnp.concatenate([o2, a2, o2 - a2, o2 * a2], axis=-1)
    c1 = _bilstm_ref(x1c, len1, params["lstm2_f"], params["lstm2_b"])
    c2 = _bilstm_ref(x2c, len2, params["lstm2_f"], params["lstm2_b"])

    def pool(x):
        return jnp.concatenate([jnp.mean(x, axis=1), jnp.max(x, axis=1)], axis=-1)

    feat = jnp.concatenate([pool(c1), pool(c2)], axis=-1)
    fc = params["fc"]
    h = jnp.maximum(feat @ fc["W1T"] + fc["b1"], 0.0)
    return h @ fc["W2T"] + fc["b2"]


# ------------------------------ parameters -------------------------------------
def init_params(key):
    ks = jax.random.split(key, 20)

    def unif(k, shape, scale):
        return jax.random.uniform(k, shape, jnp.float32, minval=-scale, maxval=scale)

    s = 1.0 / float(np.sqrt(HIDDEN))
    emb = 0.1 * jax.random.normal(ks[0], (VOCAB, EMBED), jnp.float32)
    emb = emb.at[PAD_IDX].set(0.0)   # padding_idx row is zero

    def lstm_dir(k1, k2, k3, in_dim):
        return dict(WihT=unif(k1, (in_dim, 4 * HIDDEN), s),
                    WhhT=unif(k2, (HIDDEN, 4 * HIDDEN), s),
                    b=unif(k3, (4 * HIDDEN,), s))        # b_ih + b_hh combined

    return dict(
        embedding=emb,
        lstm1_f=lstm_dir(ks[1], ks[2], ks[3], EMBED),
        lstm1_b=lstm_dir(ks[4], ks[5], ks[6], EMBED),
        lstm2_f=lstm_dir(ks[7], ks[8], ks[9], 8 * HIDDEN),
        lstm2_b=lstm_dir(ks[10], ks[11], ks[12], 8 * HIDDEN),
        fc=dict(W1T=unif(ks[13], (8 * HIDDEN, HIDDEN), s),
                b1=unif(ks[14], (HIDDEN,), s),
                W2T=unif(ks[15], (HIDDEN, 2), s),
                b2=unif(ks[16], (2,), s)),
    )


# --------------------------------- main -----------------------------------------
if __name__ == "__main__":
    key = jax.random.PRNGKey(0)
    kp, k1, k2 = jax.random.split(key, 3)
    params = init_params(kp)

    len1 = jnp.array([MAX_LEN, 5], dtype=jnp.int32)
    len2 = jnp.array([6, MAX_LEN], dtype=jnp.int32)
    pos = jnp.arange(MAX_LEN, dtype=jnp.int32)[None, :]
    tok1 = jax.random.randint(k1, (BATCH, MAX_LEN), 1, VOCAB, dtype=jnp.int32)
    tok2 = jax.random.randint(k2, (BATCH, MAX_LEN), 1, VOCAB, dtype=jnp.int32)
    x1 = jnp.where(pos < len1[:, None], tok1, PAD_IDX).astype(jnp.int32)
    x2 = jnp.where(pos < len2[:, None], tok2, PAD_IDX).astype(jnp.int32)

    fwd = jax.jit(esim_forward_pallas)
    out = fwd(params, x1, x2, len1, len2)
    out = jax.block_until_ready(out)

    ref = esim_forward_ref(params, x1, x2, len1, len2)
    ref = jax.block_until_ready(ref)
    max_err = float(jnp.max(jnp.abs(out - ref)))
    assert out.shape == (BATCH, 2)
    assert max_err < 5e-2, f"max_err={max_err}"

    print("KERNEL_OK")
</pallas_src>

<mosaic_0001>
module attributes {stable_mosaic.version = 11 : i64} {
  func.func @_esim_kernel(%arg0: i32, %arg1: memref<2xi32, #tpu.memory_space<smem>>, %arg2: memref<2xi32, #tpu.memory_space<smem>>, %arg3: memref<2x8x32xf32, #tpu.memory_space<vmem>>, %arg4: memref<2x8x32xf32, #tpu.memory_space<vmem>>, %arg5: memref<2x8xf32, #tpu.memory_space<vmem>>, %arg6: memref<2x8xf32, #tpu.memory_space<vmem>>, %arg7: memref<32x128xf32, #tpu.memory_space<vmem>>, %arg8: memref<32x128xf32, #tpu.memory_space<vmem>>, %arg9: memref<64x128xf32, #tpu.memory_space<vmem>>, %arg10: memref<8x128xf32, #tpu.memory_space<vmem>>, %arg11: memref<256x128xf32, #tpu.memory_space<vmem>>, %arg12: memref<256x128xf32, #tpu.memory_space<vmem>>, %arg13: memref<64x128xf32, #tpu.memory_space<vmem>>, %arg14: memref<8x128xf32, #tpu.memory_space<vmem>>, %arg15: memref<256x32xf32, #tpu.memory_space<vmem>>, %arg16: memref<1x32xf32, #tpu.memory_space<vmem>>, %arg17: memref<32x2xf32, #tpu.memory_space<vmem>>, %arg18: memref<1x2xf32, #tpu.memory_space<vmem>>, %arg19: memref<2x2xf32, #tpu.memory_space<vmem>>) attributes {dimension_semantics = [#tpu.dimension_semantics<arbitrary>], iteration_bounds = array<i64: 1>, scalar_prefetch = 2 : i64, scratch_operands = 0 : i64, tpu.core_type = #tpu.core_type<tc>, window_params = [{pipeline_mode = #tpu.pipeline_mode<synchronous>, transform_indices = @transform_0, window_bounds = array<i64: 2, 8, 32>}, {pipeline_mode = #tpu.pipeline_mode<synchronous>, transform_indices = @transform_1, window_bounds = array<i64: 2, 8, 32>}, {pipeline_mode = #tpu.pipeline_mode<synchronous>, transform_indices = @transform_2, window_bounds = array<i64: 2, 8>}, {pipeline_mode = #tpu.pipeline_mode<synchronous>, transform_indices = @transform_3, window_bounds = array<i64: 2, 8>}, {pipeline_mode = #tpu.pipeline_mode<synchronous>, transform_indices = @transform_4, window_bounds = array<i64: 32, 128>}, {pipeline_mode = #tpu.pipeline_mode<synchronous>, transform_indices = @transform_5, window_bounds = array<i64: 32, 128>}, {pipeline_mode = #tpu.pipeline_mode<synchronous>, transform_indices = @transform_6, window_bounds = array<i64: 64, 128>}, {pipeline_mode = #tpu.pipeline_mode<synchronous>, transform_indices = @transform_7, window_bounds = array<i64: 8, 128>}, {pipeline_mode = #tpu.pipeline_mode<synchronous>, transform_indices = @transform_8, window_bounds = array<i64: 256, 128>}, {pipeline_mode = #tpu.pipeline_mode<synchronous>, transform_indices = @transform_9, window_bounds = array<i64: 256, 128>}, {pipeline_mode = #tpu.pipeline_mode<synchronous>, transform_indices = @transform_10, window_bounds = array<i64: 64, 128>}, {pipeline_mode = #tpu.pipeline_mode<synchronous>, transform_indices = @transform_11, window_bounds = array<i64: 8, 128>}, {pipeline_mode = #tpu.pipeline_mode<synchronous>, transform_indices = @transform_12, window_bounds = array<i64: 256, 32>}, {pipeline_mode = #tpu.pipeline_mode<synchronous>, transform_indices = @transform_13, window_bounds = array<i64: 1, 32>}, {pipeline_mode = #tpu.pipeline_mode<synchronous>, transform_indices = @transform_14, window_bounds = array<i64: 32, 2>}, {pipeline_mode = #tpu.pipeline_mode<synchronous>, transform_indices = @transform_15, window_bounds = array<i64: 1, 2>}, {pipeline_mode = #tpu.pipeline_mode<synchronous>, transform_indices = @transform_16, window_bounds = array<i64: 2, 2>}]} {
    %0 = tpu.iota {dimensions = array<i32: 0>} : vector<8x8xi32>
    %1 = tpu.iota {dimensions = array<i32: 1>} : vector<8x8xi32>
    %2 = tpu.iota {dimensions = array<i32: 0>} : vector<8x1xi32>
    %c0 = arith.constant 0 : index
    %3 = memref.load %arg1[%c0] : memref<2xi32, #tpu.memory_space<smem>>
    %4 = vector.broadcast %3 : i32 to vector<8x8xi32>
    %5 = arith.cmpi slt, %0, %4 : vector<8x8xi32>
    %c1_i32 = arith.constant 1 : i32
    %6 = arith.subi %3, %c1_i32 : i32
    %7 = vector.broadcast %6 : i32 to vector<8x8xi32>
    %8 = arith.subi %7, %0 : vector<8x8xi32>
    %9 = arith.select %5, %8, %0 : vector<8x8xi1>, vector<8x8xi32>
    %10 = arith.cmpi eq, %1, %9 : vector<8x8xi32>
    %11 = arith.extui %10 : vector<8x8xi1> to vector<8x8xi32>
    %12 = arith.sitofp %11 : vector<8x8xi32> to vector<8x8xf32>
    %13 = vector.broadcast %3 : i32 to vector<8x1xi32>
    %14 = arith.cmpi slt, %2, %13 : vector<8x1xi32>
    %15 = arith.extui %14 : vector<8x1xi1> to vector<8x1xi32>
    %16 = arith.sitofp %15 : vector<8x1xi32> to vector<8x1xf32>
    %c0_0 = arith.constant 0 : index
    %17 = memref.load %arg2[%c0_0] : memref<2xi32, #tpu.memory_space<smem>>
    %18 = vector.broadcast %17 : i32 to vector<8x8xi32>
    %19 = arith.cmpi slt, %0, %18 : vector<8x8xi32>
    %c1_i32_1 = arith.constant 1 : i32
    %20 = arith.subi %17, %c1_i32_1 : i32
    %21 = vector.broadcast %20 : i32 to vector<8x8xi32>
    %22 = arith.subi %21, %0 : vector<8x8xi32>
    %23 = arith.select %19, %22, %0 : vector<8x8xi1>, vector<8x8xi32>
    %24 = arith.cmpi eq, %1, %23 : vector<8x8xi32>
    %25 = arith.extui %24 : vector<8x8xi1> to vector<8x8xi32>
    %26 = arith.sitofp %25 : vector<8x8xi32> to vector<8x8xf32>
    %27 = vector.broadcast %17 : i32 to vector<8x1xi32>
    %28 = arith.cmpi slt, %2, %27 : vector<8x1xi32>
    %29 = arith.extui %28 : vector<8x1xi1> to vector<8x1xi32>
    %30 = arith.sitofp %29 : vector<8x1xi32> to vector<8x1xf32>
    %c1 = arith.constant 1 : index
    %31 = memref.load %arg1[%c1] : memref<2xi32, #tpu.memory_space<smem>>
    %32 = vector.broadcast %31 : i32 to vector<8x8xi32>
    %33 = arith.cmpi slt, %0, %32 : vector<8x8xi32>
    %c1_i32_2 = arith.constant 1 : i32
    %34 = arith.subi %31, %c1_i32_2 : i32
    %35 = vector.broadcast %34 : i32 to vector<8x8xi32>
    %36 = arith.subi %35, %0 : vector<8x8xi32>
    %37 = arith.select %33, %36, %0 : vector<8x8xi1>, vector<8x8xi32>
    %38 = arith.cmpi eq, %1, %37 : vector<8x8xi32>
    %39 = arith.extui %38 : vector<8x8xi1> to vector<8x8xi32>
    %40 = arith.sitofp %39 : vector<8x8xi32> to vector<8x8xf32>
    %41 = vector.broadcast %31 : i32 to vector<8x1xi32>
    %42 = arith.cmpi slt, %2, %41 : vector<8x1xi32>
    %43 = arith.extui %42 : vector<8x1xi1> to vector<8x1xi32>
    %44 = arith.sitofp %43 : vector<8x1xi32> to vector<8x1xf32>
    %c1_3 = arith.constant 1 : index
    %45 = memref.load %arg2[%c1_3] : memref<2xi32, #tpu.memory_space<smem>>
    %46 = vector.broadcast %45 : i32 to vector<8x8xi32>
    %47 = arith.cmpi slt, %0, %46 : vector<8x8xi32>
    %c1_i32_4 = arith.constant 1 : i32
    %48 = arith.subi %45, %c1_i32_4 : i32
    %49 = vector.broadcast %48 : i32 to vector<8x8xi32>
    %50 = arith.subi %49, %0 : vector<8x8xi32>
    %51 = arith.select %47, %50, %0 : vector<8x8xi1>, vector<8x8xi32>
    %52 = arith.cmpi eq, %1, %51 : vector<8x8xi32>
    %53 = arith.extui %52 : vector<8x8xi1> to vector<8x8xi32>
    %54 = arith.sitofp %53 : vector<8x8xi32> to vector<8x8xf32>
    %55 = vector.broadcast %45 : i32 to vector<8x1xi32>
    %56 = arith.cmpi slt, %2, %55 : vector<8x1xi32>
    %57 = arith.extui %56 : vector<8x1xi1> to vector<8x1xi32>
    %58 = arith.sitofp %57 : vector<8x1xi32> to vector<8x1xf32>
    %59 = tpu.iota {dimensions = array<i32: 0>} : vector<8x1xi32>
    %c4_i32 = arith.constant 4 : i32
    %60 = vector.broadcast %c4_i32 : i32 to vector<8x1xi32>
    %61 = arith.cmpi slt, %59, %60 : vector<8x1xi32>
    %62 = arith.extui %61 : vector<8x1xi1> to vector<8x1xi32>
    %63 = arith.sitofp %62 : vector<8x1xi32> to vector<8x1xf32>
    %cst = arith.constant 1.000000e+00 : f32
    %64 = vector.broadcast %cst : f32 to vector<8x1xf32>
    %65 = arith.subf %64, %63 : vector<8x1xf32>
    %c0_5 = arith.constant 0 : index
    %c0_6 = arith.constant 0 : index
    %c0_7 = arith.constant 0 : index
    %66 = vector.load %arg3[%c0_5, %c0_6, %c0_7] : memref<2x8x32xf32, #tpu.memory_space<vmem>>, vector<1x8x32xf32>
    %67 = vector.shape_cast %66 : vector<1x8x32xf32> to vector<8x32xf32>
    %c1_8 = arith.constant 1 : index
    %c0_9 = arith.constant 0 : index
    %c0_10 = arith.constant 0 : index
    %68 = vector.load %arg3[%c1_8, %c0_9, %c0_10] : memref<2x8x32xf32, #tpu.memory_space<vmem>>, vector<1x8x32xf32>
    %69 = vector.shape_cast %68 : vector<1x8x32xf32> to vector<8x32xf32>
    %c0_11 = arith.constant 0 : index
    %c0_12 = arith.constant 0 : index
    %c0_13 = arith.constant 0 : index
    %70 = vector.load %arg4[%c0_11, %c0_12, %c0_13] : memref<2x8x32xf32, #tpu.memory_space<vmem>>, vector<1x8x32xf32>
    %71 = vector.shape_cast %70 : vector<1x8x32xf32> to vector<8x32xf32>
    %c1_14 = arith.constant 1 : index
    %c0_15 = arith.constant 0 : index
    %c0_16 = arith.constant 0 : index
    %72 = vector.load %arg4[%c1_14, %c0_15, %c0_16] : memref<2x8x32xf32, #tpu.memory_space<vmem>>, vector<1x8x32xf32>
    %73 = vector.shape_cast %72 : vector<1x8x32xf32> to vector<8x32xf32>
    %cst_17 = arith.constant dense<0.000000e+00> : vector<8x32xf32>
    %74 = tpu.matmul %12, %67, %cst_17 {dimension_numbers = #tpu.dot_dimension_numbers<[1], [0], [0], [1], [0, 0, 1, 1], [], []>} : vector<8x8xf32>, vector<8x32xf32>, vector<8x32xf32> -> vector<8x32xf32>
    %cst_18 = arith.constant dense<0.000000e+00> : vector<8x32xf32>
    %75 = tpu.matmul %40, %69, %cst_18 {dimension_numbers = #tpu.dot_dimension_numbers<[1], [0], [0], [1], [0, 0, 1, 1], [], []>} : vector<8x8xf32>, vector<8x32xf32>, vector<8x32xf32> -> vector<8x32xf32>
    %cst_19 = arith.constant dense<0.000000e+00> : vector<8x32xf32>
    %76 = tpu.matmul %26, %71, %cst_19 {dimension_numbers = #tpu.dot_dimension_numbers<[1], [0], [0], [1], [0, 0, 1, 1], [], []>} : vector<8x8xf32>, vector<8x32xf32>, vector<8x32xf32> -> vector<8x32xf32>
    %cst_20 = arith.constant dense<0.000000e+00> : vector<8x32xf32>
    %77 = tpu.matmul %54, %73, %cst_20 {dimension_numbers = #tpu.dot_dimension_numbers<[1], [0], [0], [1], [0, 0, 1, 1], [], []>} : vector<8x8xf32>, vector<8x32xf32>, vector<8x32xf32> -> vector<8x32xf32>
    %78 = tpu.concatenate %67, %69, %71, %73 in 0 : vector<8x32xf32>, vector<8x32xf32>, vector<8x32xf32>, vector<8x32xf32> -> vector<32x32xf32>
    %79 = tpu.concatenate %74, %75, %76, %77 in 0 : vector<8x32xf32>, vector<8x32xf32>, vector<8x32xf32>, vector<8x32xf32> -> vector<32x32xf32>
    %c0_21 = arith.constant 0 : index
    %c0_22 = arith.constant 0 : index
    %80 = vector.load %arg7[%c0_21, %c0_22] : memref<32x128xf32, #tpu.memory_space<vmem>>, vector<32x128xf32>
    %cst_23 = arith.constant dense<0.000000e+00> : vector<32x128xf32>
    %81 = tpu.matmul %78, %80, %cst_23 {dimension_numbers = #tpu.dot_dimension_numbers<[1], [0], [0], [1], [0, 0, 1, 1], [], []>} : vector<32x32xf32>, vector<32x128xf32>, vector<32x128xf32> -> vector<32x128xf32>
    %c0_24 = arith.constant 0 : index
    %c0_25 = arith.constant 0 : index
    %82 = vector.load %arg8[%c0_24, %c0_25] : memref<32x128xf32, #tpu.memory_space<vmem>>, vector<32x128xf32>
    %cst_26 = arith.constant dense<0.000000e+00> : vector<32x128xf32>
    %83 = tpu.matmul %79, %82, %cst_26 {dimension_numbers = #tpu.dot_dimension_numbers<[1], [0], [0], [1], [0, 0, 1, 1], [], []>} : vector<32x32xf32>, vector<32x128xf32>, vector<32x128xf32> -> vector<32x128xf32>
    %c0_27 = arith.constant 0 : index
    %c0_28 = arith.constant 0 : index
    %84 = vector.load %arg10[%c0_27, %c0_28] : memref<8x128xf32, #tpu.memory_space<vmem>>, vector<8x128xf32>
    %c0_29 = arith.constant 0 : index
    %c0_30 = arith.constant 0 : index
    %85 = vector.load %arg9[%c0_29, %c0_30] : memref<64x128xf32, #tpu.memory_space<vmem>>, vector<64x128xf32>
    %86 = vector.extract_strided_slice %81 {offsets = [0, 0], sizes = [1, 128], strides = [1, 1]} : vector<32x128xf32> to vector<1x128xf32>
    %87 = vector.extract_strided_slice %81 {offsets = [8, 0], sizes = [1, 128], strides = [1, 1]} : vector<32x128xf32> to vector<1x128xf32>
    %88 = vector.extract_strided_slice %81 {offsets = [16, 0], sizes = [1, 128], strides = [1, 1]} : vector<32x128xf32> to vector<1x128xf32>
    %89 = vector.extract_strided_slice %81 {offsets = [24, 0], sizes = [1, 128], strides = [1, 1]} : vector<32x128xf32> to vector<1x128xf32>
    %90 = vector.extract_strided_slice %83 {offsets = [0, 0], sizes = [1, 128], strides = [1, 1]} : vector<32x128xf32> to vector<1x128xf32>
    %91 = vector.extract_strided_slice %83 {offsets = [8, 0], sizes = [1, 128], strides = [1, 1]} : vector<32x128xf32> to vector<1x128xf32>
    %92 = vector.extract_strided_slice %83 {offsets = [16, 0], sizes = [1, 128], strides = [1, 1]} : vector<32x128xf32> to vector<1x128xf32>
    %93 = vector.extract_strided_slice %83 {offsets = [24, 0], sizes = [1, 128], strides = [1, 1]} : vector<32x128xf32> to vector<1x128xf32>
    %94 = tpu.concatenate %86, %87, %88, %89, %90, %91, %92, %93 in 0 : vector<1x128xf32>, vector<1x128xf32>, vector<1x128xf32>, vector<1x128xf32>, vector<1x128xf32>, vector<1x128xf32>, vector<1x128xf32>, vector<1x128xf32> -> vector<8x128xf32>
    %95 = arith.addf %94, %84 : vector<8x128xf32>
    %96 = vector.extract_strided_slice %81 {offsets = [1, 0], sizes = [1, 128], strides = [1, 1]} : vector<32x128xf32> to vector<1x128xf32>
    %97 = vector.extract_strided_slice %81 {offsets = [9, 0], sizes = [1, 128], strides = [1, 1]} : vector<32x128xf32> to vector<1x128xf32>
    %98 = vector.extract_strided_slice %81 {offsets = [17, 0], sizes = [1, 128], strides = [1, 1]} : vector<32x128xf32> to vector<1x128xf32>
    %99 = vector.extract_strided_slice %81 {offsets = [25, 0], sizes = [1, 128], strides = [1, 1]} : vector<32x128xf32> to vector<1x128xf32>
    %100 = vector.extract_strided_slice %83 {offsets = [1, 0], sizes = [1, 128], strides = [1, 1]} : vector<32x128xf32> to vector<1x128xf32>
    %101 = vector.extract_strided_slice %83 {offsets = [9, 0], sizes = [1, 128], strides = [1, 1]} : vector<32x128xf32> to vector<1x128xf32>
    %102 = vector.extract_strided_slice %83 {offsets = [17, 0], sizes = [1, 128], strides = [1, 1]} : vector<32x128xf32> to vector<1x128xf32>
    %103 = vector.extract_strided_slice %83 {offsets = [25, 0], sizes = [1, 128], strides = [1, 1]} : vector<32x128xf32> to vector<1x128xf32>
    %104 = tpu.concatenate %96, %97, %98, %99, %100, %101, %102, %103 in 0 : vector<1x128xf32>, vector<1x128xf32>, vector<1x128xf32>, vector<1x128xf32>, vector<1x128xf32>, vector<1x128xf32>, vector<1x128xf32>, vector<1x128xf32> -> vector<8x128xf32>
    %105 = arith.addf %104, %84 : vector<8x128xf32>
    %106 = vector.extract_strided_slice %81 {offsets = [2, 0], sizes = [1, 128], strides = [1, 1]} : vector<32x128xf32> to vector<1x128xf32>
    %107 = vector.extract_strided_slice %81 {offsets = [10, 0], sizes = [1, 128], strides = [1, 1]} : vector<32x128xf32> to vector<1x128xf32>
    %108 = vector.extract_strided_slice %81 {offsets = [18, 0], sizes = [1, 128], strides = [1, 1]} : vector<32x128xf32> to vector<1x128xf32>
    %109 = vector.extract_strided_slice %81 {offsets = [26, 0], sizes = [1, 128], strides = [1, 1]} : vector<32x128xf32> to vector<1x128xf32>
    %110 = vector.extract_strided_slice %83 {offsets = [2, 0], sizes = [1, 128], strides = [1, 1]} : vector<32x128xf32> to vector<1x128xf32>
    %111 = vector.extract_strided_slice %83 {offsets = [10, 0], sizes = [1, 128], strides = [1, 1]} : vector<32x128xf32> to vector<1x128xf32>
    %112 = vector.extract_strided_slice %83 {offsets = [18, 0], sizes = [1, 128], strides = [1, 1]} : vector<32x128xf32> to vector<1x128xf32>
    %113 = vector.extract_strided_slice %83 {offsets = [26, 0], sizes = [1, 128], strides = [1, 1]} : vector<32x128xf32> to vector<1x128xf32>
    %114 = tpu.concatenate %106, %107, %108, %109, %110, %111, %112, %113 in 0 : vector<1x128xf32>, vector<1x128xf32>, vector<1x128xf32>, vector<1x128xf32>, vector<1x128xf32>, vector<1x128xf32>, vector<1x128xf32>, vector<1x128xf32> -> vector<8x128xf32>
    %115 = arith.addf %114, %84 : vector<8x128xf32>
    %116 = vector.extract_strided_slice %81 {offsets = [3, 0], sizes = [1, 128], strides = [1, 1]} : vector<32x128xf32> to vector<1x128xf32>
    %117 = vector.extract_strided_slice %81 {offsets = [11, 0], sizes = [1, 128], strides = [1, 1]} : vector<32x128xf32> to vector<1x128xf32>
    %118 = vector.extract_strided_slice %81 {offsets = [19, 0], sizes = [1, 128], strides = [1, 1]} : vector<32x128xf32> to vector<1x128xf32>
    %119 = vector.extract_strided_slice %81 {offsets = [27, 0], sizes = [1, 128], strides = [1, 1]} : vector<32x128xf32> to vector<1x128xf32>
    %120 = vector.extract_strided_slice %83 {offsets = [3, 0], sizes = [1, 128], strides = [1, 1]} : vector<32x128xf32> to vector<1x128xf32>
    %121 = vector.extract_strided_slice %83 {offsets = [11, 0], sizes = [1, 128], strides = [1, 1]} : vector<32x128xf32> to vector<1x128xf32>
    %122 = vector.extract_strided_slice %83 {offsets = [19, 0], sizes = [1, 128], strides = [1, 1]} : vector<32x128xf32> to vector<1x128xf32>
    %123 = vector.extract_strided_slice %83 {offsets = [27, 0], sizes = [1, 128], strides = [1, 1]} : vector<32x128xf32> to vector<1x128xf32>
    %124 = tpu.concatenate %116, %117, %118, %119, %120, %121, %122, %123 in 0 : vector<1x128xf32>, vector<1x128xf32>, vector<1x128xf32>, vector<1x128xf32>, vector<1x128xf32>, vector<1x128xf32>, vector<1x128xf32>, vector<1x128xf32> -> vector<8x128xf32>
    %125 = arith.addf %124, %84 : vector<8x128xf32>
    %126 = vector.extract_strided_slice %81 {offsets = [4, 0], sizes = [1, 128], strides = [1, 1]} : vector<32x128xf32> to vector<1x128xf32>
    %127 = vector.extract_strided_slice %81 {offsets = [12, 0], sizes = [1, 128], strides = [1, 1]} : vector<32x128xf32> to vector<1x128xf32>
    %128 = vector.extract_strided_slice %81 {offsets = [20, 0], sizes = [1, 128], strides = [1, 1]} : vector<32x128xf32> to vector<1x128xf32>
    %129 = vector.extract_strided_slice %81 {offsets = [28, 0], sizes = [1, 128], strides = [1, 1]} : vector<32x128xf32> to vector<1x128xf32>
    %130 = vector.extract_strided_slice %83 {offsets = [4, 0], sizes = [1, 128], strides = [1, 1]} : vector<32x128xf32> to vector<1x128xf32>
    %131 = vector.extract_strided_slice %83 {offsets = [12, 0], sizes = [1, 128], strides = [1, 1]} : vector<32x128xf32> to vector<1x128xf32>
    %132 = vector.extract_strided_slice %83 {offsets = [20, 0], sizes = [1, 128], strides = [1, 1]} : vector<32x128xf32> to vector<1x128xf32>
    %133 = vector.extract_strided_slice %83 {offsets = [28, 0], sizes = [1, 128], strides = [1, 1]} : vector<32x128xf32> to vector<1x128xf32>
    %134 = tpu.concatenate %126, %127, %128, %129, %130, %131, %132, %133 in 0 : vector<1x128xf32>, vector<1x128xf32>, vector<1x128xf32>, vector<1x128xf32>, vector<1x128xf32>, vector<1x128xf32>, vector<1x128xf32>, vector<1x128xf32> -> vector<8x128xf32>
    %135 = arith.addf %134, %84 : vector<8x128xf32>
    %136 = vector.extract_strided_slice %81 {offsets = [5, 0], sizes = [1, 128], strides = [1, 1]} : vector<32x128xf32> to vector<1x128xf32>
    %137 = vector.extract_strided_slice %81 {offsets = [13, 0], sizes = [1, 128], strides = [1, 1]} : vector<32x128xf32> to vector<1x128xf32>
    %138 = vector.extract_strided_slice %81 {offsets = [21, 0], sizes = [1, 128], strides = [1, 1]} : vector<32x128xf32> to vector<1x128xf32>
    %139 = vector.extract_strided_slice %81 {offsets = [29, 0], sizes = [1, 128], strides = [1, 1]} : vector<32x128xf32> to vector<1x128xf32>
    %140 = vector.extract_strided_slice %83 {offsets = [5, 0], sizes = [1, 128], strides = [1, 1]} : vector<32x128xf32> to vector<1x128xf32>
    %141 = vector.extract_strided_slice %83 {offsets = [13, 0], sizes = [1, 128], strides = [1, 1]} : vector<32x128xf32> to vector<1x128xf32>
    %142 = vector.extract_strided_slice %83 {offsets = [21, 0], sizes = [1, 128], strides = [1, 1]} : vector<32x128xf32> to vector<1x128xf32>
    %143 = vector.extract_strided_slice %83 {offsets = [29, 0], sizes = [1, 128], strides = [1, 1]} : vector<32x128xf32> to vector<1x128xf32>
    %144 = tpu.concatenate %136, %137, %138, %139, %140, %141, %142, %143 in 0 : vector<1x128xf32>, vector<1x128xf32>, vector<1x128xf32>, vector<1x128xf32>, vector<1x128xf32>, vector<1x128xf32>, vector<1x128xf32>, vector<1x128xf32> -> vector<8x128xf32>
    %145 = arith.addf %144, %84 : vector<8x128xf32>
    %146 = vector.extract_strided_slice %81 {offsets = [6, 0], sizes = [1, 128], strides = [1, 1]} : vector<32x128xf32> to vector<1x128xf32>
    %147 = vector.extract_strided_slice %81 {offsets = [14, 0], sizes = [1, 128], strides = [1, 1]} : vector<32x128xf32> to vector<1x128xf32>
    %148 = vector.extract_strided_slice %81 {offsets = [22, 0], sizes = [1, 128], strides = [1, 1]} : vector<32x128xf32> to vector<1x128xf32>
    %149 = vector.extract_strided_slice %81 {offsets = [30, 0], sizes = [1, 128], strides = [1, 1]} : vector<32x128xf32> to vector<1x128xf32>
    %150 = vector.extract_strided_slice %83 {offsets = [6, 0], sizes = [1, 128], strides = [1, 1]} : vector<32x128xf32> to vector<1x128xf32>
    %151 = vector.extract_strided_slice %83 {offsets = [14, 0], sizes = [1, 128], strides = [1, 1]} : vector<32x128xf32> to vector<1x128xf32>
    %152 = vector.extract_strided_slice %83 {offsets = [22, 0], sizes = [1, 128], strides = [1, 1]} : vector<32x128xf32> to vector<1x128xf32>
    %153 = vector.extract_strided_slice %83 {offsets = [30, 0], sizes = [1, 128], strides = [1, 1]} : vector<32x128xf32> to vector<1x128xf32>
    %154 = tpu.concatenate %146, %147, %148, %149, %150, %151, %152, %153 in 0 : vector<1x128xf32>, vector<1x128xf32>, vector<1x128xf32>, vector<1x128xf32>, vector<1x128xf32>, vector<1x128xf32>, vector<1x128xf32>, vector<1x128xf32> -> vector<8x128xf32>
    %155 = arith.addf %154, %84 : vector<8x128xf32>
    %156 = vector.extract_strided_slice %81 {offsets = [7, 0], sizes = [1, 128], strides = [1, 1]} : vector<32x128xf32> to vector<1x128xf32>
    %157 = vector.extract_strided_slice %81 {offsets = [15, 0], sizes = [1, 128], strides = [1, 1]} : vector<32x128xf32> to vector<1x128xf32>
    %158 = vector.extract_strided_slice %81 {offsets = [23, 0], sizes = [1, 128], strides = [1, 1]} : vector<32x128xf32> to vector<1x128xf32>
    %159 = vector.extract_strided_slice %81 {offsets = [31, 0], sizes = [1, 128], strides = [1, 1]} : vector<32x128xf32> to vector<1x128xf32>
    %160 = vector.extract_strided_slice %83 {offsets = [7, 0], sizes = [1, 128], strides = [1, 1]} : vector<32x128xf32> to vector<1x128xf32>
    %161 = vector.extract_strided_slice %83 {offsets = [15, 0], sizes = [1, 128], strides = [1, 1]} : vector<32x128xf32> to vector<1x128xf32>
    %162 = vector.extract_strided_slice %83 {offsets = [23, 0], sizes = [1, 128], strides = [1, 1]} : vector<32x128xf32> to vector<1x128xf32>
    %163 = vector.extract_strided_slice %83 {offsets = [31, 0], sizes = [1, 128], strides = [1, 1]} : vector<32x128xf32> to vector<1x128xf32>
    %164 = tpu.concatenate %156, %157, %158, %159, %160, %161, %162, %163 in 0 : vector<1x128xf32>, vector<1x128xf32>, vector<1x128xf32>, vector<1x128xf32>, vector<1x128xf32>, vector<1x128xf32>, vector<1x128xf32>, vector<1x128xf32> -> vector<8x128xf32>
    %165 = arith.addf %164, %84 : vector<8x128xf32>
    %cst_31 = arith.constant 0.000000e+00 : f32
    %166 = vector.broadcast %cst_31 : f32 to vector<8x32xf32>
    %cst_32 = arith.constant 0.000000e+00 : f32
    %167 = vector.broadcast %cst_32 : f32 to vector<8x32xf32>
    %168 = vector.broadcast %63 : vector<8x1xf32> to vector<8x32xf32>
    %169 = arith.mulf %166, %168 : vector<8x32xf32>
    %170 = vector.broadcast %65 : vector<8x1xf32> to vector<8x32xf32>
    %171 = arith.mulf %166, %170 : vector<8x32xf32>
    %172 = tpu.concatenate %169, %171 in 1 : vector<8x32xf32>, vector<8x32xf32> -> vector<8x64xf32>
    %cst_33 = arith.constant dense<0.000000e+00> : vector<8x128xf32>
    %173 = tpu.matmul %172, %85, %cst_33 {dimension_numbers = #tpu.dot_dimension_numbers<[1], [0], [0], [1], [0, 0, 1, 1], [], []>} : vector<8x64xf32>, vector<64x128xf32>, vector<8x128xf32> -> vector<8x128xf32>
    %174 = arith.addf %95, %173 : vector<8x128xf32>
    %175 = vector.extract_strided_slice %174 {offsets = [0, 0], sizes = [8, 32], strides = [1, 1]} : vector<8x128xf32> to vector<8x32xf32>
    %176 = arith.negf %175 : vector<8x32xf32>
    %177 = math.exp %176 : vector<8x32xf32>
    %cst_34 = arith.constant 1.000000e+00 : f32
    %178 = vector.broadcast %cst_34 : f32 to vector<8x32xf32>
    %179 = arith.addf %178, %177 : vector<8x32xf32>
    %180 = arith.divf %178, %179 : vector<8x32xf32>
    %181 = vector.extract_strided_slice %174 {offsets = [0, 32], sizes = [8, 32], strides = [1, 1]} : vector<8x128xf32> to vector<8x32xf32>
    %182 = arith.negf %181 : vector<8x32xf32>
    %183 = math.exp %182 : vector<8x32xf32>
    %cst_35 = arith.constant 1.000000e+00 : f32
    %184 = vector.broadcast %cst_35 : f32 to vector<8x32xf32>
    %185 = arith.addf %184, %183 : vector<8x32xf32>
    %186 = arith.divf %184, %185 : vector<8x32xf32>
    %187 = vector.extract_strided_slice %174 {offsets = [0, 64], sizes = [8, 32], strides = [1, 1]} : vector<8x128xf32> to vector<8x32xf32>
    %188 = math.tanh %187 : vector<8x32xf32>
    %189 = vector.extract_strided_slice %174 {offsets = [0, 96], sizes = [8, 32], strides = [1, 1]} : vector<8x128xf32> to vector<8x32xf32>
    %190 = arith.negf %189 : vector<8x32xf32>
    %191 = math.exp %190 : vector<8x32xf32>
    %cst_36 = arith.constant 1.000000e+00 : f32
    %192 = vector.broadcast %cst_36 : f32 to vector<8x32xf32>
    %193 = arith.addf %192, %191 : vector<8x32xf32>
    %194 = arith.divf %192, %193 : vector<8x32xf32>
    %195 = arith.mulf %186, %167 : vector<8x32xf32>
    %196 = arith.mulf %180, %188 : vector<8x32xf32>
    %197 = arith.addf %195, %196 : vector<8x32xf32>
    %198 = math.tanh %197 : vector<8x32xf32>
    %199 = arith.mulf %194, %198 : vector<8x32xf32>
    %200 = vector.broadcast %63 : vector<8x1xf32> to vector<8x32xf32>
    %201 = arith.mulf %199, %200 : vector<8x32xf32>
    %202 = vector.broadcast %65 : vector<8x1xf32> to vector<8x32xf32>
    %203 = arith.mulf %199, %202 : vector<8x32xf32>
    %204 = tpu.concatenate %201, %203 in 1 : vector<8x32xf32>, vector<8x32xf32> -> vector<8x64xf32>
    %cst_37 = arith.constant dense<0.000000e+00> : vector<8x128xf32>
    %205 = tpu.matmul %204, %85, %cst_37 {dimension_numbers = #tpu.dot_dimension_numbers<[1], [0], [0], [1], [0, 0, 1, 1], [], []>} : vector<8x64xf32>, vector<64x128xf32>, vector<8x128xf32> -> vector<8x128xf32>
    %206 = arith.addf %105, %205 : vector<8x128xf32>
    %207 = vector.extract_strided_slice %206 {offsets = [0, 0], sizes = [8, 32], strides = [1, 1]} : vector<8x128xf32> to vector<8x32xf32>
    %208 = arith.negf %207 : vector<8x32xf32>
    %209 = math.exp %208 : vector<8x32xf32>
    %cst_38 = arith.constant 1.000000e+00 : f32
    %210 = vector.broadcast %cst_38 : f32 to vector<8x32xf32>
    %211 = arith.addf %210, %209 : vector<8x32xf32>
    %212 = arith.divf %210, %211 : vector<8x32xf32>
    %213 = vector.extract_strided_slice %206 {offsets = [0, 32], sizes = [8, 32], strides = [1, 1]} : vector<8x128xf32> to vector<8x32xf32>
    %214 = arith.negf %213 : vector<8x32xf32>
    %215 = math.exp %214 : vector<8x32xf32>
    %cst_39 = arith.constant 1.000000e+00 : f32
    %216 = vector.broadcast %cst_39 : f32 to vector<8x32xf32>
    %217 = arith.addf %216, %215 : vector<8x32xf32>
    %218 = arith.divf %216, %217 : vector<8x32xf32>
    %219 = vector.extract_strided_slice %206 {offsets = [0, 64], sizes = [8, 32], strides = [1, 1]} : vector<8x128xf32> to vector<8x32xf32>
    %220 = math.tanh %219 : vector<8x32xf32>
    %221 = vector.extract_strided_slice %206 {offsets = [0, 96], sizes = [8, 32], strides = [1, 1]} : vector<8x128xf32> to vector<8x32xf32>
    %222 = arith.negf %221 : vector<8x32xf32>
    %223 = math.exp %222 : vector<8x32xf32>
    %cst_40 = arith.constant 1.000000e+00 : f32
    %224 = vector.broadcast %cst_40 : f32 to vector<8x32xf32>
    %225 = arith.addf %224, %223 : vector<8x32xf32>
    %226 = arith.divf %224, %225 : vector<8x32xf32>
    %227 = arith.mulf %218, %197 : vector<8x32xf32>
    %228 = arith.mulf %212, %220 : vector<8x32xf32>
    %229 = arith.addf %227, %228 : vector<8x32xf32>
    %230 = math.tanh %229 : vector<8x32xf32>
    %231 = arith.mulf %226, %230 : vector<8x32xf32>
    %232 = vector.broadcast %63 : vector<8x1xf32> to vector<8x32xf32>
    %233 = arith.mulf %231, %232 : vector<8x32xf32>
    %234 = vector.broadcast %65 : vector<8x1xf32> to vector<8x32xf32>
    %235 = arith.mulf %231, %234 : vector<8x32xf32>
    %236 = tpu.concatenate %233, %235 in 1 : vector<8x32xf32>, vector<8x32xf32> -> vector<8x64xf32>
    %cst_41 = arith.constant dense<0.000000e+00> : vector<8x128xf32>
    %237 = tpu.matmul %236, %85, %cst_41 {dimension_numbers = #tpu.dot_dimension_numbers<[1], [0], [0], [1], [0, 0, 1, 1], [], []>} : vector<8x64xf32>, vector<64x128xf32>, vector<8x128xf32> -> vector<8x128xf32>
    %238 = arith.addf %115, %237 : vector<8x128xf32>
    %239 = vector.extract_strided_slice %238 {offsets = [0, 0], sizes = [8, 32], strides = [1, 1]} : vector<8x128xf32> to vector<8x32xf32>
    %240 = arith.negf %239 : vector<8x32xf32>
    %241 = math.exp %240 : vector<8x32xf32>
    %cst_42 = arith.constant 1.000000e+00 : f32
    %242 = vector.broadcast %cst_42 : f32 to vector<8x32xf32>
    %243 = arith.addf %242, %241 : vector<8x32xf32>
    %244 = arith.divf %242, %243 : vector<8x32xf32>
    %245 = vector.extract_strided_slice %238 {offsets = [0, 32], sizes = [8, 32], strides = [1, 1]} : vector<8x128xf32> to vector<8x32xf32>
    %246 = arith.negf %245 : vector<8x32xf32>
    %247 = math.exp %246 : vector<8x32xf32>
    %cst_43 = arith.constant 1.000000e+00 : f32
    %248 = vector.broadcast %cst_43 : f32 to vector<8x32xf32>
    %249 = arith.addf %248, %247 : vector<8x32xf32>
    %250 = arith.divf %248, %249 : vector<8x32xf32>
    %251 = vector.extract_strided_slice %238 {offsets = [0, 64], sizes = [8, 32], strides = [1, 1]} : vector<8x128xf32> to vector<8x32xf32>
    %252 = math.tanh %251 : vector<8x32xf32>
    %253 = vector.extract_strided_slice %238 {offsets = [0, 96], sizes = [8, 32], strides = [1, 1]} : vector<8x128xf32> to vector<8x32xf32>
    %254 = arith.negf %253 : vector<8x32xf32>
    %255 = math.exp %254 : vector<8x32xf32>
    %cst_44 = arith.constant 1.000000e+00 : f32
    %256 = vector.broadcast %cst_44 : f32 to vector<8x32xf32>
    %257 = arith.addf %256, %255 : vector<8x32xf32>
    %258 = arith.divf %256, %257 : vector<8x32xf32>
    %259 = arith.mulf %250, %229 : vector<8x32xf32>
    %260 = arith.mulf %244, %252 : vector<8x32xf32>
    %261 = arith.addf %259, %260 : vector<8x32xf32>
    %262 = math.tanh %261 : vector<8x32xf32>
    %263 = arith.mulf %258, %262 : vector<8x32xf32>
    %264 = vector.broadcast %63 : vector<8x1xf32> to vector<8x32xf32>
    %265 = arith.mulf %263, %264 : vector<8x32xf32>
    %266 = vector.broadcast %65 : vector<8x1xf32> to vector<8x32xf32>
    %267 = arith.mulf %263, %266 : vector<8x32xf32>
    %268 = tpu.concatenate %265, %267 in 1 : vector<8x32xf32>, vector<8x32xf32> -> vector<8x64xf32>
    %cst_45 = arith.constant dense<0.000000e+00> : vector<8x128xf32>
    %269 = tpu.matmul %268, %85, %cst_45 {dimension_numbers = #tpu.dot_dimension_numbers<[1], [0], [0], [1], [0, 0, 1, 1], [], []>} : vector<8x64xf32>, vector<64x128xf32>, vector<8x128xf32> -> vector<8x128xf32>
    %270 = arith.addf %125, %269 : vector<8x128xf32>
    %271 = vector.extract_strided_slice %270 {offsets = [0, 0], sizes = [8, 32], strides = [1, 1]} : vector<8x128xf32> to vector<8x32xf32>
    %272 = arith.negf %271 : vector<8x32xf32>
    %273 = math.exp %272 : vector<8x32xf32>
    %cst_46 = arith.constant 1.000000e+00 : f32
    %274 = vector.broadcast %cst_46 : f32 to vector<8x32xf32>
    %275 = arith.addf %274, %273 : vector<8x32xf32>
    %276 = arith.divf %274, %275 : vector<8x32xf32>
    %277 = vector.extract_strided_slice %270 {offsets = [0, 32], sizes = [8, 32], strides = [1, 1]} : vector<8x128xf32> to vector<8x32xf32>
    %278 = arith.negf %277 : vector<8x32xf32>
    %279 = math.exp %278 : vector<8x32xf32>
    %cst_47 = arith.constant 1.000000e+00 : f32
    %280 = vector.broadcast %cst_47 : f32 to vector<8x32xf32>
    %281 = arith.addf %280, %279 : vector<8x32xf32>
    %282 = arith.divf %280, %281 : vector<8x32xf32>
    %283 = vector.extract_strided_slice %270 {offsets = [0, 64], sizes = [8, 32], strides = [1, 1]} : vector<8x128xf32> to vector<8x32xf32>
    %284 = math.tanh %283 : vector<8x32xf32>
    %285 = vector.extract_strided_slice %270 {offsets = [0, 96], sizes = [8, 32], strides = [1, 1]} : vector<8x128xf32> to vector<8x32xf32>
    %286 = arith.negf %285 : vector<8x32xf32>
    %287 = math.exp %286 : vector<8x32xf32>
    %cst_48 = arith.constant 1.000000e+00 : f32
    %288 = vector.broadcast %cst_48 : f32 to vector<8x32xf32>
    %289 = arith.addf %288, %287 : vector<8x32xf32>
    %290 = arith.divf %288, %289 : vector<8x32xf32>
    %291 = arith.mulf %282, %261 : vector<8x32xf32>
    %292 = arith.mulf %276, %284 : vector<8x32xf32>
    %293 = arith.addf %291, %292 : vector<8x32xf32>
    %294 = math.tanh %293 : vector<8x32xf32>
    %295 = arith.mulf %290, %294 : vector<8x32xf32>
    %296 = vector.broadcast %63 : vector<8x1xf32> to vector<8x32xf32>
    %297 = arith.mulf %295, %296 : vector<8x32xf32>
    %298 = vector.broadcast %65 : vector<8x1xf32> to vector<8x32xf32>
    %299 = arith.mulf %295, %298 : vector<8x32xf32>
    %300 = tpu.concatenate %297, %299 in 1 : vector<8x32xf32>, vector<8x32xf32> -> vector<8x64xf32>
    %cst_49 = arith.constant dense<0.000000e+00> : vector<8x128xf32>
    %301 = tpu.matmul %300, %85, %cst_49 {dimension_numbers = #tpu.dot_dimension_numbers<[1], [0], [0], [1], [0, 0, 1, 1], [], []>} : vector<8x64xf32>, vector<64x128xf32>, vector<8x128xf32> -> vector<8x128xf32>
    %302 = arith.addf %135, %301 : vector<8x128xf32>
    %303 = vector.extract_strided_slice %302 {offsets = [0, 0], sizes = [8, 32], strides = [1, 1]} : vector<8x128xf32> to vector<8x32xf32>
    %304 = arith.negf %303 : vector<8x32xf32>
    %305 = math.exp %304 : vector<8x32xf32>
    %cst_50 = arith.constant 1.000000e+00 : f32
    %306 = vector.broadcast %cst_50 : f32 to vector<8x32xf32>
    %307 = arith.addf %306, %305 : vector<8x32xf32>
    %308 = arith.divf %306, %307 : vector<8x32xf32>
    %309 = vector.extract_strided_slice %302 {offsets = [0, 32], sizes = [8, 32], strides = [1, 1]} : vector<8x128xf32> to vector<8x32xf32>
    %310 = arith.negf %309 : vector<8x32xf32>
    %311 = math.exp %310 : vector<8x32xf32>
    %cst_51 = arith.constant 1.000000e+00 : f32
    %312 = vector.broadcast %cst_51 : f32 to vector<8x32xf32>
    %313 = arith.addf %312, %311 : vector<8x32xf32>
    %314 = arith.divf %312, %313 : vector<8x32xf32>
    %315 = vector.extract_strided_slice %302 {offsets = [0, 64], sizes = [8, 32], strides = [1, 1]} : vector<8x128xf32> to vector<8x32xf32>
    %316 = math.tanh %315 : vector<8x32xf32>
    %317 = vector.extract_strided_slice %302 {offsets = [0, 96], sizes = [8, 32], strides = [1, 1]} : vector<8x128xf32> to vector<8x32xf32>
    %318 = arith.negf %317 : vector<8x32xf32>
    %319 = math.exp %318 : vector<8x32xf32>
    %cst_52 = arith.constant 1.000000e+00 : f32
    %320 = vector.broadcast %cst_52 : f32 to vector<8x32xf32>
    %321 = arith.addf %320, %319 : vector<8x32xf32>
    %322 = arith.divf %320, %321 : vector<8x32xf32>
    %323 = arith.mulf %314, %293 : vector<8x32xf32>
    %324 = arith.mulf %308, %316 : vector<8x32xf32>
    %325 = arith.addf %323, %324 : vector<8x32xf32>
    %326 = math.tanh %325 : vector<8x32xf32>
    %327 = arith.mulf %322, %326 : vector<8x32xf32>
    %328 = vector.broadcast %63 : vector<8x1xf32> to vector<8x32xf32>
    %329 = arith.mulf %327, %328 : vector<8x32xf32>
    %330 = vector.broadcast %65 : vector<8x1xf32> to vector<8x32xf32>
    %331 = arith.mulf %327, %330 : vector<8x32xf32>
    %332 = tpu.concatenate %329, %331 in 1 : vector<8x32xf32>, vector<8x32xf32> -> vector<8x64xf32>
    %cst_53 = arith.constant dense<0.000000e+00> : vector<8x128xf32>
    %333 = tpu.matmul %332, %85, %cst_53 {dimension_numbers = #tpu.dot_dimension_numbers<[1], [0], [0], [1], [0, 0, 1, 1], [], []>} : vector<8x64xf32>, vector<64x128xf32>, vector<8x128xf32> -> vector<8x128xf32>
    %334 = arith.addf %145, %333 : vector<8x128xf32>
    %335 = vector.extract_strided_slice %334 {offsets = [0, 0], sizes = [8, 32], strides = [1, 1]} : vector<8x128xf32> to vector<8x32xf32>
    %336 = arith.negf %335 : vector<8x32xf32>
    %337 = math.exp %336 : vector<8x32xf32>
    %cst_54 = arith.constant 1.000000e+00 : f32
    %338 = vector.broadcast %cst_54 : f32 to vector<8x32xf32>
    %339 = arith.addf %338, %337 : vector<8x32xf32>
    %340 = arith.divf %338, %339 : vector<8x32xf32>
    %341 = vector.extract_strided_slice %334 {offsets = [0, 32], sizes = [8, 32], strides = [1, 1]} : vector<8x128xf32> to vector<8x32xf32>
    %342 = arith.negf %341 : vector<8x32xf32>
    %343 = math.exp %342 : vector<8x32xf32>
    %cst_55 = arith.constant 1.000000e+00 : f32
    %344 = vector.broadcast %cst_55 : f32 to vector<8x32xf32>
    %345 = arith.addf %344, %343 : vector<8x32xf32>
    %346 = arith.divf %344, %345 : vector<8x32xf32>
    %347 = vector.extract_strided_slice %334 {offsets = [0, 64], sizes = [8, 32], strides = [1, 1]} : vector<8x128xf32> to vector<8x32xf32>
    %348 = math.tanh %347 : vector<8x32xf32>
    %349 = vector.extract_strided_slice %334 {offsets = [0, 96], sizes = [8, 32], strides = [1, 1]} : vector<8x128xf32> to vector<8x32xf32>
    %350 = arith.negf %349 : vector<8x32xf32>
    %351 = math.exp %350 : vector<8x32xf32>
    %cst_56 = arith.constant 1.000000e+00 : f32
    %352 = vector.broadcast %cst_56 : f32 to vector<8x32xf32>
    %353 = arith.addf %352, %351 : vector<8x32xf32>
    %354 = arith.divf %352, %353 : vector<8x32xf32>
    %355 = arith.mulf %346, %325 : vector<8x32xf32>
    %356 = arith.mulf %340, %348 : vector<8x32xf32>
    %357 = arith.addf %355, %356 : vector<8x32xf32>
    %358 = math.tanh %357 : vector<8x32xf32>
    %359 = arith.mulf %354, %358 : vector<8x32xf32>
    %360 = vector.broadcast %63 : vector<8x1xf32> to vector<8x32xf32>
    %361 = arith.mulf %359, %360 : vector<8x32xf32>
    %362 = vector.broadcast %65 : vector<8x1xf32> to vector<8x32xf32>
    %363 = arith.mulf %359, %362 : vector<8x32xf32>
    %364 = tpu.concatenate %361, %363 in 1 : vector<8x32xf32>, vector<8x32xf32> -> vector<8x64xf32>
    %cst_57 = arith.constant dense<0.000000e+00> : vector<8x128xf32>
    %365 = tpu.matmul %364, %85, %cst_57 {dimension_numbers = #tpu.dot_dimension_numbers<[1], [0], [0], [1], [0, 0, 1, 1], [], []>} : vector<8x64xf32>, vector<64x128xf32>, vector<8x128xf32> -> vector<8x128xf32>
    %366 = arith.addf %155, %365 : vector<8x128xf32>
    %367 = vector.extract_strided_slice %366 {offsets = [0, 0], sizes = [8, 32], strides = [1, 1]} : vector<8x128xf32> to vector<8x32xf32>
    %368 = arith.negf %367 : vector<8x32xf32>
    %369 = math.exp %368 : vector<8x32xf32>
    %cst_58 = arith.constant 1.000000e+00 : f32
    %370 = vector.broadcast %cst_58 : f32 to vector<8x32xf32>
    %371 = arith.addf %370, %369 : vector<8x32xf32>
    %372 = arith.divf %370, %371 : vector<8x32xf32>
    %373 = vector.extract_strided_slice %366 {offsets = [0, 32], sizes = [8, 32], strides = [1, 1]} : vector<8x128xf32> to vector<8x32xf32>
    %374 = arith.negf %373 : vector<8x32xf32>
    %375 = math.exp %374 : vector<8x32xf32>
    %cst_59 = arith.constant 1.000000e+00 : f32
    %376 = vector.broadcast %cst_59 : f32 to vector<8x32xf32>
    %377 = arith.addf %376, %375 : vector<8x32xf32>
    %378 = arith.divf %376, %377 : vector<8x32xf32>
    %379 = vector.extract_strided_slice %366 {offsets = [0, 64], sizes = [8, 32], strides = [1, 1]} : vector<8x128xf32> to vector<8x32xf32>
    %380 = math.tanh %379 : vector<8x32xf32>
    %381 = vector.extract_strided_slice %366 {offsets = [0, 96], sizes = [8, 32], strides = [1, 1]} : vector<8x128xf32> to vector<8x32xf32>
    %382 = arith.negf %381 : vector<8x32xf32>
    %383 = math.exp %382 : vector<8x32xf32>
    %cst_60 = arith.constant 1.000000e+00 : f32
    %384 = vector.broadcast %cst_60 : f32 to vector<8x32xf32>
    %385 = arith.addf %384, %383 : vector<8x32xf32>
    %386 = arith.divf %384, %385 : vector<8x32xf32>
    %387 = arith.mulf %378, %357 : vector<8x32xf32>
    %388 = arith.mulf %372, %380 : vector<8x32xf32>
    %389 = arith.addf %387, %388 : vector<8x32xf32>
    %390 = math.tanh %389 : vector<8x32xf32>
    %391 = arith.mulf %386, %390 : vector<8x32xf32>
    %392 = vector.broadcast %63 : vector<8x1xf32> to vector<8x32xf32>
    %393 = arith.mulf %391, %392 : vector<8x32xf32>
    %394 = vector.broadcast %65 : vector<8x1xf32> to vector<8x32xf32>
    %395 = arith.mulf %391, %394 : vector<8x32xf32>
    %396 = tpu.concatenate %393, %395 in 1 : vector<8x32xf32>, vector<8x32xf32> -> vector<8x64xf32>
    %cst_61 = arith.constant dense<0.000000e+00> : vector<8x128xf32>
    %397 = tpu.matmul %396, %85, %cst_61 {dimension_numbers = #tpu.dot_dimension_numbers<[1], [0], [0], [1], [0, 0, 1, 1], [], []>} : vector<8x64xf32>, vector<64x128xf32>, vector<8x128xf32> -> vector<8x128xf32>
    %398 = arith.addf %165, %397 : vector<8x128xf32>
    %399 = vector.extract_strided_slice %398 {offsets = [0, 0], sizes = [8, 32], strides = [1, 1]} : vector<8x128xf32> to vector<8x32xf32>
    %400 = arith.negf %399 : vector<8x32xf32>
    %401 = math.exp %400 : vector<8x32xf32>
    %cst_62 = arith.constant 1.000000e+00 : f32
    %402 = vector.broadcast %cst_62 : f32 to vector<8x32xf32>
    %403 = arith.addf %402, %401 : vector<8x32xf32>
    %404 = arith.divf %402, %403 : vector<8x32xf32>
    %405 = vector.extract_strided_slice %398 {offsets = [0, 32], sizes = [8, 32], strides = [1, 1]} : vector<8x128xf32> to vector<8x32xf32>
    %406 = arith.negf %405 : vector<8x32xf32>
    %407 = math.exp %406 : vector<8x32xf32>
    %cst_63 = arith.constant 1.000000e+00 : f32
    %408 = vector.broadcast %cst_63 : f32 to vector<8x32xf32>
    %409 = arith.addf %408, %407 : vector<8x32xf32>
    %410 = arith.divf %408, %409 : vector<8x32xf32>
    %411 = vector.extract_strided_slice %398 {offsets = [0, 64], sizes = [8, 32], strides = [1, 1]} : vector<8x128xf32> to vector<8x32xf32>
    %412 = math.tanh %411 : vector<8x32xf32>
    %413 = vector.extract_strided_slice %398 {offsets = [0, 96], sizes = [8, 32], strides = [1, 1]} : vector<8x128xf32> to vector<8x32xf32>
    %414 = arith.negf %413 : vector<8x32xf32>
    %415 = math.exp %414 : vector<8x32xf32>
    %cst_64 = arith.constant 1.000000e+00 : f32
    %416 = vector.broadcast %cst_64 : f32 to vector<8x32xf32>
    %417 = arith.addf %416, %415 : vector<8x32xf32>
    %418 = arith.divf %416, %417 : vector<8x32xf32>
    %419 = arith.mulf %410, %389 : vector<8x32xf32>
    %420 = arith.mulf %404, %412 : vector<8x32xf32>
    %421 = arith.addf %419, %420 : vector<8x32xf32>
    %422 = math.tanh %421 : vector<8x32xf32>
    %423 = arith.mulf %418, %422 : vector<8x32xf32>
    %424 = vector.extract_strided_slice %199 {offsets = [0, 0], sizes = [1, 32], strides = [1, 1]} : vector<8x32xf32> to vector<1x32xf32>
    %425 = vector.extract_strided_slice %231 {offsets = [0, 0], sizes = [1, 32], strides = [1, 1]} : vector<8x32xf32> to vector<1x32xf32>
    %426 = vector.extract_strided_slice %263 {offsets = [0, 0], sizes = [1, 32], strides = [1, 1]} : vector<8x32xf32> to vector<1x32xf32>
    %427 = vector.extract_strided_slice %295 {offsets = [0, 0], sizes = [1, 32], strides = [1, 1]} : vector<8x32xf32> to vector<1x32xf32>
    %428 = vector.extract_strided_slice %327 {offsets = [0, 0], sizes = [1, 32], strides = [1, 1]} : vector<8x32xf32> to vector<1x32xf32>
    %429 = vector.extract_strided_slice %359 {offsets = [0, 0], sizes = [1, 32], strides = [1, 1]} : vector<8x32xf32> to vector<1x32xf32>
    %430 = vector.extract_strided_slice %391 {offsets = [0, 0], sizes = [1, 32], strides = [1, 1]} : vector<8x32xf32> to vector<1x32xf32>
    %431 = vector.extract_strided_slice %423 {offsets = [0, 0], sizes = [1, 32], strides = [1, 1]} : vector<8x32xf32> to vector<1x32xf32>
    %432 = tpu.concatenate %424, %425, %426, %427, %428, %429, %430, %431 in 0 : vector<1x32xf32>, vector<1x32xf32>, vector<1x32xf32>, vector<1x32xf32>, vector<1x32xf32>, vector<1x32xf32>, vector<1x32xf32>, vector<1x32xf32> -> vector<8x32xf32>
    %433 = vector.extract_strided_slice %199 {offsets = [4, 0], sizes = [1, 32], strides = [1, 1]} : vector<8x32xf32> to vector<1x32xf32>
    %434 = vector.extract_strided_slice %231 {offsets = [4, 0], sizes = [1, 32], strides = [1, 1]} : vector<8x32xf32> to vector<1x32xf32>
    %435 = vector.extract_strided_slice %263 {offsets = [4, 0], sizes = [1, 32], strides = [1, 1]} : vector<8x32xf32> to vector<1x32xf32>
    %436 = vector.extract_strided_slice %295 {offsets = [4, 0], sizes = [1, 32], strides = [1, 1]} : vector<8x32xf32> to vector<1x32xf32>
    %437 = vector.extract_strided_slice %327 {offsets = [4, 0], sizes = [1, 32], strides = [1, 1]} : vector<8x32xf32> to vector<1x32xf32>
    %438 = vector.extract_strided_slice %359 {offsets = [4, 0], sizes = [1, 32], strides = [1, 1]} : vector<8x32xf32> to vector<1x32xf32>
    %439 = vector.extract_strided_slice %391 {offsets = [4, 0], sizes = [1, 32], strides = [1, 1]} : vector<8x32xf32> to vector<1x32xf32>
    %440 = vector.extract_strided_slice %423 {offsets = [4, 0], sizes = [1, 32], strides = [1, 1]} : vector<8x32xf32> to vector<1x32xf32>
    %441 = tpu.concatenate %433, %434, %435, %436, %437, %438, %439, %440 in 0 : vector<1x32xf32>, vector<1x32xf32>, vector<1x32xf32>, vector<1x32xf32>, vector<1x32xf32>, vector<1x32xf32>, vector<1x32xf32>, vector<1x32xf32> -> vector<8x32xf32>
    %cst_65 = arith.constant dense<0.000000e+00> : vector<8x32xf32>
    %442 = tpu.matmul %12, %441, %cst_65 {dimension_numbers = #tpu.dot_dimension_numbers<[1], [0], [0], [1], [0, 0, 1, 1], [], []>} : vector<8x8xf32>, vector<8x32xf32>, vector<8x32xf32> -> vector<8x32xf32>
    %443 = tpu.concatenate %432, %442 in 1 : vector<8x32xf32>, vector<8x32xf32> -> vector<8x64xf32>
    %444 = vector.broadcast %16 : vector<8x1xf32> to vector<8x64xf32>
    %445 = arith.mulf %443, %444 : vector<8x64xf32>
    %446 = vector.extract_strided_slice %199 {offsets = [1, 0], sizes = [1, 32], strides = [1, 1]} : vector<8x32xf32> to vector<1x32xf32>
    %447 = vector.extract_strided_slice %231 {offsets = [1, 0], sizes = [1, 32], strides = [1, 1]} : vector<8x32xf32> to vector<1x32xf32>
    %448 = vector.extract_strided_slice %263 {offsets = [1, 0], sizes = [1, 32], strides = [1, 1]} : vector<8x32xf32> to vector<1x32xf32>
    %449 = vector.extract_strided_slice %295 {offsets = [1, 0], sizes = [1, 32], strides = [1, 1]} : vector<8x32xf32> to vector<1x32xf32>
    %450 = vector.extract_strided_slice %327 {offsets = [1, 0], sizes = [1, 32], strides = [1, 1]} : vector<8x32xf32> to vector<1x32xf32>
    %451 = vector.extract_strided_slice %359 {offsets = [1, 0], sizes = [1, 32], strides = [1, 1]} : vector<8x32xf32> to vector<1x32xf32>
    %452 = vector.extract_strided_slice %391 {offsets = [1, 0], sizes = [1, 32], strides = [1, 1]} : vector<8x32xf32> to vector<1x32xf32>
    %453 = vector.extract_strided_slice %423 {offsets = [1, 0], sizes = [1, 32], strides = [1, 1]} : vector<8x32xf32> to vector<1x32xf32>
    %454 = tpu.concatenate %446, %447, %448, %449, %450, %451, %452, %453 in 0 : vector<1x32xf32>, vector<1x32xf32>, vector<1x32xf32>, vector<1x32xf32>, vector<1x32xf32>, vector<1x32xf32>, vector<1x32xf32>, vector<1x32xf32> -> vector<8x32xf32>
    %455 = vector.extract_strided_slice %199 {offsets = [5, 0], sizes = [1, 32], strides = [1, 1]} : vector<8x32xf32> to vector<1x32xf32>
    %456 = vector.extract_strided_slice %231 {offsets = [5, 0], sizes = [1, 32], strides = [1, 1]} : vector<8x32xf32> to vector<1x32xf32>
    %457 = vector.extract_strided_slice %263 {offsets = [5, 0], sizes = [1, 32], strides = [1, 1]} : vector<8x32xf32> to vector<1x32xf32>
    %458 = vector.extract_strided_slice %295 {offsets = [5, 0], sizes = [1, 32], strides = [1, 1]} : vector<8x32xf32> to vector<1x32xf32>
    %459 = vector.extract_strided_slice %327 {offsets = [5, 0], sizes = [1, 32], strides = [1, 1]} : vector<8x32xf32> to vector<1x32xf32>
    %460 = vector.extract_strided_slice %359 {offsets = [5, 0], sizes = [1, 32], strides = [1, 1]} : vector<8x32xf32> to vector<1x32xf32>
    %461 = vector.extract_strided_slice %391 {offsets = [5, 0], sizes = [1, 32], strides = [1, 1]} : vector<8x32xf32> to vector<1x32xf32>
    %462 = vector.extract_strided_slice %423 {offsets = [5, 0], sizes = [1, 32], strides = [1, 1]} : vector<8x32xf32> to vector<1x32xf32>
    %463 = tpu.concatenate %455, %456, %457, %458, %459, %460, %461, %462 in 0 : vector<1x32xf32>, vector<1x32xf32>, vector<1x32xf32>, vector<1x32xf32>, vector<1x32xf32>, vector<1x32xf32>, vector<1x32xf32>, vector<1x32xf32> -> vector<8x32xf32>
    %cst_66 = arith.constant dense<0.000000e+00> : vector<8x32xf32>
    %464 = tpu.matmul %40, %463, %cst_66 {dimension_numbers = #tpu.dot_dimension_numbers<[1], [0], [0], [1], [0, 0, 1, 1], [], []>} : vector<8x8xf32>, vector<8x32xf32>, vector<8x32xf32> -> vector<8x32xf32>
    %465 = tpu.concatenate %454, %464 in 1 : vector<8x32xf32>, vector<8x32xf32> -> vector<8x64xf32>
    %466 = vector.broadcast %44 : vector<8x1xf32> to vector<8x64xf32>
    %467 = arith.mulf %465, %466 : vector<8x64xf32>
    %468 = vector.extract_strided_slice %199 {offsets = [2, 0], sizes = [1, 32], strides = [1, 1]} : vector<8x32xf32> to vector<1x32xf32>
    %469 = vector.extract_strided_slice %231 {offsets = [2, 0], sizes = [1, 32], strides = [1, 1]} : vector<8x32xf32> to vector<1x32xf32>
    %470 = vector.extract_strided_slice %263 {offsets = [2, 0], sizes = [1, 32], strides = [1, 1]} : vector<8x32xf32> to vector<1x32xf32>
    %471 = vector.extract_strided_slice %295 {offsets = [2, 0], sizes = [1, 32], strides = [1, 1]} : vector<8x32xf32> to vector<1x32xf32>
    %472 = vector.extract_strided_slice %327 {offsets = [2, 0], sizes = [1, 32], strides = [1, 1]} : vector<8x32xf32> to vector<1x32xf32>
    %473 = vector.extract_strided_slice %359 {offsets = [2, 0], sizes = [1, 32], strides = [1, 1]} : vector<8x32xf32> to vector<1x32xf32>
    %474 = vector.extract_strided_slice %391 {offsets = [2, 0], sizes = [1, 32], strides = [1, 1]} : vector<8x32xf32> to vector<1x32xf32>
    %475 = vector.extract_strided_slice %423 {offsets = [2, 0], sizes = [1, 32], strides = [1, 1]} : vector<8x32xf32> to vector<1x32xf32>
    %476 = tpu.concatenate %468, %469, %470, %471, %472, %473, %474, %475 in 0 : vector<1x32xf32>, vector<1x32xf32>, vector<1x32xf32>, vector<1x32xf32>, vector<1x32xf32>, vector<1x32xf32>, vector<1x32xf32>, vector<1x32xf32> -> vector<8x32xf32>
    %477 = vector.extract_strided_slice %199 {offsets = [6, 0], sizes = [1, 32], strides = [1, 1]} : vector<8x32xf32> to vector<1x32xf32>
    %478 = vector.extract_strided_slice %231 {offsets = [6, 0], sizes = [1, 32], strides = [1, 1]} : vector<8x32xf32> to vector<1x32xf32>
    %479 = vector.extract_strided_slice %263 {offsets = [6, 0], sizes = [1, 32], strides = [1, 1]} : vector<8x32xf32> to vector<1x32xf32>
    %480 = vector.extract_strided_slice %295 {offsets = [6, 0], sizes = [1, 32], strides = [1, 1]} : vector<8x32xf32> to vector<1x32xf32>
    %481 = vector.extract_strided_slice %327 {offsets = [6, 0], sizes = [1, 32], strides = [1, 1]} : vector<8x32xf32> to vector<1x32xf32>
    %482 = vector.extract_strided_slice %359 {offsets = [6, 0], sizes = [1, 32], strides = [1, 1]} : vector<8x32xf32> to vector<1x32xf32>
    %483 = vector.extract_strided_slice %391 {offsets = [6, 0], sizes = [1, 32], strides = [1, 1]} : vector<8x32xf32> to vector<1x32xf32>
    %484 = vector.extract_strided_slice %423 {offsets = [6, 0], sizes = [1, 32], strides = [1, 1]} : vector<8x32xf32> to vector<1x32xf32>
    %485 = tpu.concatenate %477, %478, %479, %480, %481, %482, %483, %484 in 0 : vector<1x32xf32>, vector<1x32xf32>, vector<1x32xf32>, vector<1x32xf32>, vector<1x32xf32>, vector<1x32xf32>, vector<1x32xf32>, vector<1x32xf32> -> vector<8x32xf32>
    %cst_67 = arith.constant dense<0.000000e+00> : vector<8x32xf32>
    %486 = tpu.matmul %26, %485, %cst_67 {dimension_numbers = #tpu.dot_dimension_numbers<[1], [0], [0], [1], [0, 0, 1, 1], [], []>} : vector<8x8xf32>, vector<8x32xf32>, vector<8x32xf32> -> vector<8x32xf32>
    %487 = tpu.concatenate %476, %486 in 1 : vector<8x32xf32>, vector<8x32xf32> -> vector<8x64xf32>
    %488 = vector.broadcast %30 : vector<8x1xf32> to vector<8x64xf32>
    %489 = arith.mulf %487, %488 : vector<8x64xf32>
    %490 = vector.extract_strided_slice %199 {offsets = [3, 0], sizes = [1, 32], strides = [1, 1]} : vector<8x32xf32> to vector<1x32xf32>
    %491 = vector.extract_strided_slice %231 {offsets = [3, 0], sizes = [1, 32], strides = [1, 1]} : vector<8x32xf32> to vector<1x32xf32>
    %492 = vector.extract_strided_slice %263 {offsets = [3, 0], sizes = [1, 32], strides = [1, 1]} : vector<8x32xf32> to vector<1x32xf32>
    %493 = vector.extract_strided_slice %295 {offsets = [3, 0], sizes = [1, 32], strides = [1, 1]} : vector<8x32xf32> to vector<1x32xf32>
    %494 = vector.extract_strided_slice %327 {offsets = [3, 0], sizes = [1, 32], strides = [1, 1]} : vector<8x32xf32> to vector<1x32xf32>
    %495 = vector.extract_strided_slice %359 {offsets = [3, 0], sizes = [1, 32], strides = [1, 1]} : vector<8x32xf32> to vector<1x32xf32>
    %496 = vector.extract_strided_slice %391 {offsets = [3, 0], sizes = [1, 32], strides = [1, 1]} : vector<8x32xf32> to vector<1x32xf32>
    %497 = vector.extract_strided_slice %423 {offsets = [3, 0], sizes = [1, 32], strides = [1, 1]} : vector<8x32xf32> to vector<1x32xf32>
    %498 = tpu.concatenate %490, %491, %492, %493, %494, %495, %496, %497 in 0 : vector<1x32xf32>, vector<1x32xf32>, vector<1x32xf32>, vector<1x32xf32>, vector<1x32xf32>, vector<1x32xf32>, vector<1x32xf32>, vector<1x32xf32> -> vector<8x32xf32>
    %499 = vector.extract_strided_slice %199 {offsets = [7, 0], sizes = [1, 32], strides = [1, 1]} : vector<8x32xf32> to vector<1x32xf32>
    %500 = vector.extract_strided_slice %231 {offsets = [7, 0], sizes = [1, 32], strides = [1, 1]} : vector<8x32xf32> to vector<1x32xf32>
    %501 = vector.extract_strided_slice %263 {offsets = [7, 0], sizes = [1, 32], strides = [1, 1]} : vector<8x32xf32> to vector<1x32xf32>
    %502 = vector.extract_strided_slice %295 {offsets = [7, 0], sizes = [1, 32], strides = [1, 1]} : vector<8x32xf32> to vector<1x32xf32>
    %503 = vector.extract_strided_slice %327 {offsets = [7, 0], sizes = [1, 32], strides = [1, 1]} : vector<8x32xf32> to vector<1x32xf32>
    %504 = vector.extract_strided_slice %359 {offsets = [7, 0], sizes = [1, 32], strides = [1, 1]} : vector<8x32xf32> to vector<1x32xf32>
    %505 = vector.extract_strided_slice %391 {offsets = [7, 0], sizes = [1, 32], strides = [1, 1]} : vector<8x32xf32> to vector<1x32xf32>
    %506 = vector.extract_strided_slice %423 {offsets = [7, 0], sizes = [1, 32], strides = [1, 1]} : vector<8x32xf32> to vector<1x32xf32>
    %507 = tpu.concatenate %499, %500, %501, %502, %503, %504, %505, %506 in 0 : vector<1x32xf32>, vector<1x32xf32>, vector<1x32xf32>, vector<1x32xf32>, vector<1x32xf32>, vector<1x32xf32>, vector<1x32xf32>, vector<1x32xf32> -> vector<8x32xf32>
    %cst_68 = arith.constant dense<0.000000e+00> : vector<8x32xf32>
    %508 = tpu.matmul %54, %507, %cst_68 {dimension_numbers = #tpu.dot_dimension_numbers<[1], [0], [0], [1], [0, 0, 1, 1], [], []>} : vector<8x8xf32>, vector<8x32xf32>, vector<8x32xf32> -> vector<8x32xf32>
    %509 = tpu.concatenate %498, %508 in 1 : vector<8x32xf32>, vector<8x32xf32> -> vector<8x64xf32>
    %510 = vector.broadcast %58 : vector<8x1xf32> to vector<8x64xf32>
    %511 = arith.mulf %509, %510 : vector<8x64xf32>
    %c0_69 = arith.constant 0 : index
    %c0_70 = arith.constant 0 : index
    %512 = vector.load %arg5[%c0_69, %c0_70] : memref<2x8xf32, #tpu.memory_space<vmem>>, vector<1x8xf32>
    %c0_71 = arith.constant 0 : index
    %c0_72 = arith.constant 0 : index
    %513 = vector.load %arg6[%c0_71, %c0_72] : memref<2x8xf32, #tpu.memory_space<vmem>>, vector<1x8xf32>
    %514 = tpu.transpose %489, [1, 0] : vector<8x64xf32> -> vector<64x8xf32>
    %cst_73 = arith.constant dense<0.000000e+00> : vector<8x8xf32>
    %515 = tpu.matmul %445, %514, %cst_73 {dimension_numbers = #tpu.dot_dimension_numbers<[1], [0], [0], [1], [0, 0, 1, 1], [], []>} : vector<8x64xf32>, vector<64x8xf32>, vector<8x8xf32> -> vector<8x8xf32>
    %516 = vector.broadcast %513 : vector<1x8xf32> to vector<8x8xf32>
    %517 = arith.addf %515, %516 : vector<8x8xf32>
    %cst_74 = arith.constant dense<0xFF800000> : vector<8xf32>
    %518 = vector.multi_reduction <maximumf>, %517, %cst_74 [1] : vector<8x8xf32> to vector<8xf32>
    %519 = vector.shape_cast %518 : vector<8xf32> to vector<8x1xf32>
    %520 = vector.broadcast %519 : vector<8x1xf32> to vector<8x8xf32>
    %521 = arith.subf %517, %520 : vector<8x8xf32>
    %522 = math.exp %521 : vector<8x8xf32>
    %cst_75 = arith.constant dense<0.000000e+00> : vector<8xf32>
    %523 = vector.multi_reduction <add>, %522, %cst_75 [1] : vector<8x8xf32> to vector<8xf32>
    %524 = vector.shape_cast %523 : vector<8xf32> to vector<8x1xf32>
    %525 = vector.broadcast %524 : vector<8x1xf32> to vector<8x8xf32>
    %526 = arith.divf %522, %525 : vector<8x8xf32>
    %cst_76 = arith.constant dense<0.000000e+00> : vector<8x64xf32>
    %527 = tpu.matmul %526, %489, %cst_76 {dimension_numbers = #tpu.dot_dimension_numbers<[1], [0], [0], [1], [0, 0, 1, 1], [], []>} : vector<8x8xf32>, vector<8x64xf32>, vector<8x64xf32> -> vector<8x64xf32>
    %528 = tpu.transpose %515, [1, 0] : vector<8x8xf32> -> vector<8x8xf32>
    %529 = vector.broadcast %512 : vector<1x8xf32> to vector<8x8xf32>
    %530 = arith.addf %528, %529 : vector<8x8xf32>
    %cst_77 = arith.constant dense<0xFF800000> : vector<8xf32>
    %531 = vector.multi_reduction <maximumf>, %530, %cst_77 [1] : vector<8x8xf32> to vector<8xf32>
    %532 = vector.shape_cast %531 : vector<8xf32> to vector<8x1xf32>
    %533 = vector.broadcast %532 : vector<8x1xf32> to vector<8x8xf32>
    %534 = arith.subf %530, %533 : vector<8x8xf32>
    %535 = math.exp %534 : vector<8x8xf32>
    %cst_78 = arith.constant dense<0.000000e+00> : vector<8xf32>
    %536 = vector.multi_reduction <add>, %535, %cst_78 [1] : vector<8x8xf32> to vector<8xf32>
    %537 = vector.shape_cast %536 : vector<8xf32> to vector<8x1xf32>
    %538 = vector.broadcast %537 : vector<8x1xf32> to vector<8x8xf32>
    %539 = arith.divf %535, %538 : vector<8x8xf32>
    %cst_79 = arith.constant dense<0.000000e+00> : vector<8x64xf32>
    %540 = tpu.matmul %539, %445, %cst_79 {dimension_numbers = #tpu.dot_dimension_numbers<[1], [0], [0], [1], [0, 0, 1, 1], [], []>} : vector<8x8xf32>, vector<8x64xf32>, vector<8x64xf32> -> vector<8x64xf32>
    %541 = arith.subf %445, %527 : vector<8x64xf32>
    %542 = arith.mulf %445, %527 : vector<8x64xf32>
    %543 = tpu.concatenate %445, %527, %541, %542 in 1 : vector<8x64xf32>, vector<8x64xf32>, vector<8x64xf32>, vector<8x64xf32> -> vector<8x256xf32>
    %544 = arith.subf %489, %540 : vector<8x64xf32>
    %545 = arith.mulf %489, %540 : vector<8x64xf32>
    %546 = tpu.concatenate %489, %540, %544, %545 in 1 : vector<8x64xf32>, vector<8x64xf32>, vector<8x64xf32>, vector<8x64xf32> -> vector<8x256xf32>
    %cst_80 = arith.constant dense<0.000000e+00> : vector<8x256xf32>
    %547 = tpu.matmul %12, %543, %cst_80 {dimension_numbers = #tpu.dot_dimension_numbers<[1], [0], [0], [1], [0, 0, 1, 1], [], []>} : vector<8x8xf32>, vector<8x256xf32>, vector<8x256xf32> -> vector<8x256xf32>
    %cst_81 = arith.constant dense<0.000000e+00> : vector<8x256xf32>
    %548 = tpu.matmul %26, %546, %cst_81 {dimension_numbers = #tpu.dot_dimension_numbers<[1], [0], [0], [1], [0, 0, 1, 1], [], []>} : vector<8x8xf32>, vector<8x256xf32>, vector<8x256xf32> -> vector<8x256xf32>
    %c1_82 = arith.constant 1 : index
    %c0_83 = arith.constant 0 : index
    %549 = vector.load %arg5[%c1_82, %c0_83] : memref<2x8xf32, #tpu.memory_space<vmem>>, vector<1x8xf32>
    %c1_84 = arith.constant 1 : index
    %c0_85 = arith.constant 0 : index
    %550 = vector.load %arg6[%c1_84, %c0_85] : memref<2x8xf32, #tpu.memory_space<vmem>>, vector<1x8xf32>
    %551 = tpu.transpose %511, [1, 0] : vector<8x64xf32> -> vector<64x8xf32>
    %cst_86 = arith.constant dense<0.000000e+00> : vector<8x8xf32>
    %552 = tpu.matmul %467, %551, %cst_86 {dimension_numbers = #tpu.dot_dimension_numbers<[1], [0], [0], [1], [0, 0, 1, 1], [], []>} : vector<8x64xf32>, vector<64x8xf32>, vector<8x8xf32> -> vector<8x8xf32>
    %553 = vector.broadcast %550 : vector<1x8xf32> to vector<8x8xf32>
    %554 = arith.addf %552, %553 : vector<8x8xf32>
    %cst_87 = arith.constant dense<0xFF800000> : vector<8xf32>
    %555 = vector.multi_reduction <maximumf>, %554, %cst_87 [1] : vector<8x8xf32> to vector<8xf32>
    %556 = vector.shape_cast %555 : vector<8xf32> to vector<8x1xf32>
    %557 = vector.broadcast %556 : vector<8x1xf32> to vector<8x8xf32>
    %558 = arith.subf %554, %557 : vector<8x8xf32>
    %559 = math.exp %558 : vector<8x8xf32>
    %cst_88 = arith.constant dense<0.000000e+00> : vector<8xf32>
    %560 = vector.multi_reduction <add>, %559, %cst_88 [1] : vector<8x8xf32> to vector<8xf32>
    %561 = vector.shape_cast %560 : vector<8xf32> to vector<8x1xf32>
    %562 = vector.broadcast %561 : vector<8x1xf32> to vector<8x8xf32>
    %563 = arith.divf %559, %562 : vector<8x8xf32>
    %cst_89 = arith.constant dense<0.000000e+00> : vector<8x64xf32>
    %564 = tpu.matmul %563, %511, %cst_89 {dimension_numbers = #tpu.dot_dimension_numbers<[1], [0], [0], [1], [0, 0, 1, 1], [], []>} : vector<8x8xf32>, vector<8x64xf32>, vector<8x64xf32> -> vector<8x64xf32>
    %565 = tpu.transpose %552, [1, 0] : vector<8x8xf32> -> vector<8x8xf32>
    %566 = vector.broadcast %549 : vector<1x8xf32> to vector<8x8xf32>
    %567 = arith.addf %565, %566 : vector<8x8xf32>
    %cst_90 = arith.constant dense<0xFF800000> : vector<8xf32>
    %568 = vector.multi_reduction <maximumf>, %567, %cst_90 [1] : vector<8x8xf32> to vector<8xf32>
    %569 = vector.shape_cast %568 : vector<8xf32> to vector<8x1xf32>
    %570 = vector.broadcast %569 : vector<8x1xf32> to vector<8x8xf32>
    %571 = arith.subf %567, %570 : vector<8x8xf32>
    %572 = math.exp %571 : vector<8x8xf32>
    %cst_91 = arith.constant dense<0.000000e+00> : vector<8xf32>
    %573 = vector.multi_reduction <add>, %572, %cst_91 [1] : vector<8x8xf32> to vector<8xf32>
    %574 = vector.shape_cast %573 : vector<8xf32> to vector<8x1xf32>
    %575 = vector.broadcast %574 : vector<8x1xf32> to vector<8x8xf32>
    %576 = arith.divf %572, %575 : vector<8x8xf32>
    %cst_92 = arith.constant dense<0.000000e+00> : vector<8x64xf32>
    %577 = tpu.matmul %576, %467, %cst_92 {dimension_numbers = #tpu.dot_dimension_numbers<[1], [0], [0], [1], [0, 0, 1, 1], [], []>} : vector<8x8xf32>, vector<8x64xf32>, vector<8x64xf32> -> vector<8x64xf32>
    %578 = arith.subf %467, %564 : vector<8x64xf32>
    %579 = arith.mulf %467, %564 : vector<8x64xf32>
    %580 = tpu.concatenate %467, %564, %578, %579 in 1 : vector<8x64xf32>, vector<8x64xf32>, vector<8x64xf32>, vector<8x64xf32> -> vector<8x256xf32>
    %581 = arith.subf %511, %577 : vector<8x64xf32>
    %582 = arith.mulf %511, %577 : vector<8x64xf32>
    %583 = tpu.concatenate %511, %577, %581, %582 in 1 : vector<8x64xf32>, vector<8x64xf32>, vector<8x64xf32>, vector<8x64xf32> -> vector<8x256xf32>
    %cst_93 = arith.constant dense<0.000000e+00> : vector<8x256xf32>
    %584 = tpu.matmul %40, %580, %cst_93 {dimension_numbers = #tpu.dot_dimension_numbers<[1], [0], [0], [1], [0, 0, 1, 1], [], []>} : vector<8x8xf32>, vector<8x256xf32>, vector<8x256xf32> -> vector<8x256xf32>
    %cst_94 = arith.constant dense<0.000000e+00> : vector<8x256xf32>
    %585 = tpu.matmul %54, %583, %cst_94 {dimension_numbers = #tpu.dot_dimension_numbers<[1], [0], [0], [1], [0, 0, 1, 1], [], []>} : vector<8x8xf32>, vector<8x256xf32>, vector<8x256xf32> -> vector<8x256xf32>
    %586 = tpu.concatenate %543, %580, %546, %583 in 0 : vector<8x256xf32>, vector<8x256xf32>, vector<8x256xf32>, vector<8x256xf32> -> vector<32x256xf32>
    %587 = tpu.concatenate %547, %584, %548, %585 in 0 : vector<8x256xf32>, vector<8x256xf32>, vector<8x256xf32>, vector<8x256xf32> -> vector<32x256xf32>
    %c0_95 = arith.constant 0 : index
    %c0_96 = arith.constant 0 : index
    %588 = vector.load %arg11[%c0_95, %c0_96] : memref<256x128xf32, #tpu.memory_space<vmem>>, vector<256x128xf32>
    %cst_97 = arith.constant dense<0.000000e+00> : vector<32x128xf32>
    %589 = tpu.matmul %586, %588, %cst_97 {dimension_numbers = #tpu.dot_dimension_numbers<[1], [0], [0], [1], [0, 0, 1, 1], [], []>} : vector<32x256xf32>, vector<256x128xf32>, vector<32x128xf32> -> vector<32x128xf32>
    %c0_98 = arith.constant 0 : index
    %c0_99 = arith.constant 0 : index
    %590 = vector.load %arg12[%c0_98, %c0_99] : memref<256x128xf32, #tpu.memory_space<vmem>>, vector<256x128xf32>
    %cst_100 = arith.constant dense<0.000000e+00> : vector<32x128xf32>
    %591 = tpu.matmul %587, %590, %cst_100 {dimension_numbers = #tpu.dot_dimension_numbers<[1], [0], [0], [1], [0, 0, 1, 1], [], []>} : vector<32x256xf32>, vector<256x128xf32>, vector<32x128xf32> -> vector<32x128xf32>
    %c0_101 = arith.constant 0 : index
    %c0_102 = arith.constant 0 : index
    %592 = vector.load %arg14[%c0_101, %c0_102] : memref<8x128xf32, #tpu.memory_space<vmem>>, vector<8x128xf32>
    %c0_103 = arith.constant 0 : index
    %c0_104 = arith.constant 0 : index
    %593 = vector.load %arg13[%c0_103, %c0_104] : memref<64x128xf32, #tpu.memory_space<vmem>>, vector<64x128xf32>
    %594 = vector.extract_strided_slice %589 {offsets = [0, 0], sizes = [1, 128], strides = [1, 1]} : vector<32x128xf32> to vector<1x128xf32>
    %595 = vector.extract_strided_slice %589 {offsets = [8, 0], sizes = [1, 128], strides = [1, 1]} : vector<32x128xf32> to vector<1x128xf32>
    %596 = vector.extract_strided_slice %589 {offsets = [16, 0], sizes = [1, 128], strides = [1, 1]} : vector<32x128xf32> to vector<1x128xf32>
    %597 = vector.extract_strided_slice %589 {offsets = [24, 0], sizes = [1, 128], strides = [1, 1]} : vector<32x128xf32> to vector<1x128xf32>
    %598 = vector.extract_strided_slice %591 {offsets = [0, 0], sizes = [1, 128], strides = [1, 1]} : vector<32x128xf32> to vector<1x128xf32>
    %599 = vector.extract_strided_slice %591 {offsets = [8, 0], sizes = [1, 128], strides = [1, 1]} : vector<32x128xf32> to vector<1x128xf32>
    %600 = vector.extract_strided_slice %591 {offsets = [16, 0], sizes = [1, 128], strides = [1, 1]} : vector<32x128xf32> to vector<1x128xf32>
    %601 = vector.extract_strided_slice %591 {offsets = [24, 0], sizes = [1, 128], strides = [1, 1]} : vector<32x128xf32> to vector<1x128xf32>
    %602 = tpu.concatenate %594, %595, %596, %597, %598, %599, %600, %601 in 0 : vector<1x128xf32>, vector<1x128xf32>, vector<1x128xf32>, vector<1x128xf32>, vector<1x128xf32>, vector<1x128xf32>, vector<1x128xf32>, vector<1x128xf32> -> vector<8x128xf32>
    %603 = arith.addf %602, %592 : vector<8x128xf32>
    %604 = vector.extract_strided_slice %589 {offsets = [1, 0], sizes = [1, 128], strides = [1, 1]} : vector<32x128xf32> to vector<1x128xf32>
    %605 = vector.extract_strided_slice %589 {offsets = [9, 0], sizes = [1, 128], strides = [1, 1]} : vector<32x128xf32> to vector<1x128xf32>
    %606 = vector.extract_strided_slice %589 {offsets = [17, 0], sizes = [1, 128], strides = [1, 1]} : vector<32x128xf32> to vector<1x128xf32>
    %607 = vector.extract_strided_slice %589 {offsets = [25, 0], sizes = [1, 128], strides = [1, 1]} : vector<32x128xf32> to vector<1x128xf32>
    %608 = vector.extract_strided_slice %591 {offsets = [1, 0], sizes = [1, 128], strides = [1, 1]} : vector<32x128xf32> to vector<1x128xf32>
    %609 = vector.extract_strided_slice %591 {offsets = [9, 0], sizes = [1, 128], strides = [1, 1]} : vector<32x128xf32> to vector<1x128xf32>
    %610 = vector.extract_strided_slice %591 {offsets = [17, 0], sizes = [1, 128], strides = [1, 1]} : vector<32x128xf32> to vector<1x128xf32>
    %611 = vector.extract_strided_slice %591 {offsets = [25, 0], sizes = [1, 128], strides = [1, 1]} : vector<32x128xf32> to vector<1x128xf32>
    %612 = tpu.concatenate %604, %605, %606, %607, %608, %609, %610, %611 in 0 : vector<1x128xf32>, vector<1x128xf32>, vector<1x128xf32>, vector<1x128xf32>, vector<1x128xf32>, vector<1x128xf32>, vector<1x128xf32>, vector<1x128xf32> -> vector<8x128xf32>
    %613 = arith.addf %612, %592 : vector<8x128xf32>
    %614 = vector.extract_strided_slice %589 {offsets = [2, 0], sizes = [1, 128], strides = [1, 1]} : vector<32x128xf32> to vector<1x128xf32>
    %615 = vector.extract_strided_slice %589 {offsets = [10, 0], sizes = [1, 128], strides = [1, 1]} : vector<32x128xf32> to vector<1x128xf32>
    %616 = vector.extract_strided_slice %589 {offsets = [18, 0], sizes = [1, 128], strides = [1, 1]} : vector<32x128xf32> to vector<1x128xf32>
    %617 = vector.extract_strided_slice %589 {offsets = [26, 0], sizes = [1, 128], strides = [1, 1]} : vector<32x128xf32> to vector<1x128xf32>
    %618 = vector.extract_strided_slice %591 {offsets = [2, 0], sizes = [1, 128], strides = [1, 1]} : vector<32x128xf32> to vector<1x128xf32>
    %619 = vector.extract_strided_slice %591 {offsets = [10, 0], sizes = [1, 128], strides = [1, 1]} : vector<32x128xf32> to vector<1x128xf32>
    %620 = vector.extract_strided_slice %591 {offsets = [18, 0], sizes = [1, 128], strides = [1, 1]} : vector<32x128xf32> to vector<1x128xf32>
    %621 = vector.extract_strided_slice %591 {offsets = [26, 0], sizes = [1, 128], strides = [1, 1]} : vector<32x128xf32> to vector<1x128xf32>
    %622 = tpu.concatenate %614, %615, %616, %617, %618, %619, %620, %621 in 0 : vector<1x128xf32>, vector<1x128xf32>, vector<1x128xf32>, vector<1x128xf32>, vector<1x128xf32>, vector<1x128xf32>, vector<1x128xf32>, vector<1x128xf32> -> vector<8x128xf32>
    %623 = arith.addf %622, %592 : vector<8x128xf32>
    %624 = vector.extract_strided_slice %589 {offsets = [3, 0], sizes = [1, 128], strides = [1, 1]} : vector<32x128xf32> to vector<1x128xf32>
    %625 = vector.extract_strided_slice %589 {offsets = [11, 0], sizes = [1, 128], strides = [1, 1]} : vector<32x128xf32> to vector<1x128xf32>
    %626 = vector.extract_strided_slice %589 {offsets = [19, 0], sizes = [1, 128], strides = [1, 1]} : vector<32x128xf32> to vector<1x128xf32>
    %627 = vector.extract_strided_slice %589 {offsets = [27, 0], sizes = [1, 128], strides = [1, 1]} : vector<32x128xf32> to vector<1x128xf32>
    %628 = vector.extract_strided_slice %591 {offsets = [3, 0], sizes = [1, 128], strides = [1, 1]} : vector<32x128xf32> to vector<1x128xf32>
    %629 = vector.extract_strided_slice %591 {offsets = [11, 0], sizes = [1, 128], strides = [1, 1]} : vector<32x128xf32> to vector<1x128xf32>
    %630 = vector.extract_strided_slice %591 {offsets = [19, 0], sizes = [1, 128], strides = [1, 1]} : vector<32x128xf32> to vector<1x128xf32>
    %631 = vector.extract_strided_slice %591 {offsets = [27, 0], sizes = [1, 128], strides = [1, 1]} : vector<32x128xf32> to vector<1x128xf32>
    %632 = tpu.concatenate %624, %625, %626, %627, %628, %629, %630, %631 in 0 : vector<1x128xf32>, vector<1x128xf32>, vector<1x128xf32>, vector<1x128xf32>, vector<1x128xf32>, vector<1x128xf32>, vector<1x128xf32>, vector<1x128xf32> -> vector<8x128xf32>
    %633 = arith.addf %632, %592 : vector<8x128xf32>
    %634 = vector.extract_strided_slice %589 {offsets = [4, 0], sizes = [1, 128], strides = [1, 1]} : vector<32x128xf32> to vector<1x128xf32>
    %635 = vector.extract_strided_slice %589 {offsets = [12, 0], sizes = [1, 128], strides = [1, 1]} : vector<32x128xf32> to vector<1x128xf32>
    %636 = vector.extract_strided_slice %589 {offsets = [20, 0], sizes = [1, 128], strides = [1, 1]} : vector<32x128xf32> to vector<1x128xf32>
    %637 = vector.extract_strided_slice %589 {offsets = [28, 0], sizes = [1, 128], strides = [1, 1]} : vector<32x128xf32> to vector<1x128xf32>
    %638 = vector.extract_strided_slice %591 {offsets = [4, 0], sizes = [1, 128], strides = [1, 1]} : vector<32x128xf32> to vector<1x128xf32>
    %639 = vector.extract_strided_slice %591 {offsets = [12, 0], sizes = [1, 128], strides = [1, 1]} : vector<32x128xf32> to vector<1x128xf32>
    %640 = vector.extract_strided_slice %591 {offsets = [20, 0], sizes = [1, 128], strides = [1, 1]} : vector<32x128xf32> to vector<1x128xf32>
    %641 = vector.extract_strided_slice %591 {offsets = [28, 0], sizes = [1, 128], strides = [1, 1]} : vector<32x128xf32> to vector<1x128xf32>
    %642 = tpu.concatenate %634, %635, %636, %637, %638, %639, %640, %641 in 0 : vector<1x128xf32>, vector<1x128xf32>, vector<1x128xf32>, vector<1x128xf32>, vector<1x128xf32>, vector<1x128xf32>, vector<1x128xf32>, vector<1x128xf32> -> vector<8x128xf32>
    %643 = arith.addf %642, %592 : vector<8x128xf32>
    %644 = vector.extract_strided_slice %589 {offsets = [5, 0], sizes = [1, 128], strides = [1, 1]} : vector<32x128xf32> to vector<1x128xf32>
    %645 = vector.extract_strided_slice %589 {offsets = [13, 0], sizes = [1, 128], strides = [1, 1]} : vector<32x128xf32> to vector<1x128xf32>
    %646 = vector.extract_strided_slice %589 {offsets = [21, 0], sizes = [1, 128], strides = [1, 1]} : vector<32x128xf32> to vector<1x128xf32>
    %647 = vector.extract_strided_slice %589 {offsets = [29, 0], sizes = [1, 128], strides = [1, 1]} : vector<32x128xf32> to vector<1x128xf32>
    %648 = vector.extract_strided_slice %591 {offsets = [5, 0], sizes = [1, 128], strides = [1, 1]} : vector<32x128xf32> to vector<1x128xf32>
    %649 = vector.extract_strided_slice %591 {offsets = [13, 0], sizes = [1, 128], strides = [1, 1]} : vector<32x128xf32> to vector<1x128xf32>
    %650 = vector.extract_strided_slice %591 {offsets = [21, 0], sizes = [1, 128], strides = [1, 1]} : vector<32x128xf32> to vector<1x128xf32>
    %651 = vector.extract_strided_slice %591 {offsets = [29, 0], sizes = [1, 128], strides = [1, 1]} : vector<32x128xf32> to vector<1x128xf32>
    %652 = tpu.concatenate %644, %645, %646, %647, %648, %649, %650, %651 in 0 : vector<1x128xf32>, vector<1x128xf32>, vector<1x128xf32>, vector<1x128xf32>, vector<1x128xf32>, vector<1x128xf32>, vector<1x128xf32>, vector<1x128xf32> -> vector<8x128xf32>
    %653 = arith.addf %652, %592 : vector<8x128xf32>
    %654 = vector.extract_strided_slice %589 {offsets = [6, 0], sizes = [1, 128], strides = [1, 1]} : vector<32x128xf32> to vector<1x128xf32>
    %655 = vector.extract_strided_slice %589 {offsets = [14, 0], sizes = [1, 128], strides = [1, 1]} : vector<32x128xf32> to vector<1x128xf32>
    %656 = vector.extract_strided_slice %589 {offsets = [22, 0], sizes = [1, 128], strides = [1, 1]} : vector<32x128xf32> to vector<1x128xf32>
    %657 = vector.extract_strided_slice %589 {offsets = [30, 0], sizes = [1, 128], strides = [1, 1]} : vector<32x128xf32> to vector<1x128xf32>
    %658 = vector.extract_strided_slice %591 {offsets = [6, 0], sizes = [1, 128], strides = [1, 1]} : vector<32x128xf32> to vector<1x128xf32>
    %659 = vector.extract_strided_slice %591 {offsets = [14, 0], sizes = [1, 128], strides = [1, 1]} : vector<32x128xf32> to vector<1x128xf32>
    %660 = vector.extract_strided_slice %591 {offsets = [22, 0], sizes = [1, 128], strides = [1, 1]} : vector<32x128xf32> to vector<1x128xf32>
    %661 = vector.extract_strided_slice %591 {offsets = [30, 0], sizes = [1, 128], strides = [1, 1]} : vector<32x128xf32> to vector<1x128xf32>
    %662 = tpu.concatenate %654, %655, %656, %657, %658, %659, %660, %661 in 0 : vector<1x128xf32>, vector<1x128xf32>, vector<1x128xf32>, vector<1x128xf32>, vector<1x128xf32>, vector<1x128xf32>, vector<1x128xf32>, vector<1x128xf32> -> vector<8x128xf32>
    %663 = arith.addf %662, %592 : vector<8x128xf32>
    %664 = vector.extract_strided_slice %589 {offsets = [7, 0], sizes = [1, 128], strides = [1, 1]} : vector<32x128xf32> to vector<1x128xf32>
    %665 = vector.extract_strided_slice %589 {offsets = [15, 0], sizes = [1, 128], strides = [1, 1]} : vector<32x128xf32> to vector<1x128xf32>
    %666 = vector.extract_strided_slice %589 {offsets = [23, 0], sizes = [1, 128], strides = [1, 1]} : vector<32x128xf32> to vector<1x128xf32>
    %667 = vector.extract_strided_slice %589 {offsets = [31, 0], sizes = [1, 128], strides = [1, 1]} : vector<32x128xf32> to vector<1x128xf32>
    %668 = vector.extract_strided_slice %591 {offsets = [7, 0], sizes = [1, 128], strides = [1, 1]} : vector<32x128xf32> to vector<1x128xf32>
    %669 = vector.extract_strided_slice %591 {offsets = [15, 0], sizes = [1, 128], strides = [1, 1]} : vector<32x128xf32> to vector<1x128xf32>
    %670 = vector.extract_strided_slice %591 {offsets = [23, 0], sizes = [1, 128], strides = [1, 1]} : vector<32x128xf32> to vector<1x128xf32>
    %671 = vector.extract_strided_slice %591 {offsets = [31, 0], sizes = [1, 128], strides = [1, 1]} : vector<32x128xf32> to vector<1x128xf32>
    %672 = tpu.concatenate %664, %665, %666, %667, %668, %669, %670, %671 in 0 : vector<1x128xf32>, vector<1x128xf32>, vector<1x128xf32>, vector<1x128xf32>, vector<1x128xf32>, vector<1x128xf32>, vector<1x128xf32>, vector<1x128xf32> -> vector<8x128xf32>
    %673 = arith.addf %672, %592 : vector<8x128xf32>
    %cst_105 = arith.constant 0.000000e+00 : f32
    %674 = vector.broadcast %cst_105 : f32 to vector<8x32xf32>
    %cst_106 = arith.constant 0.000000e+00 : f32
    %675 = vector.broadcast %cst_106 : f32 to vector<8x32xf32>
    %676 = vector.broadcast %63 : vector<8x1xf32> to vector<8x32xf32>
    %677 = arith.mulf %674, %676 : vector<8x32xf32>
    %678 = vector.broadcast %65 : vector<8x1xf32> to vector<8x32xf32>
    %679 = arith.mulf %674, %678 : vector<8x32xf32>
    %680 = tpu.concatenate %677, %679 in 1 : vector<8x32xf32>, vector<8x32xf32> -> vector<8x64xf32>
    %cst_107 = arith.constant dense<0.000000e+00> : vector<8x128xf32>
    %681 = tpu.matmul %680, %593, %cst_107 {dimension_numbers = #tpu.dot_dimension_numbers<[1], [0], [0], [1], [0, 0, 1, 1], [], []>} : vector<8x64xf32>, vector<64x128xf32>, vector<8x128xf32> -> vector<8x128xf32>
    %682 = arith.addf %603, %681 : vector<8x128xf32>
    %683 = vector.extract_strided_slice %682 {offsets = [0, 0], sizes = [8, 32], strides = [1, 1]} : vector<8x128xf32> to vector<8x32xf32>
    %684 = arith.negf %683 : vector<8x32xf32>
    %685 = math.exp %684 : vector<8x32xf32>
    %cst_108 = arith.constant 1.000000e+00 : f32
    %686 = vector.broadcast %cst_108 : f32 to vector<8x32xf32>
    %687 = arith.addf %686, %685 : vector<8x32xf32>
    %688 = arith.divf %686, %687 : vector<8x32xf32>
    %689 = vector.extract_strided_slice %682 {offsets = [0, 32], sizes = [8, 32], strides = [1, 1]} : vector<8x128xf32> to vector<8x32xf32>
    %690 = arith.negf %689 : vector<8x32xf32>
    %691 = math.exp %690 : vector<8x32xf32>
    %cst_109 = arith.constant 1.000000e+00 : f32
    %692 = vector.broadcast %cst_109 : f32 to vector<8x32xf32>
    %693 = arith.addf %692, %691 : vector<8x32xf32>
    %694 = arith.divf %692, %693 : vector<8x32xf32>
    %695 = vector.extract_strided_slice %682 {offsets = [0, 64], sizes = [8, 32], strides = [1, 1]} : vector<8x128xf32> to vector<8x32xf32>
    %696 = math.tanh %695 : vector<8x32xf32>
    %697 = vector.extract_strided_slice %682 {offsets = [0, 96], sizes = [8, 32], strides = [1, 1]} : vector<8x128xf32> to vector<8x32xf32>
    %698 = arith.negf %697 : vector<8x32xf32>
    %699 = math.exp %698 : vector<8x32xf32>
    %cst_110 = arith.constant 1.000000e+00 : f32
    %700 = vector.broadcast %cst_110 : f32 to vector<8x32xf32>
    %701 = arith.addf %700, %699 : vector<8x32xf32>
    %702 = arith.divf %700, %701 : vector<8x32xf32>
    %703 = arith.mulf %694, %675 : vector<8x32xf32>
    %704 = arith.mulf %688, %696 : vector<8x32xf32>
    %705 = arith.addf %703, %704 : vector<8x32xf32>
    %706 = math.tanh %705 : vector<8x32xf32>
    %707 = arith.mulf %702, %706 : vector<8x32xf32>
    %708 = vector.broadcast %63 : vector<8x1xf32> to vector<8x32xf32>
    %709 = arith.mulf %707, %708 : vector<8x32xf32>
    %710 = vector.broadcast %65 : vector<8x1xf32> to vector<8x32xf32>
    %711 = arith.mulf %707, %710 : vector<8x32xf32>
    %712 = tpu.concatenate %709, %711 in 1 : vector<8x32xf32>, vector<8x32xf32> -> vector<8x64xf32>
    %cst_111 = arith.constant dense<0.000000e+00> : vector<8x128xf32>
    %713 = tpu.matmul %712, %593, %cst_111 {dimension_numbers = #tpu.dot_dimension_numbers<[1], [0], [0], [1], [0, 0, 1, 1], [], []>} : vector<8x64xf32>, vector<64x128xf32>, vector<8x128xf32> -> vector<8x128xf32>
    %714 = arith.addf %613, %713 : vector<8x128xf32>
    %715 = vector.extract_strided_slice %714 {offsets = [0, 0], sizes = [8, 32], strides = [1, 1]} : vector<8x128xf32> to vector<8x32xf32>
    %716 = arith.negf %715 : vector<8x32xf32>
    %717 = math.exp %716 : vector<8x32xf32>
    %cst_112 = arith.constant 1.000000e+00 : f32
    %718 = vector.broadcast %cst_112 : f32 to vector<8x32xf32>
    %719 = arith.addf %718, %717 : vector<8x32xf32>
    %720 = arith.divf %718, %719 : vector<8x32xf32>
    %721 = vector.extract_strided_slice %714 {offsets = [0, 32], sizes = [8, 32], strides = [1, 1]} : vector<8x128xf32> to vector<8x32xf32>
    %722 = arith.negf %721 : vector<8x32xf32>
    %723 = math.exp %722 : vector<8x32xf32>
    %cst_113 = arith.constant 1.000000e+00 : f32
    %724 = vector.broadcast %cst_113 : f32 to vector<8x32xf32>
    %725 = arith.addf %724, %723 : vector<8x32xf32>
    %726 = arith.divf %724, %725 : vector<8x32xf32>
    %727 = vector.extract_strided_slice %714 {offsets = [0, 64], sizes = [8, 32], strides = [1, 1]} : vector<8x128xf32> to vector<8x32xf32>
    %728 = math.tanh %727 : vector<8x32xf32>
    %729 = vector.extract_strided_slice %714 {offsets = [0, 96], sizes = [8, 32], strides = [1, 1]} : vector<8x128xf32> to vector<8x32xf32>
    %730 = arith.negf %729 : vector<8x32xf32>
    %731 = math.exp %730 : vector<8x32xf32>
    %cst_114 = arith.constant 1.000000e+00 : f32
    %732 = vector.broadcast %cst_114 : f32 to vector<8x32xf32>
    %733 = arith.addf %732, %731 : vector<8x32xf32>
    %734 = arith.divf %732, %733 : vector<8x32xf32>
    %735 = arith.mulf %726, %705 : vector<8x32xf32>
    %736 = arith.mulf %720, %728 : vector<8x32xf32>
    %737 = arith.addf %735, %736 : vector<8x32xf32>
    %738 = math.tanh %737 : vector<8x32xf32>
    %739 = arith.mulf %734, %738 : vector<8x32xf32>
    %740 = vector.broadcast %63 : vector<8x1xf32> to vector<8x32xf32>
    %741 = arith.mulf %739, %740 : vector<8x32xf32>
    %742 = vector.broadcast %65 : vector<8x1xf32> to vector<8x32xf32>
    %743 = arith.mulf %739, %742 : vector<8x32xf32>
    %744 = tpu.concatenate %741, %743 in 1 : vector<8x32xf32>, vector<8x32xf32> -> vector<8x64xf32>
    %cst_115 = arith.constant dense<0.000000e+00> : vector<8x128xf32>
    %745 = tpu.matmul %744, %593, %cst_115 {dimension_numbers = #tpu.dot_dimension_numbers<[1], [0], [0], [1], [0, 0, 1, 1], [], []>} : vector<8x64xf32>, vector<64x128xf32>, vector<8x128xf32> -> vector<8x128xf32>
    %746 = arith.addf %623, %745 : vector<8x128xf32>
    %747 = vector.extract_strided_slice %746 {offsets = [0, 0], sizes = [8, 32], strides = [1, 1]} : vector<8x128xf32> to vector<8x32xf32>
    %748 = arith.negf %747 : vector<8x32xf32>
    %749 = math.exp %748 : vector<8x32xf32>
    %cst_116 = arith.constant 1.000000e+00 : f32
    %750 = vector.broadcast %cst_116 : f32 to vector<8x32xf32>
    %751 = arith.addf %750, %749 : vector<8x32xf32>
    %752 = arith.divf %750, %751 : vector<8x32xf32>
    %753 = vector.extract_strided_slice %746 {offsets = [0, 32], sizes = [8, 32], strides = [1, 1]} : vector<8x128xf32> to vector<8x32xf32>
    %754 = arith.negf %753 : vector<8x32xf32>
    %755 = math.exp %754 : vector<8x32xf32>
    %cst_117 = arith.constant 1.000000e+00 : f32
    %756 = vector.broadcast %cst_117 : f32 to vector<8x32xf32>
    %757 = arith.addf %756, %755 : vector<8x32xf32>
    %758 = arith.divf %756, %757 : vector<8x32xf32>
    %759 = vector.extract_strided_slice %746 {offsets = [0, 64], sizes = [8, 32], strides = [1, 1]} : vector<8x128xf32> to vector<8x32xf32>
    %760 = math.tanh %759 : vector<8x32xf32>
    %761 = vector.extract_strided_slice %746 {offsets = [0, 96], sizes = [8, 32], strides = [1, 1]} : vector<8x128xf32> to vector<8x32xf32>
    %762 = arith.negf %761 : vector<8x32xf32>
    %763 = math.exp %762 : vector<8x32xf32>
    %cst_118 = arith.constant 1.000000e+00 : f32
    %764 = vector.broadcast %cst_118 : f32 to vector<8x32xf32>
    %765 = arith.addf %764, %763 : vector<8x32xf32>
    %766 = arith.divf %764, %765 : vector<8x32xf32>
    %767 = arith.mulf %758, %737 : vector<8x32xf32>
    %768 = arith.mulf %752, %760 : vector<8x32xf32>
    %769 = arith.addf %767, %768 : vector<8x32xf32>
    %770 = math.tanh %769 : vector<8x32xf32>
    %771 = arith.mulf %766, %770 : vector<8x32xf32>
    %772 = vector.broadcast %63 : vector<8x1xf32> to vector<8x32xf32>
    %773 = arith.mulf %771, %772 : vector<8x32xf32>
    %774 = vector.broadcast %65 : vector<8x1xf32> to vector<8x32xf32>
    %775 = arith.mulf %771, %774 : vector<8x32xf32>
    %776 = tpu.concatenate %773, %775 in 1 : vector<8x32xf32>, vector<8x32xf32> -> vector<8x64xf32>
    %cst_119 = arith.constant dense<0.000000e+00> : vector<8x128xf32>
    %777 = tpu.matmul %776, %593, %cst_119 {dimension_numbers = #tpu.dot_dimension_numbers<[1], [0], [0], [1], [0, 0, 1, 1], [], []>} : vector<8x64xf32>, vector<64x128xf32>, vector<8x128xf32> -> vector<8x128xf32>
    %778 = arith.addf %633, %777 : vector<8x128xf32>
    %779 = vector.extract_strided_slice %778 {offsets = [0, 0], sizes = [8, 32], strides = [1, 1]} : vector<8x128xf32> to vector<8x32xf32>
    %780 = arith.negf %779 : vector<8x32xf32>
    %781 = math.exp %780 : vector<8x32xf32>
    %cst_120 = arith.constant 1.000000e+00 : f32
    %782 = vector.broadcast %cst_120 : f32 to vector<8x32xf32>
    %783 = arith.addf %782, %781 : vector<8x32xf32>
    %784 = arith.divf %782, %783 : vector<8x32xf32>
    %785 = vector.extract_strided_slice %778 {offsets = [0, 32], sizes = [8, 32], strides = [1, 1]} : vector<8x128xf32> to vector<8x32xf32>
    %786 = arith.negf %785 : vector<8x32xf32>
    %787 = math.exp %786 : vector<8x32xf32>
    %cst_121 = arith.constant 1.000000e+00 : f32
    %788 = vector.broadcast %cst_121 : f32 to vector<8x32xf32>
    %789 = arith.addf %788, %787 : vector<8x32xf32>
    %790 = arith.divf %788, %789 : vector<8x32xf32>
    %791 = vector.extract_strided_slice %778 {offsets = [0, 64], sizes = [8, 32], strides = [1, 1]} : vector<8x128xf32> to vector<8x32xf32>
    %792 = math.tanh %791 : vector<8x32xf32>
    %793 = vector.extract_strided_slice %778 {offsets = [0, 96], sizes = [8, 32], strides = [1, 1]} : vector<8x128xf32> to vector<8x32xf32>
    %794 = arith.negf %793 : vector<8x32xf32>
    %795 = math.exp %794 : vector<8x32xf32>
    %cst_122 = arith.constant 1.000000e+00 : f32
    %796 = vector.broadcast %cst_122 : f32 to vector<8x32xf32>
    %797 = arith.addf %796, %795 : vector<8x32xf32>
    %798 = arith.divf %796, %797 : vector<8x32xf32>
    %799 = arith.mulf %790, %769 : vector<8x32xf32>
    %800 = arith.mulf %784, %792 : vector<8x32xf32>
    %801 = arith.addf %799, %800 : vector<8x32xf32>
    %802 = math.tanh %801 : vector<8x32xf32>
    %803 = arith.mulf %798, %802 : vector<8x32xf32>
    %804 = vector.broadcast %63 : vector<8x1xf32> to vector<8x32xf32>
    %805 = arith.mulf %803, %804 : vector<8x32xf32>
    %806 = vector.broadcast %65 : vector<8x1xf32> to vector<8x32xf32>
    %807 = arith.mulf %803, %806 : vector<8x32xf32>
    %808 = tpu.concatenate %805, %807 in 1 : vector<8x32xf32>, vector<8x32xf32> -> vector<8x64xf32>
    %cst_123 = arith.constant dense<0.000000e+00> : vector<8x128xf32>
    %809 = tpu.matmul %808, %593, %cst_123 {dimension_numbers = #tpu.dot_dimension_numbers<[1], [0], [0], [1], [0, 0, 1, 1], [], []>} : vector<8x64xf32>, vector<64x128xf32>, vector<8x128xf32> -> vector<8x128xf32>
    %810 = arith.addf %643, %809 : vector<8x128xf32>
    %811 = vector.extract_strided_slice %810 {offsets = [0, 0], sizes = [8, 32], strides = [1, 1]} : vector<8x128xf32> to vector<8x32xf32>
    %812 = arith.negf %811 : vector<8x32xf32>
    %813 = math.exp %812 : vector<8x32xf32>
    %cst_124 = arith.constant 1.000000e+00 : f32
    %814 = vector.broadcast %cst_124 : f32 to vector<8x32xf32>
    %815 = arith.addf %814, %813 : vector<8x32xf32>
    %816 = arith.divf %814, %815 : vector<8x32xf32>
    %817 = vector.extract_strided_slice %810 {offsets = [0, 32], sizes = [8, 32], strides = [1, 1]} : vector<8x128xf32> to vector<8x32xf32>
    %818 = arith.negf %817 : vector<8x32xf32>
    %819 = math.exp %818 : vector<8x32xf32>
    %cst_125 = arith.constant 1.000000e+00 : f32
    %820 = vector.broadcast %cst_125 : f32 to vector<8x32xf32>
    %821 = arith.addf %820, %819 : vector<8x32xf32>
    %822 = arith.divf %820, %821 : vector<8x32xf32>
    %823 = vector.extract_strided_slice %810 {offsets = [0, 64], sizes = [8, 32], strides = [1, 1]} : vector<8x128xf32> to vector<8x32xf32>
    %824 = math.tanh %823 : vector<8x32xf32>
    %825 = vector.extract_strided_slice %810 {offsets = [0, 96], sizes = [8, 32], strides = [1, 1]} : vector<8x128xf32> to vector<8x32xf32>
    %826 = arith.negf %825 : vector<8x32xf32>
    %827 = math.exp %826 : vector<8x32xf32>
    %cst_126 = arith.constant 1.000000e+00 : f32
    %828 = vector.broadcast %cst_126 : f32 to vector<8x32xf32>
    %829 = arith.addf %828, %827 : vector<8x32xf32>
    %830 = arith.divf %828, %829 : vector<8x32xf32>
    %831 = arith.mulf %822, %801 : vector<8x32xf32>
    %832 = arith.mulf %816, %824 : vector<8x32xf32>
    %833 = arith.addf %831, %832 : vector<8x32xf32>
    %834 = math.tanh %833 : vector<8x32xf32>
    %835 = arith.mulf %830, %834 : vector<8x32xf32>
    %836 = vector.broadcast %63 : vector<8x1xf32> to vector<8x32xf32>
    %837 = arith.mulf %835, %836 : vector<8x32xf32>
    %838 = vector.broadcast %65 : vector<8x1xf32> to vector<8x32xf32>
    %839 = arith.mulf %835, %838 : vector<8x32xf32>
    %840 = tpu.concatenate %837, %839 in 1 : vector<8x32xf32>, vector<8x32xf32> -> vector<8x64xf32>
    %cst_127 = arith.constant dense<0.000000e+00> : vector<8x128xf32>
    %841 = tpu.matmul %840, %593, %cst_127 {dimension_numbers = #tpu.dot_dimension_numbers<[1], [0], [0], [1], [0, 0, 1, 1], [], []>} : vector<8x64xf32>, vector<64x128xf32>, vector<8x128xf32> -> vector<8x128xf32>
    %842 = arith.addf %653, %841 : vector<8x128xf32>
    %843 = vector.extract_strided_slice %842 {offsets = [0, 0], sizes = [8, 32], strides = [1, 1]} : vector<8x128xf32> to vector<8x32xf32>
    %844 = arith.negf %843 : vector<8x32xf32>
    %845 = math.exp %844 : vector<8x32xf32>
    %cst_128 = arith.constant 1.000000e+00 : f32
    %846 = vector.broadcast %cst_128 : f32 to vector<8x32xf32>
    %847 = arith.addf %846, %845 : vector<8x32xf32>
    %848 = arith.divf %846, %847 : vector<8x32xf32>
    %849 = vector.extract_strided_slice %842 {offsets = [0, 32], sizes = [8, 32], strides = [1, 1]} : vector<8x128xf32> to vector<8x32xf32>
    %850 = arith.negf %849 : vector<8x32xf32>
    %851 = math.exp %850 : vector<8x32xf32>
    %cst_129 = arith.constant 1.000000e+00 : f32
    %852 = vector.broadcast %cst_129 : f32 to vector<8x32xf32>
    %853 = arith.addf %852, %851 : vector<8x32xf32>
    %854 = arith.divf %852, %853 : vector<8x32xf32>
    %855 = vector.extract_strided_slice %842 {offsets = [0, 64], sizes = [8, 32], strides = [1, 1]} : vector<8x128xf32> to vector<8x32xf32>
    %856 = math.tanh %855 : vector<8x32xf32>
    %857 = vector.extract_strided_slice %842 {offsets = [0, 96], sizes = [8, 32], strides = [1, 1]} : vector<8x128xf32> to vector<8x32xf32>
    %858 = arith.negf %857 : vector<8x32xf32>
    %859 = math.exp %858 : vector<8x32xf32>
    %cst_130 = arith.constant 1.000000e+00 : f32
    %860 = vector.broadcast %cst_130 : f32 to vector<8x32xf32>
    %861 = arith.addf %860, %859 : vector<8x32xf32>
    %862 = arith.divf %860, %861 : vector<8x32xf32>
    %863 = arith.mulf %854, %833 : vector<8x32xf32>
    %864 = arith.mulf %848, %856 : vector<8x32xf32>
    %865 = arith.addf %863, %864 : vector<8x32xf32>
    %866 = math.tanh %865 : vector<8x32xf32>
    %867 = arith.mulf %862, %866 : vector<8x32xf32>
    %868 = vector.broadcast %63 : vector<8x1xf32> to vector<8x32xf32>
    %869 = arith.mulf %867, %868 : vector<8x32xf32>
    %870 = vector.broadcast %65 : vector<8x1xf32> to vector<8x32xf32>
    %871 = arith.mulf %867, %870 : vector<8x32xf32>
    %872 = tpu.concatenate %869, %871 in 1 : vector<8x32xf32>, vector<8x32xf32> -> vector<8x64xf32>
    %cst_131 = arith.constant dense<0.000000e+00> : vector<8x128xf32>
    %873 = tpu.matmul %872, %593, %cst_131 {dimension_numbers = #tpu.dot_dimension_numbers<[1], [0], [0], [1], [0, 0, 1, 1], [], []>} : vector<8x64xf32>, vector<64x128xf32>, vector<8x128xf32> -> vector<8x128xf32>
    %874 = arith.addf %663, %873 : vector<8x128xf32>
    %875 = vector.extract_strided_slice %874 {offsets = [0, 0], sizes = [8, 32], strides = [1, 1]} : vector<8x128xf32> to vector<8x32xf32>
    %876 = arith.negf %875 : vector<8x32xf32>
    %877 = math.exp %876 : vector<8x32xf32>
    %cst_132 = arith.constant 1.000000e+00 : f32
    %878 = vector.broadcast %cst_132 : f32 to vector<8x32xf32>
    %879 = arith.addf %878, %877 : vector<8x32xf32>
    %880 = arith.divf %878, %879 : vector<8x32xf32>
    %881 = vector.extract_strided_slice %874 {offsets = [0, 32], sizes = [8, 32], strides = [1, 1]} : vector<8x128xf32> to vector<8x32xf32>
    %882 = arith.negf %881 : vector<8x32xf32>
    %883 = math.exp %882 : vector<8x32xf32>
    %cst_133 = arith.constant 1.000000e+00 : f32
    %884 = vector.broadcast %cst_133 : f32 to vector<8x32xf32>
    %885 = arith.addf %884, %883 : vector<8x32xf32>
    %886 = arith.divf %884, %885 : vector<8x32xf32>
    %887 = vector.extract_strided_slice %874 {offsets = [0, 64], sizes = [8, 32], strides = [1, 1]} : vector<8x128xf32> to vector<8x32xf32>
    %888 = math.tanh %887 : vector<8x32xf32>
    %889 = vector.extract_strided_slice %874 {offsets = [0, 96], sizes = [8, 32], strides = [1, 1]} : vector<8x128xf32> to vector<8x32xf32>
    %890 = arith.negf %889 : vector<8x32xf32>
    %891 = math.exp %890 : vector<8x32xf32>
    %cst_134 = arith.constant 1.000000e+00 : f32
    %892 = vector.broadcast %cst_134 : f32 to vector<8x32xf32>
    %893 = arith.addf %892, %891 : vector<8x32xf32>
    %894 = arith.divf %892, %893 : vector<8x32xf32>
    %895 = arith.mulf %886, %865 : vector<8x32xf32>
    %896 = arith.mulf %880, %888 : vector<8x32xf32>
    %897 = arith.addf %895, %896 : vector<8x32xf32>
    %898 = math.tanh %897 : vector<8x32xf32>
    %899 = arith.mulf %894, %898 : vector<8x32xf32>
    %900 = vector.broadcast %63 : vector<8x1xf32> to vector<8x32xf32>
    %901 = arith.mulf %899, %900 : vector<8x32xf32>
    %902 = vector.broadcast %65 : vector<8x1xf32> to vector<8x32xf32>
    %903 = arith.mulf %899, %902 : vector<8x32xf32>
    %904 = tpu.concatenate %901, %903 in 1 : vector<8x32xf32>, vector<8x32xf32> -> vector<8x64xf32>
    %cst_135 = arith.constant dense<0.000000e+00> : vector<8x128xf32>
    %905 = tpu.matmul %904, %593, %cst_135 {dimension_numbers = #tpu.dot_dimension_numbers<[1], [0], [0], [1], [0, 0, 1, 1], [], []>} : vector<8x64xf32>, vector<64x128xf32>, vector<8x128xf32> -> vector<8x128xf32>
    %906 = arith.addf %673, %905 : vector<8x128xf32>
    %907 = vector.extract_strided_slice %906 {offsets = [0, 0], sizes = [8, 32], strides = [1, 1]} : vector<8x128xf32> to vector<8x32xf32>
    %908 = arith.negf %907 : vector<8x32xf32>
    %909 = math.exp %908 : vector<8x32xf32>
    %cst_136 = arith.constant 1.000000e+00 : f32
    %910 = vector.broadcast %cst_136 : f32 to vector<8x32xf32>
    %911 = arith.addf %910, %909 : vector<8x32xf32>
    %912 = arith.divf %910, %911 : vector<8x32xf32>
    %913 = vector.extract_strided_slice %906 {offsets = [0, 32], sizes = [8, 32], strides = [1, 1]} : vector<8x128xf32> to vector<8x32xf32>
    %914 = arith.negf %913 : vector<8x32xf32>
    %915 = math.exp %914 : vector<8x32xf32>
    %cst_137 = arith.constant 1.000000e+00 : f32
    %916 = vector.broadcast %cst_137 : f32 to vector<8x32xf32>
    %917 = arith.addf %916, %915 : vector<8x32xf32>
    %918 = arith.divf %916, %917 : vector<8x32xf32>
    %919 = vector.extract_strided_slice %906 {offsets = [0, 64], sizes = [8, 32], strides = [1, 1]} : vector<8x128xf32> to vector<8x32xf32>
    %920 = math.tanh %919 : vector<8x32xf32>
    %921 = vector.extract_strided_slice %906 {offsets = [0, 96], sizes = [8, 32], strides = [1, 1]} : vector<8x128xf32> to vector<8x32xf32>
    %922 = arith.negf %921 : vector<8x32xf32>
    %923 = math.exp %922 : vector<8x32xf32>
    %cst_138 = arith.constant 1.000000e+00 : f32
    %924 = vector.broadcast %cst_138 : f32 to vector<8x32xf32>
    %925 = arith.addf %924, %923 : vector<8x32xf32>
    %926 = arith.divf %924, %925 : vector<8x32xf32>
    %927 = arith.mulf %918, %897 : vector<8x32xf32>
    %928 = arith.mulf %912, %920 : vector<8x32xf32>
    %929 = arith.addf %927, %928 : vector<8x32xf32>
    %930 = math.tanh %929 : vector<8x32xf32>
    %931 = arith.mulf %926, %930 : vector<8x32xf32>
    %932 = vector.extract_strided_slice %707 {offsets = [0, 0], sizes = [1, 32], strides = [1, 1]} : vector<8x32xf32> to vector<1x32xf32>
    %933 = vector.extract_strided_slice %739 {offsets = [0, 0], sizes = [1, 32], strides = [1, 1]} : vector<8x32xf32> to vector<1x32xf32>
    %934 = vector.extract_strided_slice %771 {offsets = [0, 0], sizes = [1, 32], strides = [1, 1]} : vector<8x32xf32> to vector<1x32xf32>
    %935 = vector.extract_strided_slice %803 {offsets = [0, 0], sizes = [1, 32], strides = [1, 1]} : vector<8x32xf32> to vector<1x32xf32>
    %936 = vector.extract_strided_slice %835 {offsets = [0, 0], sizes = [1, 32], strides = [1, 1]} : vector<8x32xf32> to vector<1x32xf32>
    %937 = vector.extract_strided_slice %867 {offsets = [0, 0], sizes = [1, 32], strides = [1, 1]} : vector<8x32xf32> to vector<1x32xf32>
    %938 = vector.extract_strided_slice %899 {offsets = [0, 0], sizes = [1, 32], strides = [1, 1]} : vector<8x32xf32> to vector<1x32xf32>
    %939 = vector.extract_strided_slice %931 {offsets = [0, 0], sizes = [1, 32], strides = [1, 1]} : vector<8x32xf32> to vector<1x32xf32>
    %940 = tpu.concatenate %932, %933, %934, %935, %936, %937, %938, %939 in 0 : vector<1x32xf32>, vector<1x32xf32>, vector<1x32xf32>, vector<1x32xf32>, vector<1x32xf32>, vector<1x32xf32>, vector<1x32xf32>, vector<1x32xf32> -> vector<8x32xf32>
    %941 = vector.extract_strided_slice %707 {offsets = [4, 0], sizes = [1, 32], strides = [1, 1]} : vector<8x32xf32> to vector<1x32xf32>
    %942 = vector.extract_strided_slice %739 {offsets = [4, 0], sizes = [1, 32], strides = [1, 1]} : vector<8x32xf32> to vector<1x32xf32>
    %943 = vector.extract_strided_slice %771 {offsets = [4, 0], sizes = [1, 32], strides = [1, 1]} : vector<8x32xf32> to vector<1x32xf32>
    %944 = vector.extract_strided_slice %803 {offsets = [4, 0], sizes = [1, 32], strides = [1, 1]} : vector<8x32xf32> to vector<1x32xf32>
    %945 = vector.extract_strided_slice %835 {offsets = [4, 0], sizes = [1, 32], strides = [1, 1]} : vector<8x32xf32> to vector<1x32xf32>
    %946 = vector.extract_strided_slice %867 {offsets = [4, 0], sizes = [1, 32], strides = [1, 1]} : vector<8x32xf32> to vector<1x32xf32>
    %947 = vector.extract_strided_slice %899 {offsets = [4, 0], sizes = [1, 32], strides = [1, 1]} : vector<8x32xf32> to vector<1x32xf32>
    %948 = vector.extract_strided_slice %931 {offsets = [4, 0], sizes = [1, 32], strides = [1, 1]} : vector<8x32xf32> to vector<1x32xf32>
    %949 = tpu.concatenate %941, %942, %943, %944, %945, %946, %947, %948 in 0 : vector<1x32xf32>, vector<1x32xf32>, vector<1x32xf32>, vector<1x32xf32>, vector<1x32xf32>, vector<1x32xf32>, vector<1x32xf32>, vector<1x32xf32> -> vector<8x32xf32>
    %cst_139 = arith.constant dense<0.000000e+00> : vector<8x32xf32>
    %950 = tpu.matmul %12, %949, %cst_139 {dimension_numbers = #tpu.dot_dimension_numbers<[1], [0], [0], [1], [0, 0, 1, 1], [], []>} : vector<8x8xf32>, vector<8x32xf32>, vector<8x32xf32> -> vector<8x32xf32>
    %951 = tpu.concatenate %940, %950 in 1 : vector<8x32xf32>, vector<8x32xf32> -> vector<8x64xf32>
    %952 = vector.broadcast %16 : vector<8x1xf32> to vector<8x64xf32>
    %953 = arith.mulf %951, %952 : vector<8x64xf32>
    %954 = vector.extract_strided_slice %707 {offsets = [1, 0], sizes = [1, 32], strides = [1, 1]} : vector<8x32xf32> to vector<1x32xf32>
    %955 = vector.extract_strided_slice %739 {offsets = [1, 0], sizes = [1, 32], strides = [1, 1]} : vector<8x32xf32> to vector<1x32xf32>
    %956 = vector.extract_strided_slice %771 {offsets = [1, 0], sizes = [1, 32], strides = [1, 1]} : vector<8x32xf32> to vector<1x32xf32>
    %957 = vector.extract_strided_slice %803 {offsets = [1, 0], sizes = [1, 32], strides = [1, 1]} : vector<8x32xf32> to vector<1x32xf32>
    %958 = vector.extract_strided_slice %835 {offsets = [1, 0], sizes = [1, 32], strides = [1, 1]} : vector<8x32xf32> to vector<1x32xf32>
    %959 = vector.extract_strided_slice %867 {offsets = [1, 0], sizes = [1, 32], strides = [1, 1]} : vector<8x32xf32> to vector<1x32xf32>
    %960 = vector.extract_strided_slice %899 {offsets = [1, 0], sizes = [1, 32], strides = [1, 1]} : vector<8x32xf32> to vector<1x32xf32>
    %961 = vector.extract_strided_slice %931 {offsets = [1, 0], sizes = [1, 32], strides = [1, 1]} : vector<8x32xf32> to vector<1x32xf32>
    %962 = tpu.concatenate %954, %955, %956, %957, %958, %959, %960, %961 in 0 : vector<1x32xf32>, vector<1x32xf32>, vector<1x32xf32>, vector<1x32xf32>, vector<1x32xf32>, vector<1x32xf32>, vector<1x32xf32>, vector<1x32xf32> -> vector<8x32xf32>
    %963 = vector.extract_strided_slice %707 {offsets = [5, 0], sizes = [1, 32], strides = [1, 1]} : vector<8x32xf32> to vector<1x32xf32>
    %964 = vector.extract_strided_slice %739 {offsets = [5, 0], sizes = [1, 32], strides = [1, 1]} : vector<8x32xf32> to vector<1x32xf32>
    %965 = vector.extract_strided_slice %771 {offsets = [5, 0], sizes = [1, 32], strides = [1, 1]} : vector<8x32xf32> to vector<1x32xf32>
    %966 = vector.extract_strided_slice %803 {offsets = [5, 0], sizes = [1, 32], strides = [1, 1]} : vector<8x32xf32> to vector<1x32xf32>
    %967 = vector.extract_strided_slice %835 {offsets = [5, 0], sizes = [1, 32], strides = [1, 1]} : vector<8x32xf32> to vector<1x32xf32>
    %968 = vector.extract_strided_slice %867 {offsets = [5, 0], sizes = [1, 32], strides = [1, 1]} : vector<8x32xf32> to vector<1x32xf32>
    %969 = vector.extract_strided_slice %899 {offsets = [5, 0], sizes = [1, 32], strides = [1, 1]} : vector<8x32xf32> to vector<1x32xf32>
    %970 = vector.extract_strided_slice %931 {offsets = [5, 0], sizes = [1, 32], strides = [1, 1]} : vector<8x32xf32> to vector<1x32xf32>
    %971 = tpu.concatenate %963, %964, %965, %966, %967, %968, %969, %970 in 0 : vector<1x32xf32>, vector<1x32xf32>, vector<1x32xf32>, vector<1x32xf32>, vector<1x32xf32>, vector<1x32xf32>, vector<1x32xf32>, vector<1x32xf32> -> vector<8x32xf32>
    %cst_140 = arith.constant dense<0.000000e+00> : vector<8x32xf32>
    %972 = tpu.matmul %40, %971, %cst_140 {dimension_numbers = #tpu.dot_dimension_numbers<[1], [0], [0], [1], [0, 0, 1, 1], [], []>} : vector<8x8xf32>, vector<8x32xf32>, vector<8x32xf32> -> vector<8x32xf32>
    %973 = tpu.concatenate %962, %972 in 1 : vector<8x32xf32>, vector<8x32xf32> -> vector<8x64xf32>
    %974 = vector.broadcast %44 : vector<8x1xf32> to vector<8x64xf32>
    %975 = arith.mulf %973, %974 : vector<8x64xf32>
    %976 = vector.extract_strided_slice %707 {offsets = [2, 0], sizes = [1, 32], strides = [1, 1]} : vector<8x32xf32> to vector<1x32xf32>
    %977 = vector.extract_strided_slice %739 {offsets = [2, 0], sizes = [1, 32], strides = [1, 1]} : vector<8x32xf32> to vector<1x32xf32>
    %978 = vector.extract_strided_slice %771 {offsets = [2, 0], sizes = [1, 32], strides = [1, 1]} : vector<8x32xf32> to vector<1x32xf32>
    %979 = vector.extract_strided_slice %803 {offsets = [2, 0], sizes = [1, 32], strides = [1, 1]} : vector<8x32xf32> to vector<1x32xf32>
    %980 = vector.extract_strided_slice %835 {offsets = [2, 0], sizes = [1, 32], strides = [1, 1]} : vector<8x32xf32> to vector<1x32xf32>
    %981 = vector.extract_strided_slice %867 {offsets = [2, 0], sizes = [1, 32], strides = [1, 1]} : vector<8x32xf32> to vector<1x32xf32>
    %982 = vector.extract_strided_slice %899 {offsets = [2, 0], sizes = [1, 32], strides = [1, 1]} : vector<8x32xf32> to vector<1x32xf32>
    %983 = vector.extract_strided_slice %931 {offsets = [2, 0], sizes = [1, 32], strides = [1, 1]} : vector<8x32xf32> to vector<1x32xf32>
    %984 = tpu.concatenate %976, %977, %978, %979, %980, %981, %982, %983 in 0 : vector<1x32xf32>, vector<1x32xf32>, vector<1x32xf32>, vector<1x32xf32>, vector<1x32xf32>, vector<1x32xf32>, vector<1x32xf32>, vector<1x32xf32> -> vector<8x32xf32>
    %985 = vector.extract_strided_slice %707 {offsets = [6, 0], sizes = [1, 32], strides = [1, 1]} : vector<8x32xf32> to vector<1x32xf32>
    %986 = vector.extract_strided_slice %739 {offsets = [6, 0], sizes = [1, 32], strides = [1, 1]} : vector<8x32xf32> to vector<1x32xf32>
    %987 = vector.extract_strided_slice %771 {offsets = [6, 0], sizes = [1, 32], strides = [1, 1]} : vector<8x32xf32> to vector<1x32xf32>
    %988 = vector.extract_strided_slice %803 {offsets = [6, 0], sizes = [1, 32], strides = [1, 1]} : vector<8x32xf32> to vector<1x32xf32>
    %989 = vector.extract_strided_slice %835 {offsets = [6, 0], sizes = [1, 32], strides = [1, 1]} : vector<8x32xf32> to vector<1x32xf32>
    %990 = vector.extract_strided_slice %867 {offsets = [6, 0], sizes = [1, 32], strides = [1, 1]} : vector<8x32xf32> to vector<1x32xf32>
    %991 = vector.extract_strided_slice %899 {offsets = [6, 0], sizes = [1, 32], strides = [1, 1]} : vector<8x32xf32> to vector<1x32xf32>
    %992 = vector.extract_strided_slice %931 {offsets = [6, 0], sizes = [1, 32], strides = [1, 1]} : vector<8x32xf32> to vector<1x32xf32>
    %993 = tpu.concatenate %985, %986, %987, %988, %989, %990, %991, %992 in 0 : vector<1x32xf32>, vector<1x32xf32>, vector<1x32xf32>, vector<1x32xf32>, vector<1x32xf32>, vector<1x32xf32>, vector<1x32xf32>, vector<1x32xf32> -> vector<8x32xf32>
    %cst_141 = arith.constant dense<0.000000e+00> : vector<8x32xf32>
    %994 = tpu.matmul %26, %993, %cst_141 {dimension_numbers = #tpu.dot_dimension_numbers<[1], [0], [0], [1], [0, 0, 1, 1], [], []>} : vector<8x8xf32>, vector<8x32xf32>, vector<8x32xf32> -> vector<8x32xf32>
    %995 = tpu.concatenate %984, %994 in 1 : vector<8x32xf32>, vector<8x32xf32> -> vector<8x64xf32>
    %996 = vector.broadcast %30 : vector<8x1xf32> to vector<8x64xf32>
    %997 = arith.mulf %995, %996 : vector<8x64xf32>
    %998 = vector.extract_strided_slice %707 {offsets = [3, 0], sizes = [1, 32], strides = [1, 1]} : vector<8x32xf32> to vector<1x32xf32>
    %999 = vector.extract_strided_slice %739 {offsets = [3, 0], sizes = [1, 32], strides = [1, 1]} : vector<8x32xf32> to vector<1x32xf32>
    %1000 = vector.extract_strided_slice %771 {offsets = [3, 0], sizes = [1, 32], strides = [1, 1]} : vector<8x32xf32> to vector<1x32xf32>
    %1001 = vector.extract_strided_slice %803 {offsets = [3, 0], sizes = [1, 32], strides = [1, 1]} : vector<8x32xf32> to vector<1x32xf32>
    %1002 = vector.extract_strided_slice %835 {offsets = [3, 0], sizes = [1, 32], strides = [1, 1]} : vector<8x32xf32> to vector<1x32xf32>
    %1003 = vector.extract_strided_slice %867 {offsets = [3, 0], sizes = [1, 32], strides = [1, 1]} : vector<8x32xf32> to vector<1x32xf32>
    %1004 = vector.extract_strided_slice %899 {offsets = [3, 0], sizes = [1, 32], strides = [1, 1]} : vector<8x32xf32> to vector<1x32xf32>
    %1005 = vector.extract_strided_slice %931 {offsets = [3, 0], sizes = [1, 32], strides = [1, 1]} : vector<8x32xf32> to vector<1x32xf32>
    %1006 = tpu.concatenate %998, %999, %1000, %1001, %1002, %1003, %1004, %1005 in 0 : vector<1x32xf32>, vector<1x32xf32>, vector<1x32xf32>, vector<1x32xf32>, vector<1x32xf32>, vector<1x32xf32>, vector<1x32xf32>, vector<1x32xf32> -> vector<8x32xf32>
    %1007 = vector.extract_strided_slice %707 {offsets = [7, 0], sizes = [1, 32], strides = [1, 1]} : vector<8x32xf32> to vector<1x32xf32>
    %1008 = vector.extract_strided_slice %739 {offsets = [7, 0], sizes = [1, 32], strides = [1, 1]} : vector<8x32xf32> to vector<1x32xf32>
    %1009 = vector.extract_strided_slice %771 {offsets = [7, 0], sizes = [1, 32], strides = [1, 1]} : vector<8x32xf32> to vector<1x32xf32>
    %1010 = vector.extract_strided_slice %803 {offsets = [7, 0], sizes = [1, 32], strides = [1, 1]} : vector<8x32xf32> to vector<1x32xf32>
    %1011 = vector.extract_strided_slice %835 {offsets = [7, 0], sizes = [1, 32], strides = [1, 1]} : vector<8x32xf32> to vector<1x32xf32>
    %1012 = vector.extract_strided_slice %867 {offsets = [7, 0], sizes = [1, 32], strides = [1, 1]} : vector<8x32xf32> to vector<1x32xf32>
    %1013 = vector.extract_strided_slice %899 {offsets = [7, 0], sizes = [1, 32], strides = [1, 1]} : vector<8x32xf32> to vector<1x32xf32>
    %1014 = vector.extract_strided_slice %931 {offsets = [7, 0], sizes = [1, 32], strides = [1, 1]} : vector<8x32xf32> to vector<1x32xf32>
    %1015 = tpu.concatenate %1007, %1008, %1009, %1010, %1011, %1012, %1013, %1014 in 0 : vector<1x32xf32>, vector<1x32xf32>, vector<1x32xf32>, vector<1x32xf32>, vector<1x32xf32>, vector<1x32xf32>, vector<1x32xf32>, vector<1x32xf32> -> vector<8x32xf32>
    %cst_142 = arith.constant dense<0.000000e+00> : vector<8x32xf32>
    %1016 = tpu.matmul %54, %1015, %cst_142 {dimension_numbers = #tpu.dot_dimension_numbers<[1], [0], [0], [1], [0, 0, 1, 1], [], []>} : vector<8x8xf32>, vector<8x32xf32>, vector<8x32xf32> -> vector<8x32xf32>
    %1017 = tpu.concatenate %1006, %1016 in 1 : vector<8x32xf32>, vector<8x32xf32> -> vector<8x64xf32>
    %1018 = vector.broadcast %58 : vector<8x1xf32> to vector<8x64xf32>
    %1019 = arith.mulf %1017, %1018 : vector<8x64xf32>
    %cst_143 = arith.constant dense<0.000000e+00> : vector<64xf32>
    %1020 = vector.multi_reduction <add>, %953, %cst_143 [0] : vector<8x64xf32> to vector<64xf32>
    %1021 = vector.shape_cast %1020 : vector<64xf32> to vector<1x64xf32>
    %cst_144 = arith.constant 8.000000e+00 : f32
    %1022 = vector.broadcast %cst_144 : f32 to vector<1x64xf32>
    %1023 = arith.divf %1021, %1022 : vector<1x64xf32>
    %cst_145 = arith.constant dense<0xFF800000> : vector<64xf32>
    %1024 = vector.multi_reduction <maximumf>, %953, %cst_145 [0] : vector<8x64xf32> to vector<64xf32>
    %1025 = vector.shape_cast %1024 : vector<64xf32> to vector<1x64xf32>
    %1026 = tpu.concatenate %1023, %1025 in 1 : vector<1x64xf32>, vector<1x64xf32> -> vector<1x128xf32>
    %cst_146 = arith.constant dense<0.000000e+00> : vector<64xf32>
    %1027 = vector.multi_reduction <add>, %997, %cst_146 [0] : vector<8x64xf32> to vector<64xf32>
    %1028 = vector.shape_cast %1027 : vector<64xf32> to vector<1x64xf32>
    %cst_147 = arith.constant 8.000000e+00 : f32
    %1029 = vector.broadcast %cst_147 : f32 to vector<1x64xf32>
    %1030 = arith.divf %1028, %1029 : vector<1x64xf32>
    %cst_148 = arith.constant dense<0xFF800000> : vector<64xf32>
    %1031 = vector.multi_reduction <maximumf>, %997, %cst_148 [0] : vector<8x64xf32> to vector<64xf32>
    %1032 = vector.shape_cast %1031 : vector<64xf32> to vector<1x64xf32>
    %1033 = tpu.concatenate %1030, %1032 in 1 : vector<1x64xf32>, vector<1x64xf32> -> vector<1x128xf32>
    %1034 = tpu.concatenate %1026, %1033 in 1 : vector<1x128xf32>, vector<1x128xf32> -> vector<1x256xf32>
    %cst_149 = arith.constant dense<0.000000e+00> : vector<64xf32>
    %1035 = vector.multi_reduction <add>, %975, %cst_149 [0] : vector<8x64xf32> to vector<64xf32>
    %1036 = vector.shape_cast %1035 : vector<64xf32> to vector<1x64xf32>
    %cst_150 = arith.constant 8.000000e+00 : f32
    %1037 = vector.broadcast %cst_150 : f32 to vector<1x64xf32>
    %1038 = arith.divf %1036, %1037 : vector<1x64xf32>
    %cst_151 = arith.constant dense<0xFF800000> : vector<64xf32>
    %1039 = vector.multi_reduction <maximumf>, %975, %cst_151 [0] : vector<8x64xf32> to vector<64xf32>
    %1040 = vector.shape_cast %1039 : vector<64xf32> to vector<1x64xf32>
    %1041 = tpu.concatenate %1038, %1040 in 1 : vector<1x64xf32>, vector<1x64xf32> -> vector<1x128xf32>
    %cst_152 = arith.constant dense<0.000000e+00> : vector<64xf32>
    %1042 = vector.multi_reduction <add>, %1019, %cst_152 [0] : vector<8x64xf32> to vector<64xf32>
    %1043 = vector.shape_cast %1042 : vector<64xf32> to vector<1x64xf32>
    %cst_153 = arith.constant 8.000000e+00 : f32
    %1044 = vector.broadcast %cst_153 : f32 to vector<1x64xf32>
    %1045 = arith.divf %1043, %1044 : vector<1x64xf32>
    %cst_154 = arith.constant dense<0xFF800000> : vector<64xf32>
    %1046 = vector.multi_reduction <maximumf>, %1019, %cst_154 [0] : vector<8x64xf32> to vector<64xf32>
    %1047 = vector.shape_cast %1046 : vector<64xf32> to vector<1x64xf32>
    %1048 = tpu.concatenate %1045, %1047 in 1 : vector<1x64xf32>, vector<1x64xf32> -> vector<1x128xf32>
    %1049 = tpu.concatenate %1041, %1048 in 1 : vector<1x128xf32>, vector<1x128xf32> -> vector<1x256xf32>
    %1050 = tpu.concatenate %1034, %1049 in 0 : vector<1x256xf32>, vector<1x256xf32> -> vector<2x256xf32>
    %c0_155 = arith.constant 0 : index
    %c0_156 = arith.constant 0 : index
    %1051 = vector.load %arg15[%c0_155, %c0_156] : memref<256x32xf32, #tpu.memory_space<vmem>>, vector<256x32xf32>
    %cst_157 = arith.constant dense<0.000000e+00> : vector<2x32xf32>
    %1052 = tpu.matmul %1050, %1051, %cst_157 {dimension_numbers = #tpu.dot_dimension_numbers<[1], [0], [0], [1], [0, 0, 1, 1], [], []>} : vector<2x256xf32>, vector<256x32xf32>, vector<2x32xf32> -> vector<2x32xf32>
    %c0_158 = arith.constant 0 : index
    %c0_159 = arith.constant 0 : index
    %1053 = vector.load %arg16[%c0_158, %c0_159] : memref<1x32xf32, #tpu.memory_space<vmem>>, vector<1x32xf32>
    %1054 = vector.broadcast %1053 : vector<1x32xf32> to vector<2x32xf32>
    %1055 = arith.addf %1052, %1054 : vector<2x32xf32>
    %cst_160 = arith.constant 0.000000e+00 : f32
    %1056 = vector.broadcast %cst_160 : f32 to vector<2x32xf32>
    %1057 = arith.maximumf %1055, %1056 : vector<2x32xf32>
    %c0_161 = arith.constant 0 : index
    %c0_162 = arith.constant 0 : index
    %1058 = vector.load %arg17[%c0_161, %c0_162] : memref<32x2xf32, #tpu.memory_space<vmem>>, vector<32x2xf32>
    %cst_163 = arith.constant dense<0.000000e+00> : vector<2x2xf32>
    %1059 = tpu.matmul %1057, %1058, %cst_163 {dimension_numbers = #tpu.dot_dimension_numbers<[1], [0], [0], [1], [0, 0, 1, 1], [], []>} : vector<2x32xf32>, vector<32x2xf32>, vector<2x2xf32> -> vector<2x2xf32>
    %c0_164 = arith.constant 0 : index
    %c0_165 = arith.constant 0 : index
    %1060 = vector.load %arg18[%c0_164, %c0_165] : memref<1x2xf32, #tpu.memory_space<vmem>>, vector<1x2xf32>
    %1061 = vector.broadcast %1060 : vector<1x2xf32> to vector<2x2xf32>
    %1062 = arith.addf %1059, %1061 : vector<2x2xf32>
    %c0_166 = arith.constant 0 : index
    %c0_167 = arith.constant 0 : index
    %1063 = vector.load %arg19[%c0_166, %c0_167] : memref<2x2xf32, #tpu.memory_space<vmem>>, vector<2x2xf32>
    tpu.vector_store %arg19[%c0_166, %c0_167], %1062 {strides = array<i32>} : memref<2x2xf32, #tpu.memory_space<vmem>>, vector<2x2xf32>,
    return
  }
  func.func @transform_0(%arg0: i32, %arg1: memref<2xi32, #tpu.memory_space<smem>>, %arg2: memref<2xi32, #tpu.memory_space<smem>>) -> (i32, i32, i32) {
    %c0_i32 = arith.constant 0 : i32
    %c0_i32_0 = arith.constant 0 : i32
    %c0_i32_1 = arith.constant 0 : i32
    %c0_i32_2 = arith.constant 0 : i32
    return %c0_i32, %c0_i32_0, %c0_i32_1 : i32, i32, i32
  }
  func.func @transform_1(%arg0: i32, %arg1: memref<2xi32, #tpu.memory_space<smem>>, %arg2: memref<2xi32, #tpu.memory_space<smem>>) -> (i32, i32, i32) {
    %c0_i32 = arith.constant 0 : i32
    %c0_i32_0 = arith.constant 0 : i32
    %c0_i32_1 = arith.constant 0 : i32
    %c0_i32_2 = arith.constant 0 : i32
    return %c0_i32, %c0_i32_0, %c0_i32_1 : i32, i32, i32
  }
  func.func @transform_2(%arg0: i32, %arg1: memref<2xi32, #tpu.memory_space<smem>>, %arg2: memref<2xi32, #tpu.memory_space<smem>>) -> (i32, i32) {
    %c0_i32 = arith.constant 0 : i32
    %c0_i32_0 = arith.constant 0 : i32
    %c0_i32_1 = arith.constant 0 : i32
    return %c0_i32, %c0_i32_0 : i32, i32
  }
  func.func @transform_3(%arg0: i32, %arg1: memref<2xi32, #tpu.memory_space<smem>>, %arg2: memref<2xi32, #tpu.memory_space<smem>>) -> (i32, i32) {
    %c0_i32 = arith.constant 0 : i32
    %c0_i32_0 = arith.constant 0 : i32
    %c0_i32_1 = arith.constant 0 : i32
    return %c0_i32, %c0_i32_0 : i32, i32
  }
  func.func @transform_4(%arg0: i32, %arg1: memref<2xi32, #tpu.memory_space<smem>>, %arg2: memref<2xi32, #tpu.memory_space<smem>>) -> (i32, i32) {
    %c0_i32 = arith.constant 0 : i32
    %c0_i32_0 = arith.constant 0 : i32
    %c0_i32_1 = arith.constant 0 : i32
    return %c0_i32, %c0_i32_0 : i32, i32
  }
  func.func @transform_5(%arg0: i32, %arg1: memref<2xi32, #tpu.memory_space<smem>>, %arg2: memref<2xi32, #tpu.memory_space<smem>>) -> (i32, i32) {
    %c0_i32 = arith.constant 0 : i32
    %c0_i32_0 = arith.constant 0 : i32
    %c0_i32_1 = arith.constant 0 : i32
    return %c0_i32, %c0_i32_0 : i32, i32
  }
  func.func @transform_6(%arg0: i32, %arg1: memref<2xi32, #tpu.memory_space<smem>>, %arg2: memref<2xi32, #tpu.memory_space<smem>>) -> (i32, i32) {
    %c0_i32 = arith.constant 0 : i32
    %c0_i32_0 = arith.constant 0 : i32
    %c0_i32_1 = arith.constant 0 : i32
    return %c0_i32, %c0_i32_0 : i32, i32
  }
  func.func @transform_7(%arg0: i32, %arg1: memref<2xi32, #tpu.memory_space<smem>>, %arg2: memref<2xi32, #tpu.memory_space<smem>>) -> (i32, i32) {
    %c0_i32 = arith.constant 0 : i32
    %c0_i32_0 = arith.constant 0 : i32
    %c0_i32_1 = arith.constant 0 : i32
    return %c0_i32, %c0_i32_0 : i32, i32
  }
  func.func @transform_8(%arg0: i32, %arg1: memref<2xi32, #tpu.memory_space<smem>>, %arg2: memref<2xi32, #tpu.memory_space<smem>>) -> (i32, i32) {
    %c0_i32 = arith.constant 0 : i32
    %c0_i32_0 = arith.constant 0 : i32
    %c0_i32_1 = arith.constant 0 : i32
    return %c0_i32, %c0_i32_0 : i32, i32
  }
  func.func @transform_9(%arg0: i32, %arg1: memref<2xi32, #tpu.memory_space<smem>>, %arg2: memref<2xi32, #tpu.memory_space<smem>>) -> (i32, i32) {
    %c0_i32 = arith.constant 0 : i32
    %c0_i32_0 = arith.constant 0 : i32
    %c0_i32_1 = arith.constant 0 : i32
    return %c0_i32, %c0_i32_0 : i32, i32
  }
  func.func @transform_10(%arg0: i32, %arg1: memref<2xi32, #tpu.memory_space<smem>>, %arg2: memref<2xi32, #tpu.memory_space<smem>>) -> (i32, i32) {
    %c0_i32 = arith.constant 0 : i32
    %c0_i32_0 = arith.constant 0 : i32
    %c0_i32_1 = arith.constant 0 : i32
    return %c0_i32, %c0_i32_0 : i32, i32
  }
  func.func @transform_11(%arg0: i32, %arg1: memref<2xi32, #tpu.memory_space<smem>>, %arg2: memref<2xi32, #tpu.memory_space<smem>>) -> (i32, i32) {
    %c0_i32 = arith.constant 0 : i32
    %c0_i32_0 = arith.constant 0 : i32
    %c0_i32_1 = arith.constant 0 : i32
    return %c0_i32, %c0_i32_0 : i32, i32
  }
  func.func @transform_12(%arg0: i32, %arg1: memref<2xi32, #tpu.memory_space<smem>>, %arg2: memref<2xi32, #tpu.memory_space<smem>>) -> (i32, i32) {
    %c0_i32 = arith.constant 0 : i32
    %c0_i32_0 = arith.constant 0 : i32
    %c0_i32_1 = arith.constant 0 : i32
    return %c0_i32, %c0_i32_0 : i32, i32
  }
  func.func @transform_13(%arg0: i32, %arg1: memref<2xi32, #tpu.memory_space<smem>>, %arg2: memref<2xi32, #tpu.memory_space<smem>>) -> (i32, i32) {
    %c0_i32 = arith.constant 0 : i32
    %c0_i32_0 = arith.constant 0 : i32
    %c0_i32_1 = arith.constant 0 : i32
    return %c0_i32, %c0_i32_0 : i32, i32
  }
  func.func @transform_14(%arg0: i32, %arg1: memref<2xi32, #tpu.memory_space<smem>>, %arg2: memref<2xi32, #tpu.memory_space<smem>>) -> (i32, i32) {
    %c0_i32 = arith.constant 0 : i32
    %c0_i32_0 = arith.constant 0 : i32
    %c0_i32_1 = arith.constant 0 : i32
    return %c0_i32, %c0_i32_0 : i32, i32
  }
  func.func @transform_15(%arg0: i32, %arg1: memref<2xi32, #tpu.memory_space<smem>>, %arg2: memref<2xi32, #tpu.memory_space<smem>>) -> (i32, i32) {
    %c0_i32 = arith.constant 0 : i32
    %c0_i32_0 = arith.constant 0 : i32
    %c0_i32_1 = arith.constant 0 : i32
    return %c0_i32, %c0_i32_0 : i32, i32
  }
  func.func @transform_16(%arg0: i32, %arg1: memref<2xi32, #tpu.memory_space<smem>>, %arg2: memref<2xi32, #tpu.memory_space<smem>>) -> (i32, i32) {
    %c0_i32 = arith.constant 0 : i32
    %c0_i32_0 = arith.constant 0 : i32
    %c0_i32_1 = arith.constant 0 : i32
    return %c0_i32, %c0_i32_0 : i32, i32
  }
}

</mosaic_0001>

<llo_original>
// kernel: esim_forward_pallas.1
$region0: #{esim_forward_pallas.1}
  #allocation0 [shape = 'u32[]', space=smem, size = 0x4, offset = 0x4, fixed_abs, tag = 'smem constant byte address 0x4 - core index']
  #allocation1 [shape = 'u32[72,128]{1,0:T(1,128)}', space=vmem, size = 0x9000, scoped, tag = 'internal scratch']
  #allocation2 [shape = 's32[1]{0}', space=sflag, size = 0x4, scoped, tag = 'scoped memory for esim_forward_pallas.1']
  #allocation3 [shape = 'u8[512]{0}', space=smem, size = 0x200, scoped, tag = 'prefetched SMEM operand 0']
  #allocation4 [shape = 'u8[512]{0}', space=smem, size = 0x200, scoped, tag = 'prefetched SMEM operand 1']
  %s0 = inlined_call_operand.vmem [shape: s32[2], index: 0, kind: input, shape index: {}]
  %s1 = inlined_call_operand.vmem [shape: s32[2], index: 1, kind: input, shape index: {}]
  %s2 = inlined_call_operand.vmem [shape: f32[2,8,32], index: 2, kind: input, shape index: {}]
  %s3 = inlined_call_operand.vmem [shape: f32[2,8,32], index: 3, kind: input, shape index: {}]
  %s4 = inlined_call_operand.vmem [shape: f32[2,8], index: 4, kind: input, shape index: {}]
  %s5 = inlined_call_operand.vmem [shape: f32[2,8], index: 5, kind: input, shape index: {}]
  %s6 = inlined_call_operand.vmem [shape: f32[32,128], index: 6, kind: input, shape index: {}]
  %s7 = inlined_call_operand.vmem [shape: f32[32,128], index: 7, kind: input, shape index: {}]
  %s8 = inlined_call_operand.vmem [shape: f32[64,128], index: 8, kind: input, shape index: {}]
  %s9 = inlined_call_operand.vmem [shape: f32[8,128], index: 9, kind: input, shape index: {}]
  %s10 = inlined_call_operand.vmem [shape: f32[256,128], index: 10, kind: input, shape index: {}]
  %s11 = inlined_call_operand.vmem [shape: f32[256,128], index: 11, kind: input, shape index: {}]
  %s12 = inlined_call_operand.vmem [shape: f32[64,128], index: 12, kind: input, shape index: {}]
  %s13 = inlined_call_operand.vmem [shape: f32[8,128], index: 13, kind: input, shape index: {}]
  %s14 = inlined_call_operand.vmem [shape: f32[256,32], index: 14, kind: input, shape index: {}]
  %s15 = inlined_call_operand.vmem [shape: f32[1,32], index: 15, kind: input, shape index: {}]
  %s16 = inlined_call_operand.vmem [shape: f32[32,2], index: 16, kind: input, shape index: {}]
  %s17 = inlined_call_operand.vmem [shape: f32[1,2], index: 17, kind: input, shape index: {}]
  %s18 = inlined_call_operand.hbm [shape: f32[2,2], index: 18, kind: output, shape index: {}]
  %s19 = sld [smem:[#allocation0]]
  $region74: #{esim_forward_pallas.1} parent=0
    _
  %s21 = ssub.s32 1, %s19
  %s22 = scalar_select 0, %s21, %s19
  %s24 = sshll.u32 %s0, 4
  %s25 = int_to_ptr.vmem [resolvable:$true] %s24
  %27 = dma.vmem_to_smem %s25, 16, [#allocation3], [#allocation2]
  %s29 = sshll.u32 %s1, 4
  %s30 = int_to_ptr.vmem [resolvable:$true] %s29
  %32 = dma.vmem_to_smem %s30, 16, [#allocation4], [#allocation2]
  %34 = dma.done [#allocation2], 32
  %35 = sfence
  $region1: #{esim_forward_pallas.1} parent=0
    #allocation5 [shape = 'u8[1024]{0}', space=vmem, size = 0x400, scoped, tag = 'output window, operand 0, single buffered']
    #allocation6 [shape = 's32[1]{0}', space=sflag, size = 0x4, scoped, tag = 'scoped memory for esim_forward_pallas.1']
    %36 = vsyncpa [#allocation6], 0
    // Predicated region
    $region2: #{esim_forward_pallas.1} parent=1 // pred_check
      _
    $region3: #{esim_forward_pallas.1} parent=1 // pred_check_branch
      %38 = sbr.rel (0) target = $region5
    $region4: #{esim_forward_pallas.1} parent=1 // pred_region
      _
    $region5: #{esim_forward_pallas.1} parent=1 // pred_fallthru
      _
    // Predicated region
    $region6: #{esim_forward_pallas.1} parent=1 // pred_check
      _
    $region7: #{esim_forward_pallas.1} parent=1 // pred_check_branch
      %40 = sbr.rel (0) target = $region9
    $region8: #{esim_forward_pallas.1} parent=1 // pred_region
      _
    $region9: #{esim_forward_pallas.1} parent=1 // pred_fallthru
      _
    // Predicated region
    $region10: #{esim_forward_pallas.1} parent=1 // pred_check
      _
    $region11: #{esim_forward_pallas.1} parent=1 // pred_check_branch
      %42 = sbr.rel (0) target = $region13
    $region12: #{esim_forward_pallas.1} parent=1 // pred_region
      _
    $region13: #{esim_forward_pallas.1} parent=1 // pred_fallthru
      _
    // Predicated region
    $region14: #{esim_forward_pallas.1} parent=1 // pred_check
      _
    $region15: #{esim_forward_pallas.1} parent=1 // pred_check_branch
      %44 = sbr.rel (0) target = $region17
    $region16: #{esim_forward_pallas.1} parent=1 // pred_region
      _
    $region17: #{esim_forward_pallas.1} parent=1 // pred_fallthru
      _
    // Predicated region
    $region18: #{esim_forward_pallas.1} parent=1 // pred_check
      _
    $region19: #{esim_forward_pallas.1} parent=1 // pred_check_branch
      %46 = sbr.rel (0) target = $region21
    $region20: #{esim_forward_pallas.1} parent=1 // pred_region
      _
    $region21: #{esim_forward_pallas.1} parent=1 // pred_fallthru
      _
    // Predicated region
    $region22: #{esim_forward_pallas.1} parent=1 // pred_check
      _
    $region23: #{esim_forward_pallas.1} parent=1 // pred_check_branch
      %48 = sbr.rel (0) target = $region25
    $region24: #{esim_forward_pallas.1} parent=1 // pred_region
      _
    $region25: #{esim_forward_pallas.1} parent=1 // pred_fallthru
      _
    // Predicated region
    $region26: #{esim_forward_pallas.1} parent=1 // pred_check
      _
    $region27: #{esim_forward_pallas.1} parent=1 // pred_check_branch
      %50 = sbr.rel (0) target = $region29
    $region28: #{esim_forward_pallas.1} parent=1 // pred_region
      _
    $region29: #{esim_forward_pallas.1} parent=1 // pred_fallthru
      _
    // Predicated region
    $region30: #{esim_forward_pallas.1} parent=1 // pred_check
      _
    $region31: #{esim_forward_pallas.1} parent=1 // pred_check_branch
      %52 = sbr.rel (0) target = $region33
    $region32: #{esim_forward_pallas.1} parent=1 // pred_region
      _
    $region33: #{esim_forward_pallas.1} parent=1 // pred_fallthru
      _
    // Predicated region
    $region34: #{esim_forward_pallas.1} parent=1 // pred_check
      _
    $region35: #{esim_forward_pallas.1} parent=1 // pred_check_branch
      %54 = sbr.rel (0) target = $region37
    $region36: #{esim_forward_pallas.1} parent=1 // pred_region
      _
    $region37: #{esim_forward_pallas.1} parent=1 // pred_fallthru
      _
    // Predicated region
    $region38: #{esim_forward_pallas.1} parent=1 // pred_check
      _
    $region39: #{esim_forward_pallas.1} parent=1 // pred_check_branch
      %56 = sbr.rel (0) target = $region41
    $region40: #{esim_forward_pallas.1} parent=1 // pred_region
      _
    $region41: #{esim_forward_pallas.1} parent=1 // pred_fallthru
      _
    // Predicated region
    $region42: #{esim_forward_pallas.1} parent=1 // pred_check
      _
    $region43: #{esim_forward_pallas.1} parent=1 // pred_check_branch
      %58 = sbr.rel (0) target = $region45
    $region44: #{esim_forward_pallas.1} parent=1 // pred_region
      _
    $region45: #{esim_forward_pallas.1} parent=1 // pred_fallthru
      _
    // Predicated region
    $region46: #{esim_forward_pallas.1} parent=1 // pred_check
      _
    $region47: #{esim_forward_pallas.1} parent=1 // pred_check_branch
      %60 = sbr.rel (0) target = $region49
    $region48: #{esim_forward_pallas.1} parent=1 // pred_region
      _
    $region49: #{esim_forward_pallas.1} parent=1 // pred_fallthru
      _
    // Predicated region
    $region50: #{esim_forward_pallas.1} parent=1 // pred_check
      _
    $region51: #{esim_forward_pallas.1} parent=1 // pred_check_branch
      %62 = sbr.rel (0) target = $region53
    $region52: #{esim_forward_pallas.1} parent=1 // pred_region
      _
    $region53: #{esim_forward_pallas.1} parent=1 // pred_fallthru
      _
    // Predicated region
    $region54: #{esim_forward_pallas.1} parent=1 // pred_check
      _
    $region55: #{esim_forward_pallas.1} parent=1 // pred_check_branch
      %64 = sbr.rel (0) target = $region57
    $region56: #{esim_forward_pallas.1} parent=1 // pred_region
      _
    $region57: #{esim_forward_pallas.1} parent=1 // pred_fallthru
      _
    // Predicated region
    $region58: #{esim_forward_pallas.1} parent=1 // pred_check
      _
    $region59: #{esim_forward_pallas.1} parent=1 // pred_check_branch
      %66 = sbr.rel (0) target = $region61
    $region60: #{esim_forward_pallas.1} parent=1 // pred_region
      _
    $region61: #{esim_forward_pallas.1} parent=1 // pred_fallthru
      _
    // Predicated region
    $region62: #{esim_forward_pallas.1} parent=1 // pred_check
      _
    $region63: #{esim_forward_pallas.1} parent=1 // pred_check_branch
      %68 = sbr.rel (0) target = $region65
    $region64: #{esim_forward_pallas.1} parent=1 // pred_region
      _
    $region65: #{esim_forward_pallas.1} parent=1 // pred_fallthru
      _
    %v69 = vlaneseq
    %v70 = vshrl.u32 %v69, 7
    %v71 = vlaneseq
    %v72 = vand.u32 %v71, 127
    %s73 = sld [smem:[#allocation3]]
    %v74 = vstv %s73
    %vm75 = vcmp.lt.s32.totalorder %v70, %v74
    %s76 = ssub.s32 %s73, 1
    %v77 = vstv %s76
    %v78 = vsub.s32 %v77, %v70
    %v79 = vsel %vm75, %v78, %v70
    %vm80 = vcmp.eq.s32.totalorder %v72, %v79
    %v81 = vsel %vm80, 1, 0
    %v82 = vcvt.s32.f32 %v81
    %v83 = vsel %vm75, 1, 0
    %v84 = vcvt.s32.f32 %v83
    %s85 = sld [smem:[#allocation4]]
    %v86 = vstv %s85
    %vm87 = vcmp.lt.s32.totalorder %v70, %v86
    %s88 = ssub.s32 %s85, 1
    %v89 = vstv %s88
    %v90 = vsub.s32 %v89, %v70
    %v91 = vsel %vm87, %v90, %v70
    %vm92 = vcmp.eq.s32.totalorder %v72, %v91
    %v93 = vsel %vm92, 1, 0
    %v94 = vcvt.s32.f32 %v93
    %v95 = vsel %vm87, 1, 0
    %v96 = vcvt.s32.f32 %v95
    %s97 = sld [smem:[#allocation3 + $0x1]]
    %v98 = vstv %s97
    %vm99 = vcmp.lt.s32.totalorder %v70, %v98
    %s100 = ssub.s32 %s97, 1
    %v101 = vstv %s100
    %v102 = vsub.s32 %v101, %v70
    %v103 = vsel %vm99, %v102, %v70
    %vm104 = vcmp.eq.s32.totalorder %v72, %v103
    %v105 = vsel %vm104, 1, 0
    %v106 = vcvt.s32.f32 %v105
    %v107 = vsel %vm99, 1, 0
    %v108 = vcvt.s32.f32 %v107
    %s109 = sld [smem:[#allocation4 + $0x1]]
    %v110 = vstv %s109
    %vm111 = vcmp.lt.s32.totalorder %v70, %v110
    %s112 = ssub.s32 %s109, 1
    %v113 = vstv %s112
    %v114 = vsub.s32 %v113, %v70
    %v115 = vsel %vm111, %v114, %v70
    %vm116 = vcmp.eq.s32.totalorder %v72, %v115
    %v117 = vsel %vm116, 1, 0
    %v118 = vcvt.s32.f32 %v117
    %v119 = vsel %vm111, 1, 0
    %v120 = vcvt.s32.f32 %v119
    %vm121 = vcmp.lt.s32.totalorder %v70, 4
    %v122 = vsel %vm121, 1, 0
    %v123 = vcvt.s32.f32 %v122
    %v124 = vsub.f32 1.0, %v123
    %v125 = vld [vmem:[%s2] sm:$0xff]
    %s126 = scalar_lea.vmem %s2, 8
    %v127 = vld [vmem:[%s126] sm:$0xff]
    %v128 = vld [vmem:[%s3] sm:$0xff]
    %s129 = scalar_lea.vmem %s3, 8
    %v130 = vld [vmem:[%s129] sm:$0xff]
    %vm131 = vcmask 64512
    %v133 = vsel %vm131, %v82, 0
    %135 = vmatpush.msra.mxu0 0.0
    %136 = vmatpush.msra.mxu0 0.0
    %137 = vmatpush.msra.mxu0 0.0
    %138 = vmatpush.msra.mxu0 0.0
    %139 = vmatpush.msra.mxu0 0.0
    %140 = vmatpush.msra.mxu0 0.0
    %141 = vmatpush.msra.mxu0 0.0
    %142 = vmatpush.msra.mxu0 0.0
    %143 = vmatpush.msra.mxu0 0.0
    %144 = vmatpush.msra.mxu0 0.0
    %145 = vmatpush.msra.mxu0 0.0
    %146 = vmatpush.msra.mxu0 0.0
    %147 = vmatpush.msra.mxu0 0.0
    %148 = vmatpush.msra.mxu0 0.0
    %149 = vmatpush.msra.mxu0 0.0
    %150 = vmatpush.msra.mxu0 %v125
    %151 = vmatmul.f32.gmra.mxu0 %v133
    %v152 = vpop.f32.mrf.mxu0
    %v153 = vadd.f32 0.0, %v152
    %154 = vdwg.mxu0
    %v156 = vsel %vm131, %v106, 0
    %158 = vmatpush.msra.mxu0 0.0
    %159 = vmatpush.msra.mxu0 0.0
    %160 = vmatpush.msra.mxu0 0.0
    %161 = vmatpush.msra.mxu0 0.0
    %162 = vmatpush.msra.mxu0 0.0
    %163 = vmatpush.msra.mxu0 0.0
    %164 = vmatpush.msra.mxu0 0.0
    %165 = vmatpush.msra.mxu0 0.0
    %166 = vmatpush.msra.mxu0 0.0
    %167 = vmatpush.msra.mxu0 0.0
    %168 = vmatpush.msra.mxu0 0.0
    %169 = vmatpush.msra.mxu0 0.0
    %170 = vmatpush.msra.mxu0 0.0
    %171 = vmatpush.msra.mxu0 0.0
    %172 = vmatpush.msra.mxu0 0.0
    %173 = vmatpush.msra.mxu0 %v127
    %174 = vmatmul.f32.gmra.mxu0 %v156
    %v175 = vpop.f32.mrf.mxu0
    %v176 = vadd.f32 0.0, %v175
    %177 = vdwg.mxu0
    %v179 = vsel %vm131, %v94, 0
    %181 = vmatpush.msra.mxu0 0.0
    %182 = vmatpush.msra.mxu0 0.0
    %183 = vmatpush.msra.mxu0 0.0
    %184 = vmatpush.msra.mxu0 0.0
    %185 = vmatpush.msra.mxu0 0.0
    %186 = vmatpush.msra.mxu0 0.0
    %187 = vmatpush.msra.mxu0 0.0
    %188 = vmatpush.msra.mxu0 0.0
    %189 = vmatpush.msra.mxu0 0.0
    %190 = vmatpush.msra.mxu0 0.0
    %191 = vmatpush.msra.mxu0 0.0
    %192 = vmatpush.msra.mxu0 0.0
    %193 = vmatpush.msra.mxu0 0.0
    %194 = vmatpush.msra.mxu0 0.0
    %195 = vmatpush.msra.mxu0 0.0
    %196 = vmatpush.msra.mxu0 %v128
    %197 = vmatmul.f32.gmra.mxu0 %v179
    %v198 = vpop.f32.mrf.mxu0
    %v199 = vadd.f32 0.0, %v198
    %200 = vdwg.mxu0
    %v202 = vsel %vm131, %v118, 0
    %204 = vmatpush.msra.mxu0 0.0
    %205 = vmatpush.msra.mxu0 0.0
    %206 = vmatpush.msra.mxu0 0.0
    %207 = vmatpush.msra.mxu0 0.0
    %208 = vmatpush.msra.mxu0 0.0
    %209 = vmatpush.msra.mxu0 0.0
    %210 = vmatpush.msra.mxu0 0.0
    %211 = vmatpush.msra.mxu0 0.0
    %212 = vmatpush.msra.mxu0 0.0
    %213 = vmatpush.msra.mxu0 0.0
    %214 = vmatpush.msra.mxu0 0.0
    %215 = vmatpush.msra.mxu0 0.0
    %216 = vmatpush.msra.mxu0 0.0
    %217 = vmatpush.msra.mxu0 0.0
    %218 = vmatpush.msra.mxu0 0.0
    %219 = vmatpush.msra.mxu0 %v130
    %220 = vmatmul.f32.gmra.mxu0 %v202
    %v221 = vpop.f32.mrf.mxu0
    %v222 = vadd.f32 0.0, %v221
    %223 = vdwg.mxu0
    %v224 = vld [vmem:[%s6] sm:$0xff]
    %v225 = vld [vmem:[%s6 + $0x8] sm:$0xff]
    %v226 = vld [vmem:[%s6 + $0x10] sm:$0xff]
    %v227 = vld [vmem:[%s6 + $0x18] sm:$0xff]
    %vm228 = vcmask 261120
    %v230 = vsel %vm228, %v125, 0
    %v233 = vsel %vm228, %v127, 0
    %v236 = vsel %vm228, %v128, 0
    %v239 = vsel %vm228, %v130, 0
    %241 = vmatpush.msra.mxu0 0.0
    %242 = vmatpush.msra.mxu0 0.0
    %243 = vmatpush.msra.mxu0 0.0
    %244 = vmatpush.msra.mxu0 0.0
    %245 = vmatpush.msra.mxu0 0.0
    %246 = vmatpush.msra.mxu0 0.0
    %247 = vmatpush.msra.mxu0 0.0
    %248 = vmatpush.msra.mxu0 0.0
    %249 = vmatpush.msra.mxu0 0.0
    %250 = vmatpush.msra.mxu0 0.0
    %251 = vmatpush.msra.mxu0 0.0
    %252 = vmatpush.msra.mxu0 0.0
    %253 = vmatpush.msra.mxu0 %v227
    %254 = vmatpush.msra.mxu0 %v226
    %255 = vmatpush.msra.mxu0 %v225
    %256 = vmatpush.msra.mxu0 %v224
    %257 = vmatmul.f32.gmra.mxu0 %v230
    %v258 = vpop.f32.mrf.mxu0
    %v259 = vadd.f32 0.0, %v258
    %260 = vmatmul.f32.gmra.mxu0 %v233
    %v261 = vpop.f32.mrf.mxu0
    %v262 = vadd.f32 0.0, %v261
    %263 = vmatmul.f32.gmra.mxu0 %v236
    %v264 = vpop.f32.mrf.mxu0
    %v265 = vadd.f32 0.0, %v264
    %266 = vmatmul.f32.gmra.mxu0 %v239
    %v267 = vpop.f32.mrf.mxu0
    %v268 = vadd.f32 0.0, %v267
    %269 = vdwg.mxu0
    %v270 = vld [vmem:[%s7] sm:$0xff]
    %v271 = vld [vmem:[%s7 + $0x8] sm:$0xff]
    %v272 = vld [vmem:[%s7 + $0x10] sm:$0xff]
    %v273 = vld [vmem:[%s7 + $0x18] sm:$0xff]
    %v275 = vsel %vm228, %v153, 0
    %v278 = vsel %vm228, %v176, 0
    %v281 = vsel %vm228, %v199, 0
    %v284 = vsel %vm228, %v222, 0
    %286 = vmatpush.msra.mxu0 0.0
    %287 = vmatpush.msra.mxu0 0.0
    %288 = vmatpush.msra.mxu0 0.0
    %289 = vmatpush.msra.mxu0 0.0
    %290 = vmatpush.msra.mxu0 0.0
    %291 = vmatpush.msra.mxu0 0.0
    %292 = vmatpush.msra.mxu0 0.0
    %293 = vmatpush.msra.mxu0 0.0
    %294 = vmatpush.msra.mxu0 0.0
    %295 = vmatpush.msra.mxu0 0.0
    %296 = vmatpush.msra.mxu0 0.0
    %297 = vmatpush.msra.mxu0 0.0
    %298 = vmatpush.msra.mxu0 %v273
    %299 = vmatpush.msra.mxu0 %v272
    %300 = vmatpush.msra.mxu0 %v271
    %301 = vmatpush.msra.mxu0 %v270
    %302 = vmatmul.f32.gmra.mxu0 %v275
    %v303 = vpop.f32.mrf.mxu0
    %v304 = vadd.f32 0.0, %v303
    %305 = vmatmul.f32.gmra.mxu0 %v278
    %v306 = vpop.f32.mrf.mxu0
    %v307 = vadd.f32 0.0, %v306
    %308 = vmatmul.f32.gmra.mxu0 %v281
    %v309 = vpop.f32.mrf.mxu0
    %v310 = vadd.f32 0.0, %v309
    %311 = vmatmul.f32.gmra.mxu0 %v284
    %v312 = vpop.f32.mrf.mxu0
    %v313 = vadd.f32 0.0, %v312
    %314 = vdwg.mxu0
    %v315 = vld [vmem:[%s9] sm:$0xff]
    %v316 = vld [vmem:[%s8] sm:$0xff]
    %v317 = vld [vmem:[%s8 + $0x8] sm:$0xff]
    %v318 = vld [vmem:[%s8 + $0x10] sm:$0xff]
    %v319 = vld [vmem:[%s8 + $0x18] sm:$0xff]
    %v320 = vld [vmem:[%s8 + $0x20] sm:$0xff]
    %v321 = vld [vmem:[%s8 + $0x28] sm:$0xff]
    %v322 = vld [vmem:[%s8 + $0x30] sm:$0xff]
    %v323 = vld [vmem:[%s8 + $0x38] sm:$0xff]
    %v325 = vrot.slane %v262, 7
    %v328 = vrot.slane %v265, 6
    %v331 = vrot.slane %v268, 5
    %v334 = vrot.slane %v304, 4
    %v337 = vrot.slane %v307, 3
    %v340 = vrot.slane %v310, 2
    %v343 = vrot.slane %v313, 1
    %vm345 = vcmask 1040384
    %v346 = vsel %vm345, %v259, %v325
    %vm347 = vcmask 1041408
    %v348 = vsel %vm347, %v346, %v328
    %vm349 = vcmask 1042432
    %v350 = vsel %vm349, %v348, %v331
    %vm351 = vcmask 1043456
    %v352 = vsel %vm351, %v350, %v334
    %vm353 = vcmask 1044480
    %v354 = vsel %vm353, %v352, %v337
    %vm355 = vcmask 1045504
    %v356 = vsel %vm355, %v354, %v340
    %vm357 = vcmask 1046528
    %v358 = vsel %vm357, %v356, %v343
    %v359 = vadd.f32 %v358, %v315
    %v361 = vrot.slane %v259, 1
    %v363 = vrot.slane %v265, 7
    %v365 = vrot.slane %v268, 6
    %v367 = vrot.slane %v304, 5
    %v369 = vrot.slane %v307, 4
    %v371 = vrot.slane %v310, 3
    %v373 = vrot.slane %v313, 2
    %v375 = vsel %vm345, %v361, %v262
    %v376 = vsel %vm347, %v375, %v363
    %v377 = vsel %vm349, %v376, %v365
    %v378 = vsel %vm351, %v377, %v367
    %v379 = vsel %vm353, %v378, %v369
    %v380 = vsel %vm355, %v379, %v371
    %v381 = vsel %vm357, %v380, %v373
    %v382 = vadd.f32 %v381, %v315
    %v383 = vrot.slane %v259, 2
    %v385 = vrot.slane %v262, 1
    %v387 = vrot.slane %v268, 7
    %v389 = vrot.slane %v304, 6
    %v391 = vrot.slane %v307, 5
    %v393 = vrot.slane %v310, 4
    %v395 = vrot.slane %v313, 3
    %v397 = vsel %vm345, %v383, %v385
    %v398 = vsel %vm347, %v397, %v265
    %v399 = vsel %vm349, %v398, %v387
    %v400 = vsel %vm351, %v399, %v389
    %v401 = vsel %vm353, %v400, %v391
    %v402 = vsel %vm355, %v401, %v393
    %v403 = vsel %vm357, %v402, %v395
    %v404 = vadd.f32 %v403, %v315
    %v405 = vrot.slane %v259, 3
    %v407 = vrot.slane %v262, 2
    %v409 = vrot.slane %v265, 1
    %v411 = vrot.slane %v304, 7
    %v413 = vrot.slane %v307, 6
    %v415 = vrot.slane %v310, 5
    %v417 = vrot.slane %v313, 4
    %v419 = vsel %vm345, %v405, %v407
    %v420 = vsel %vm347, %v419, %v409
    %v421 = vsel %vm349, %v420, %v268
    %v422 = vsel %vm351, %v421, %v411
    %v423 = vsel %vm353, %v422, %v413
    %v424 = vsel %vm355, %v423, %v415
    %v425 = vsel %vm357, %v424, %v417
    %v426 = vadd.f32 %v425, %v315
    %v427 = vrot.slane %v259, 4
    %v429 = vrot.slane %v262, 3
    %v431 = vrot.slane %v265, 2
    %v433 = vrot.slane %v268, 1
    %v435 = vrot.slane %v307, 7
    %v437 = vrot.slane %v310, 6
    %v439 = vrot.slane %v313, 5
    %v441 = vsel %vm345, %v427, %v429
    %v442 = vsel %vm347, %v441, %v431
    %v443 = vsel %vm349, %v442, %v433
    %v444 = vsel %vm351, %v443, %v304
    %v445 = vsel %vm353, %v444, %v435
    %v446 = vsel %vm355, %v445, %v437
    %v447 = vsel %vm357, %v446, %v439
    %v448 = vadd.f32 %v447, %v315
    %v449 = vrot.slane %v259, 5
    %v451 = vrot.slane %v262, 4
    %v453 = vrot.slane %v265, 3
    %v455 = vrot.slane %v268, 2
    %v457 = vrot.slane %v304, 1
    %v459 = vrot.slane %v310, 7
    %v461 = vrot.slane %v313, 6
    %v463 = vsel %vm345, %v449, %v451
    %v464 = vsel %vm347, %v463, %v453
    %v465 = vsel %vm349, %v464, %v455
    %v466 = vsel %vm351, %v465, %v457
    %v467 = vsel %vm353, %v466, %v307
    %v468 = vsel %vm355, %v467, %v459
    %v469 = vsel %vm357, %v468, %v461
    %v470 = vadd.f32 %v469, %v315
    %v471 = vrot.slane %v259, 6
    %v473 = vrot.slane %v262, 5
    %v475 = vrot.slane %v265, 4
    %v477 = vrot.slane %v268, 3
    %v479 = vrot.slane %v304, 2
    %v481 = vrot.slane %v307, 1
    %v483 = vrot.slane %v313, 7
    %v485 = vsel %vm345, %v471, %v473
    %v486 = vsel %vm347, %v485, %v475
    %v487 = vsel %vm349, %v486, %v477
    %v488 = vsel %vm351, %v487, %v479
    %v489 = vsel %vm353, %v488, %v481
    %v490 = vsel %vm355, %v489, %v310
    %v491 = vsel %vm357, %v490, %v483
    %v492 = vadd.f32 %v491, %v315
    %v493 = vrot.slane %v259, 7
    %v495 = vrot.slane %v262, 6
    %v497 = vrot.slane %v265, 5
    %v499 = vrot.slane %v268, 4
    %v501 = vrot.slane %v304, 3
    %v503 = vrot.slane %v307, 2
    %v505 = vrot.slane %v310, 1
    %v507 = vsel %vm345, %v493, %v495
    %v508 = vsel %vm347, %v507, %v497
    %v509 = vsel %vm349, %v508, %v499
    %v510 = vsel %vm351, %v509, %v501
    %v511 = vsel %vm353, %v510, %v503
    %v512 = vsel %vm355, %v511, %v505
    %v513 = vsel %vm357, %v512, %v313
    %v514 = vadd.f32 %v513, %v315
    %v515 = vmul.f32 %v123, 0.0
    %v516 = vmul.f32 %v124, 0.0
    %v517 = vsel %vm228, %v515, %v516
    %vm518 = vcmask 523264
    %v520 = vsel %vm518, %v517, 0
    %522 = vmatpush.msra.mxu0 0.0
    %523 = vmatpush.msra.mxu0 0.0
    %524 = vmatpush.msra.mxu0 0.0
    %525 = vmatpush.msra.mxu0 0.0
    %526 = vmatpush.msra.mxu0 0.0
    %527 = vmatpush.msra.mxu0 0.0
    %528 = vmatpush.msra.mxu0 0.0
    %529 = vmatpush.msra.mxu0 0.0
    %530 = vmatpush.msra.mxu0 %v323
    %531 = vmatpush.msra.mxu0 %v322
    %532 = vmatpush.msra.mxu0 %v321
    %533 = vmatpush.msra.mxu0 %v320
    %534 = vmatpush.msra.mxu0 %v319
    %535 = vmatpush.msra.mxu0 %v318
    %536 = vmatpush.msra.mxu0 %v317
    %537 = vmatpush.msra.mxu0 %v316
    %538 = vmatmul.f32.gmra.mxu0 %v520
    %v539 = vpop.f32.mrf.mxu0
    %v540 = vadd.f32 0.0, %v539
    %541 = vdwg.mxu0
    %v542 = vadd.f32 %v359, %v540
    %v543 = vxor.u32 %v542, 2147483648
    %v544 = vmul.f32 %v543, 1.442695
    %v545 = vpow.pop %v544
    %v546 = vadd.f32 %v545, 1.0
    %v547 = vrcp.pop %v546
    %v548 = vmul.f32 %v546, %v547
    %v549 = vsub.f32 1.0, %v548
    %v550 = vmul.f32 %v547, %v549
    %v551 = vadd.f32 %v547, %v550
    %vm552 = vweird.f32 %v546
    %vm553 = vweird.f32 %v547
    %vm554 = vmor %vm552, %vm553
    %v555 = vsel %vm554, %v547, %v551
    %v556 = vand.u32 2147483647, %v546
    %vm557 = vcmp.eq.f32.partialorder %v556, 8.507059e+37
    %v558 = vand.u32 %v546, 2147483648
    %v559 = vor.u32 1.1754944e-38, %v558
    %v560 = vsel %vm557, %v559, %v555
    %v561 = vmul.f32 1.0, %v560
    %v562 = vtanh.pop %v542
    %v563 = vmul.f32 %v561, 0.0
    %565 = vrot.lane.b32.xlu0 %v562, 64
    %v566 = vpop.permute.xlu0 %565
    %v568 = vmul.f32 %v561, %v566
    %570 = vrot.lane.b32.xlu0 %v568, 32
    %v571 = vpop.permute.xlu0 %570
    %v573 = vadd.f32 %v563, %v571
    %v574 = vtanh.pop %v573
    %576 = vrot.lane.b32.xlu0 %v574, 64
    %v577 = vpop.permute.xlu0 %576
    %v579 = vmul.f32 %v561, %v577
    %v580 = vmul.f32 %v579, %v123
    %v581 = vmul.f32 %v579, %v124
    %583 = vrot.lane.b32.xlu0 %v580, 32
    %v584 = vpop.permute.xlu0 %583
    %587 = vrot.lane.b32.xlu0 %v581, 64
    %v588 = vpop.permute.xlu0 %587
    %v590 = vsel %vm228, %v584, %v588
    %v592 = vsel %vm518, %v590, 0
    %594 = vmatpush.msra.mxu0 0.0
    %595 = vmatpush.msra.mxu0 0.0
    %596 = vmatpush.msra.mxu0 0.0
    %597 = vmatpush.msra.mxu0 0.0
    %598 = vmatpush.msra.mxu0 0.0
    %599 = vmatpush.msra.mxu0 0.0
    %600 = vmatpush.msra.mxu0 0.0
    %601 = vmatpush.msra.mxu0 0.0
    %602 = vmatpush.msra.mxu0 %v323
    %603 = vmatpush.msra.mxu0 %v322
    %604 = vmatpush.msra.mxu0 %v321
    %605 = vmatpush.msra.mxu0 %v320
    %606 = vmatpush.msra.mxu0 %v319
    %607 = vmatpush.msra.mxu0 %v318
    %608 = vmatpush.msra.mxu0 %v317
    %609 = vmatpush.msra.mxu0 %v316
    %610 = vmatmul.f32.gmra.mxu0 %v592
    %v611 = vpop.f32.mrf.mxu0
    %v612 = vadd.f32 0.0, %v611
    %613 = vdwg.mxu0
    %v614 = vadd.f32 %v382, %v612
    %v615 = vxor.u32 %v614, 2147483648
    %v616 = vmul.f32 %v615, 1.442695
    %v617 = vpow.pop %v616
    %v618 = vadd.f32 %v617, 1.0
    %v619 = vrcp.pop %v618
    %v620 = vmul.f32 %v618, %v619
    %v621 = vsub.f32 1.0, %v620
    %v622 = vmul.f32 %v619, %v621
    %v623 = vadd.f32 %v619, %v622
    %vm624 = vweird.f32 %v618
    %vm625 = vweird.f32 %v619
    %vm626 = vmor %vm624, %vm625
    %v627 = vsel %vm626, %v619, %v623
    %v628 = vand.u32 2147483647, %v618
    %vm629 = vcmp.eq.f32.partialorder %v628, 8.507059e+37
    %v630 = vand.u32 %v618, 2147483648
    %v631 = vor.u32 1.1754944e-38, %v630
    %v632 = vsel %vm629, %v631, %v627
    %v633 = vmul.f32 1.0, %v632
    %v634 = vtanh.pop %v614
    %v635 = vmul.f32 %v633, %v573
    %637 = vrot.lane.b32.xlu0 %v634, 64
    %v638 = vpop.permute.xlu0 %637
    %v640 = vmul.f32 %v633, %v638
    %642 = vrot.lane.b32.xlu0 %v640, 32
    %v643 = vpop.permute.xlu0 %642
    %v645 = vadd.f32 %v635, %v643
    %v646 = vtanh.pop %v645
    %648 = vrot.lane.b32.xlu0 %v646, 64
    %v649 = vpop.permute.xlu0 %648
    %v651 = vmul.f32 %v633, %v649
    %v652 = vmul.f32 %v651, %v123
    %v653 = vmul.f32 %v651, %v124
    %655 = vrot.lane.b32.xlu0 %v652, 32
    %v656 = vpop.permute.xlu0 %655
    %659 = vrot.lane.b32.xlu0 %v653, 64
    %v660 = vpop.permute.xlu0 %659
    %v662 = vsel %vm228, %v656, %v660
    %v664 = vsel %vm518, %v662, 0
    %666 = vmatpush.msra.mxu0 0.0
    %667 = vmatpush.msra.mxu0 0.0
    %668 = vmatpush.msra.mxu0 0.0
    %669 = vmatpush.msra.mxu0 0.0
    %670 = vmatpush.msra.mxu0 0.0
    %671 = vmatpush.msra.mxu0 0.0
    %672 = vmatpush.msra.mxu0 0.0
    %673 = vmatpush.msra.mxu0 0.0
    %674 = vmatpush.msra.mxu0 %v323
    %675 = vmatpush.msra.mxu0 %v322
    %676 = vmatpush.msra.mxu0 %v321
    %677 = vmatpush.msra.mxu0 %v320
    %678 = vmatpush.msra.mxu0 %v319
    %679 = vmatpush.msra.mxu0 %v318
    %680 = vmatpush.msra.mxu0 %v317
    %681 = vmatpush.msra.mxu0 %v316
    %682 = vmatmul.f32.gmra.mxu0 %v664
    %v683 = vpop.f32.mrf.mxu0
    %v684 = vadd.f32 0.0, %v683
    %685 = vdwg.mxu0
    %v686 = vadd.f32 %v404, %v684
    %v687 = vxor.u32 %v686, 2147483648
    %v688 = vmul.f32 %v687, 1.442695
    %v689 = vpow.pop %v688
    %v690 = vadd.f32 %v689, 1.0
    %v691 = vrcp.pop %v690
    %v692 = vmul.f32 %v690, %v691
    %v693 = vsub.f32 1.0, %v692
    %v694 = vmul.f32 %v691, %v693
    %v695 = vadd.f32 %v691, %v694
    %vm696 = vweird.f32 %v690
    %vm697 = vweird.f32 %v691
    %vm698 = vmor %vm696, %vm697
    %v699 = vsel %vm698, %v691, %v695
    %v700 = vand.u32 2147483647, %v690
    %vm701 = vcmp.eq.f32.partialorder %v700, 8.507059e+37
    %v702 = vand.u32 %v690, 2147483648
    %v703 = vor.u32 1.1754944e-38, %v702
    %v704 = vsel %vm701, %v703, %v699
    %v705 = vmul.f32 1.0, %v704
    %v706 = vtanh.pop %v686
    %v707 = vmul.f32 %v705, %v645
    %709 = vrot.lane.b32.xlu0 %v706, 64
    %v710 = vpop.permute.xlu0 %709
    %v712 = vmul.f32 %v705, %v710
    %714 = vrot.lane.b32.xlu0 %v712, 32
    %v715 = vpop.permute.xlu0 %714
    %v717 = vadd.f32 %v707, %v715
    %v718 = vtanh.pop %v717
    %720 = vrot.lane.b32.xlu0 %v718, 64
    %v721 = vpop.permute.xlu0 %720
    %v723 = vmul.f32 %v705, %v721
    %v724 = vmul.f32 %v723, %v123
    %v725 = vmul.f32 %v723, %v124
    %727 = vrot.lane.b32.xlu0 %v724, 32
    %v728 = vpop.permute.xlu0 %727
    %731 = vrot.lane.b32.xlu0 %v725, 64
    %v732 = vpop.permute.xlu0 %731
    %v734 = vsel %vm228, %v728, %v732
    %v736 = vsel %vm518, %v734, 0
    %738 = vmatpush.msra.mxu0 0.0
    %739 = vmatpush.msra.mxu0 0.0
    %740 = vmatpush.msra.mxu0 0.0
    %741 = vmatpush.msra.mxu0 0.0
    %742 = vmatpush.msra.mxu0 0.0
    %743 = vmatpush.msra.mxu0 0.0
    %744 = vmatpush.msra.mxu0 0.0
    %745 = vmatpush.msra.mxu0 0.0
    %746 = vmatpush.msra.mxu0 %v323
    %747 = vmatpush.msra.mxu0 %v322
    %748 = vmatpush.msra.mxu0 %v321
    %749 = vmatpush.msra.mxu0 %v320
    %750 = vmatpush.msra.mxu0 %v319
    %751 = vmatpush.msra.mxu0 %v318
    %752 = vmatpush.msra.mxu0 %v317
    %753 = vmatpush.msra.mxu0 %v316
    %754 = vmatmul.f32.gmra.mxu0 %v736
    %v755 = vpop.f32.mrf.mxu0
    %v756 = vadd.f32 0.0, %v755
    %757 = vdwg.mxu0
    %v758 = vadd.f32 %v426, %v756
    %v759 = vxor.u32 %v758, 2147483648
    %v760 = vmul.f32 %v759, 1.442695
    %v761 = vpow.pop %v760
    %v762 = vadd.f32 %v761, 1.0
    %v763 = vrcp.pop %v762
    %v764 = vmul.f32 %v762, %v763
    %v765 = vsub.f32 1.0, %v764
    %v766 = vmul.f32 %v763, %v765
    %v767 = vadd.f32 %v763, %v766
    %vm768 = vweird.f32 %v762
    %vm769 = vweird.f32 %v763
    %vm770 = vmor %vm768, %vm769
    %v771 = vsel %vm770, %v763, %v767
    %v772 = vand.u32 2147483647, %v762
    %vm773 = vcmp.eq.f32.partialorder %v772, 8.507059e+37
    %v774 = vand.u32 %v762, 2147483648
    %v775 = vor.u32 1.1754944e-38, %v774
    %v776 = vsel %vm773, %v775, %v771
    %v777 = vmul.f32 1.0, %v776
    %v778 = vtanh.pop %v758
    %v779 = vmul.f32 %v777, %v717
    %781 = vrot.lane.b32.xlu0 %v778, 64
    %v782 = vpop.permute.xlu0 %781
    %v784 = vmul.f32 %v777, %v782
    %786 = vrot.lane.b32.xlu0 %v784, 32
    %v787 = vpop.permute.xlu0 %786
    %v789 = vadd.f32 %v779, %v787
    %v790 = vtanh.pop %v789
    %792 = vrot.lane.b32.xlu0 %v790, 64
    %v793 = vpop.permute.xlu0 %792
    %v795 = vmul.f32 %v777, %v793
    %v796 = vmul.f32 %v795, %v123
    %v797 = vmul.f32 %v795, %v124
    %799 = vrot.lane.b32.xlu0 %v796, 32
    %v800 = vpop.permute.xlu0 %799
    %803 = vrot.lane.b32.xlu0 %v797, 64
    %v804 = vpop.permute.xlu0 %803
    %v806 = vsel %vm228, %v800, %v804
    %v808 = vsel %vm518, %v806, 0
    %810 = vmatpush.msra.mxu0 0.0
    %811 = vmatpush.msra.mxu0 0.0
    %812 = vmatpush.msra.mxu0 0.0
    %813 = vmatpush.msra.mxu0 0.0
    %814 = vmatpush.msra.mxu0 0.0
    %815 = vmatpush.msra.mxu0 0.0
    %816 = vmatpush.msra.mxu0 0.0
    %817 = vmatpush.msra.mxu0 0.0
    %818 = vmatpush.msra.mxu0 %v323
    %819 = vmatpush.msra.mxu0 %v322
    %820 = vmatpush.msra.mxu0 %v321
    %821 = vmatpush.msra.mxu0 %v320
    %822 = vmatpush.msra.mxu0 %v319
    %823 = vmatpush.msra.mxu0 %v318
    %824 = vmatpush.msra.mxu0 %v317
    %825 = vmatpush.msra.mxu0 %v316
    %826 = vmatmul.f32.gmra.mxu0 %v808
    %v827 = vpop.f32.mrf.mxu0
    %v828 = vadd.f32 0.0, %v827
    %829 = vdwg.mxu0
    %v830 = vadd.f32 %v448, %v828
    %v831 = vxor.u32 %v830, 2147483648
    %v832 = vmul.f32 %v831, 1.442695
    %v833 = vpow.pop %v832
    %v834 = vadd.f32 %v833, 1.0
    %v835 = vrcp.pop %v834
    %v836 = vmul.f32 %v834, %v835
    %v837 = vsub.f32 1.0, %v836
    %v838 = vmul.f32 %v835, %v837
    %v839 = vadd.f32 %v835, %v838
    %vm840 = vweird.f32 %v834
    %vm841 = vweird.f32 %v835
    %vm842 = vmor %vm840, %vm841
    %v843 = vsel %vm842, %v835, %v839
    %v844 = vand.u32 2147483647, %v834
    %vm845 = vcmp.eq.f32.partialorder %v844, 8.507059e+37
    %v846 = vand.u32 %v834, 2147483648
    %v847 = vor.u32 1.1754944e-38, %v846
    %v848 = vsel %vm845, %v847, %v843
    %v849 = vmul.f32 1.0, %v848
    %v850 = vtanh.pop %v830
    %v851 = vmul.f32 %v849, %v789
    %853 = vrot.lane.b32.xlu0 %v850, 64
    %v854 = vpop.permute.xlu0 %853
    %v856 = vmul.f32 %v849, %v854
    %858 = vrot.lane.b32.xlu0 %v856, 32
    %v859 = vpop.permute.xlu0 %858
    %v861 = vadd.f32 %v851, %v859
    %v862 = vtanh.pop %v861
    %864 = vrot.lane.b32.xlu0 %v862, 64
    %v865 = vpop.permute.xlu0 %864
    %v867 = vmul.f32 %v849, %v865
    %v868 = vmul.f32 %v867, %v123
    %v869 = vmul.f32 %v867, %v124
    %871 = vrot.lane.b32.xlu0 %v868, 32
    %v872 = vpop.permute.xlu0 %871
    %875 = vrot.lane.b32.xlu0 %v869, 64
    %v876 = vpop.permute.xlu0 %875
    %v878 = vsel %vm228, %v872, %v876
    %v880 = vsel %vm518, %v878, 0
    %882 = vmatpush.msra.mxu0 0.0
    %883 = vmatpush.msra.mxu0 0.0
    %884 = vmatpush.msra.mxu0 0.0
    %885 = vmatpush.msra.mxu0 0.0
    %886 = vmatpush.msra.mxu0 0.0
    %887 = vmatpush.msra.mxu0 0.0
    %888 = vmatpush.msra.mxu0 0.0
    %889 = vmatpush.msra.mxu0 0.0
    %890 = vmatpush.msra.mxu0 %v323
    %891 = vmatpush.msra.mxu0 %v322
    %892 = vmatpush.msra.mxu0 %v321
    %893 = vmatpush.msra.mxu0 %v320
    %894 = vmatpush.msra.mxu0 %v319
    %895 = vmatpush.msra.mxu0 %v318
    %896 = vmatpush.msra.mxu0 %v317
    %897 = vmatpush.msra.mxu0 %v316
    %898 = vmatmul.f32.gmra.mxu0 %v880
    %v899 = vpop.f32.mrf.mxu0
    %v900 = vadd.f32 0.0, %v899
    %901 = vdwg.mxu0
    %v902 = vadd.f32 %v470, %v900
    %v903 = vxor.u32 %v902, 2147483648
    %v904 = vmul.f32 %v903, 1.442695
    %v905 = vpow.pop %v904
    %v906 = vadd.f32 %v905, 1.0
    %v907 = vrcp.pop %v906
    %v908 = vmul.f32 %v906, %v907
    %v909 = vsub.f32 1.0, %v908
    %v910 = vmul.f32 %v907, %v909
    %v911 = vadd.f32 %v907, %v910
    %vm912 = vweird.f32 %v906
    %vm913 = vweird.f32 %v907
    %vm914 = vmor %vm912, %vm913
    %v915 = vsel %vm914, %v907, %v911
    %v916 = vand.u32 2147483647, %v906
    %vm917 = vcmp.eq.f32.partialorder %v916, 8.507059e+37
    %v918 = vand.u32 %v906, 2147483648
    %v919 = vor.u32 1.1754944e-38, %v918
    %v920 = vsel %vm917, %v919, %v915
    %v921 = vmul.f32 1.0, %v920
    %v922 = vtanh.pop %v902
    %v923 = vmul.f32 %v921, %v861
    %925 = vrot.lane.b32.xlu0 %v922, 64
    %v926 = vpop.permute.xlu0 %925
    %v928 = vmul.f32 %v921, %v926
    %930 = vrot.lane.b32.xlu0 %v928, 32
    %v931 = vpop.permute.xlu0 %930
    %v933 = vadd.f32 %v923, %v931
    %v934 = vtanh.pop %v933
    %936 = vrot.lane.b32.xlu0 %v934, 64
    %v937 = vpop.permute.xlu0 %936
    %v939 = vmul.f32 %v921, %v937
    %v940 = vmul.f32 %v939, %v123
    %v941 = vmul.f32 %v939, %v124
    %943 = vrot.lane.b32.xlu0 %v940, 32
    %v944 = vpop.permute.xlu0 %943
    %947 = vrot.lane.b32.xlu0 %v941, 64
    %v948 = vpop.permute.xlu0 %947
    %v950 = vsel %vm228, %v944, %v948
    %v952 = vsel %vm518, %v950, 0
    %954 = vmatpush.msra.mxu0 0.0
    %955 = vmatpush.msra.mxu0 0.0
    %956 = vmatpush.msra.mxu0 0.0
    %957 = vmatpush.msra.mxu0 0.0
    %958 = vmatpush.msra.mxu0 0.0
    %959 = vmatpush.msra.mxu0 0.0
    %960 = vmatpush.msra.mxu0 0.0
    %961 = vmatpush.msra.mxu0 0.0
    %962 = vmatpush.msra.mxu0 %v323
    %963 = vmatpush.msra.mxu0 %v322
    %964 = vmatpush.msra.mxu0 %v321
    %965 = vmatpush.msra.mxu0 %v320
    %966 = vmatpush.msra.mxu0 %v319
    %967 = vmatpush.msra.mxu0 %v318
    %968 = vmatpush.msra.mxu0 %v317
    %969 = vmatpush.msra.mxu0 %v316
    %970 = vmatmul.f32.gmra.mxu0 %v952
    %v971 = vpop.f32.mrf.mxu0
    %v972 = vadd.f32 0.0, %v971
    %973 = vdwg.mxu0
    %v974 = vadd.f32 %v492, %v972
    %v975 = vxor.u32 %v974, 2147483648
    %v976 = vmul.f32 %v975, 1.442695
    %v977 = vpow.pop %v976
    %v978 = vadd.f32 %v977, 1.0
    %v979 = vrcp.pop %v978
    %v980 = vmul.f32 %v978, %v979
    %v981 = vsub.f32 1.0, %v980
    %v982 = vmul.f32 %v979, %v981
    %v983 = vadd.f32 %v979, %v982
    %vm984 = vweird.f32 %v978
    %vm985 = vweird.f32 %v979
    %vm986 = vmor %vm984, %vm985
    %v987 = vsel %vm986, %v979, %v983
    %v988 = vand.u32 2147483647, %v978
    %vm989 = vcmp.eq.f32.partialorder %v988, 8.507059e+37
    %v990 = vand.u32 %v978, 2147483648
    %v991 = vor.u32 1.1754944e-38, %v990
    %v992 = vsel %vm989, %v991, %v987
    %v993 = vmul.f32 1.0, %v992
    %v994 = vtanh.pop %v974
    %v995 = vmul.f32 %v993, %v933
    %997 = vrot.lane.b32.xlu0 %v994, 64
    %v998 = vpop.permute.xlu0 %997
    %v1000 = vmul.f32 %v993, %v998
    %1002 = vrot.lane.b32.xlu0 %v1000, 32
    %v1003 = vpop.permute.xlu0 %1002
    %v1005 = vadd.f32 %v995, %v1003
    %v1006 = vtanh.pop %v1005
    %1008 = vrot.lane.b32.xlu0 %v1006, 64
    %v1009 = vpop.permute.xlu0 %1008
    %v1011 = vmul.f32 %v993, %v1009
    %v1012 = vmul.f32 %v1011, %v123
    %v1013 = vmul.f32 %v1011, %v124
    %1015 = vrot.lane.b32.xlu0 %v1012, 32
    %v1016 = vpop.permute.xlu0 %1015
    %1019 = vrot.lane.b32.xlu0 %v1013, 64
    %v1020 = vpop.permute.xlu0 %1019
    %v1022 = vsel %vm228, %v1016, %v1020
    %v1024 = vsel %vm518, %v1022, 0
    %1026 = vmatpush.msra.mxu0 0.0
    %1027 = vmatpush.msra.mxu0 0.0
    %1028 = vmatpush.msra.mxu0 0.0
    %1029 = vmatpush.msra.mxu0 0.0
    %1030 = vmatpush.msra.mxu0 0.0
    %1031 = vmatpush.msra.mxu0 0.0
    %1032 = vmatpush.msra.mxu0 0.0
    %1033 = vmatpush.msra.mxu0 0.0
    %1034 = vmatpush.msra.mxu0 %v323
    %1035 = vmatpush.msra.mxu0 %v322
    %1036 = vmatpush.msra.mxu0 %v321
    %1037 = vmatpush.msra.mxu0 %v320
    %1038 = vmatpush.msra.mxu0 %v319
    %1039 = vmatpush.msra.mxu0 %v318
    %1040 = vmatpush.msra.mxu0 %v317
    %1041 = vmatpush.msra.mxu0 %v316
    %1042 = vmatmul.f32.gmra.mxu0 %v1024
    %v1043 = vpop.f32.mrf.mxu0
    %v1044 = vadd.f32 0.0, %v1043
    %1045 = vdwg.mxu0
    %v1046 = vadd.f32 %v514, %v1044
    %v1047 = vxor.u32 %v1046, 2147483648
    %v1048 = vmul.f32 %v1047, 1.442695
    %v1049 = vpow.pop %v1048
    %v1050 = vadd.f32 %v1049, 1.0
    %v1051 = vrcp.pop %v1050
    %v1052 = vmul.f32 %v1050, %v1051
    %v1053 = vsub.f32 1.0, %v1052
    %v1054 = vmul.f32 %v1051, %v1053
    %v1055 = vadd.f32 %v1051, %v1054
    %vm1056 = vweird.f32 %v1050
    %vm1057 = vweird.f32 %v1051
    %vm1058 = vmor %vm1056, %vm1057
    %v1059 = vsel %vm1058, %v1051, %v1055
    %v1060 = vand.u32 2147483647, %v1050
    %vm1061 = vcmp.eq.f32.partialorder %v1060, 8.507059e+37
    %v1062 = vand.u32 %v1050, 2147483648
    %v1063 = vor.u32 1.1754944e-38, %v1062
    %v1064 = vsel %vm1061, %v1063, %v1059
    %v1065 = vmul.f32 1.0, %v1064
    %v1066 = vtanh.pop %v1046
    %v1067 = vmul.f32 %v1065, %v1005
    %1069 = vrot.lane.b32.xlu0 %v1066, 64
    %v1070 = vpop.permute.xlu0 %1069
    %v1072 = vmul.f32 %v1065, %v1070
    %1074 = vrot.lane.b32.xlu0 %v1072, 32
    %v1075 = vpop.permute.xlu0 %1074
    %v1077 = vadd.f32 %v1067, %v1075
    %v1078 = vtanh.pop %v1077
    %1080 = vrot.lane.b32.xlu0 %v1078, 64
    %v1081 = vpop.permute.xlu0 %1080
    %v1083 = vmul.f32 %v1065, %v1081
    %v1085 = vrot.slane %v651, 7
    %v1088 = vrot.slane %v723, 6
    %v1091 = vrot.slane %v795, 5
    %v1094 = vrot.slane %v867, 4
    %v1097 = vrot.slane %v939, 3
    %v1100 = vrot.slane %v1011, 2
    %v1103 = vrot.slane %v1083, 1
    %v1105 = vsel %vm345, %v579, %v1085
    %v1106 = vsel %vm347, %v1105, %v1088
    %v1107 = vsel %vm349, %v1106, %v1091
    %v1108 = vsel %vm351, %v1107, %v1094
    %v1109 = vsel %vm353, %v1108, %v1097
    %v1110 = vsel %vm355, %v1109, %v1100
    %v1111 = vsel %vm357, %v1110, %v1103
    %v1113 = vrot.slane %v579, 4
    %v1115 = vrot.slane %v651, 3
    %v1117 = vrot.slane %v723, 2
    %v1119 = vrot.slane %v795, 1
    %v1121 = vrot.slane %v939, 7
    %v1123 = vrot.slane %v1011, 6
    %v1125 = vrot.slane %v1083, 5
    %v1127 = vsel %vm345, %v1113, %v1115
    %v1128 = vsel %vm347, %v1127, %v1117
    %v1129 = vsel %vm349, %v1128, %v1119
    %v1130 = vsel %vm351, %v1129, %v867
    %v1131 = vsel %vm353, %v1130, %v1121
    %v1132 = vsel %vm355, %v1131, %v1123
    %v1133 = vsel %vm357, %v1132, %v1125
    %1135 = vrot.lane.b32.xlu0 %v1133, 32
    %v1136 = vpop.permute.xlu0 %1135
    %1138 = vmatpush.msra.mxu0 0.0
    %1139 = vmatpush.msra.mxu0 0.0
    %1140 = vmatpush.msra.mxu0 0.0
    %1141 = vmatpush.msra.mxu0 0.0
    %1142 = vmatpush.msra.mxu0 0.0
    %1143 = vmatpush.msra.mxu0 0.0
    %1144 = vmatpush.msra.mxu0 0.0
    %1145 = vmatpush.msra.mxu0 0.0
    %1146 = vmatpush.msra.mxu0 0.0
    %1147 = vmatpush.msra.mxu0 0.0
    %1148 = vmatpush.msra.mxu0 0.0
    %1149 = vmatpush.msra.mxu0 0.0
    %1150 = vmatpush.msra.mxu0 0.0
    %1151 = vmatpush.msra.mxu0 0.0
    %1152 = vmatpush.msra.mxu0 0.0
    %1153 = vmatpush.msra.mxu0 %v1136
    %1154 = vmatmul.f32.gmra.mxu0 %v133
    %v1155 = vpop.f32.mrf.mxu0
    %v1156 = vadd.f32 0.0, %v1155
    %1157 = vdwg.mxu0
    %1159 = vrot.lane.b32.xlu0 %v1111, 32
    %v1160 = vpop.permute.xlu0 %1159
    %1163 = vrot.lane.b32.xlu0 %v1156, 32
    %v1164 = vpop.permute.xlu0 %1163
    %v1166 = vsel %vm228, %v1160, %v1164
    %v1167 = vmul.f32 %v1166, %v84
    %v1168 = vrot.slane %v579, 1
    %v1170 = vrot.slane %v723, 7
    %v1172 = vrot.slane %v795, 6
    %v1174 = vrot.slane %v867, 5
    %v1176 = vrot.slane %v939, 4
    %v1178 = vrot.slane %v1011, 3
    %v1180 = vrot.slane %v1083, 2
    %v1182 = vsel %vm345, %v1168, %v651
    %v1183 = vsel %vm347, %v1182, %v1170
    %v1184 = vsel %vm349, %v1183, %v1172
    %v1185 = vsel %vm351, %v1184, %v1174
    %v1186 = vsel %vm353, %v1185, %v1176
    %v1187 = vsel %vm355, %v1186, %v1178
    %v1188 = vsel %vm357, %v1187, %v1180
    %v1189 = vrot.slane %v579, 5
    %v1191 = vrot.slane %v651, 4
    %v1193 = vrot.slane %v723, 3
    %v1195 = vrot.slane %v795, 2
    %v1197 = vrot.slane %v867, 1
    %v1199 = vrot.slane %v1011, 7
    %v1201 = vrot.slane %v1083, 6
    %v1203 = vsel %vm345, %v1189, %v1191
    %v1204 = vsel %vm347, %v1203, %v1193
    %v1205 = vsel %vm349, %v1204, %v1195
    %v1206 = vsel %vm351, %v1205, %v1197
    %v1207 = vsel %vm353, %v1206, %v939
    %v1208 = vsel %vm355, %v1207, %v1199
    %v1209 = vsel %vm357, %v1208, %v1201
    %1211 = vrot.lane.b32.xlu0 %v1209, 32
    %v1212 = vpop.permute.xlu0 %1211
    %1214 = vmatpush.msra.mxu0 0.0
    %1215 = vmatpush.msra.mxu0 0.0
    %1216 = vmatpush.msra.mxu0 0.0
    %1217 = vmatpush.msra.mxu0 0.0
    %1218 = vmatpush.msra.mxu0 0.0
    %1219 = vmatpush.msra.mxu0 0.0
    %1220 = vmatpush.msra.mxu0 0.0
    %1221 = vmatpush.msra.mxu0 0.0
    %1222 = vmatpush.msra.mxu0 0.0
    %1223 = vmatpush.msra.mxu0 0.0
    %1224 = vmatpush.msra.mxu0 0.0
    %1225 = vmatpush.msra.mxu0 0.0
    %1226 = vmatpush.msra.mxu0 0.0
    %1227 = vmatpush.msra.mxu0 0.0
    %1228 = vmatpush.msra.mxu0 0.0
    %1229 = vmatpush.msra.mxu0 %v1212
    %1230 = vmatmul.f32.gmra.mxu0 %v156
    %v1231 = vpop.f32.mrf.mxu0
    %v1232 = vadd.f32 0.0, %v1231
    %1233 = vdwg.mxu0
    %1235 = vrot.lane.b32.xlu0 %v1188, 32
    %v1236 = vpop.permute.xlu0 %1235
    %1239 = vrot.lane.b32.xlu0 %v1232, 32
    %v1240 = vpop.permute.xlu0 %1239
    %v1242 = vsel %vm228, %v1236, %v1240
    %v1243 = vmul.f32 %v1242, %v108
    %v1244 = vrot.slane %v579, 2
    %v1246 = vrot.slane %v651, 1
    %v1248 = vrot.slane %v795, 7
    %v1250 = vrot.slane %v867, 6
    %v1252 = vrot.slane %v939, 5
    %v1254 = vrot.slane %v1011, 4
    %v1256 = vrot.slane %v1083, 3
    %v1258 = vsel %vm345, %v1244, %v1246
    %v1259 = vsel %vm347, %v1258, %v723
    %v1260 = vsel %vm349, %v1259, %v1248
    %v1261 = vsel %vm351, %v1260, %v1250
    %v1262 = vsel %vm353, %v1261, %v1252
    %v1263 = vsel %vm355, %v1262, %v1254
    %v1264 = vsel %vm357, %v1263, %v1256
    %v1265 = vrot.slane %v579, 6
    %v1267 = vrot.slane %v651, 5
    %v1269 = vrot.slane %v723, 4
    %v1271 = vrot.slane %v795, 3
    %v1273 = vrot.slane %v867, 2
    %v1275 = vrot.slane %v939, 1
    %v1277 = vrot.slane %v1083, 7
    %v1279 = vsel %vm345, %v1265, %v1267
    %v1280 = vsel %vm347, %v1279, %v1269
    %v1281 = vsel %vm349, %v1280, %v1271
    %v1282 = vsel %vm351, %v1281, %v1273
    %v1283 = vsel %vm353, %v1282, %v1275
    %v1284 = vsel %vm355, %v1283, %v1011
    %v1285 = vsel %vm357, %v1284, %v1277
    %1287 = vrot.lane.b32.xlu0 %v1285, 32
    %v1288 = vpop.permute.xlu0 %1287
    %1290 = vmatpush.msra.mxu0 0.0
    %1291 = vmatpush.msra.mxu0 0.0
    %1292 = vmatpush.msra.mxu0 0.0
    %1293 = vmatpush.msra.mxu0 0.0
    %1294 = vmatpush.msra.mxu0 0.0
    %1295 = vmatpush.msra.mxu0 0.0
    %1296 = vmatpush.msra.mxu0 0.0
    %1297 = vmatpush.msra.mxu0 0.0
    %1298 = vmatpush.msra.mxu0 0.0
    %1299 = vmatpush.msra.mxu0 0.0
    %1300 = vmatpush.msra.mxu0 0.0
    %1301 = vmatpush.msra.mxu0 0.0
    %1302 = vmatpush.msra.mxu0 0.0
    %1303 = vmatpush.msra.mxu0 0.0
    %1304 = vmatpush.msra.mxu0 0.0
    %1305 = vmatpush.msra.mxu0 %v1288
    %1306 = vmatmul.f32.gmra.mxu0 %v179
    %v1307 = vpop.f32.mrf.mxu0
    %v1308 = vadd.f32 0.0, %v1307
    %1309 = vdwg.mxu0
    %1311 = vrot.lane.b32.xlu0 %v1264, 32
    %v1312 = vpop.permute.xlu0 %1311
    %1315 = vrot.lane.b32.xlu0 %v1308, 32
    %v1316 = vpop.permute.xlu0 %1315
    %v1318 = vsel %vm228, %v1312, %v1316
    %v1319 = vmul.f32 %v1318, %v96
    %v1320 = vrot.slane %v579, 3
    %v1322 = vrot.slane %v651, 2
    %v1324 = vrot.slane %v723, 1
    %v1326 = vrot.slane %v867, 7
    %v1328 = vrot.slane %v939, 6
    %v1330 = vrot.slane %v1011, 5
    %v1332 = vrot.slane %v1083, 4
    %v1334 = vsel %vm345, %v1320, %v1322
    %v1335 = vsel %vm347, %v1334, %v1324
    %v1336 = vsel %vm349, %v1335, %v795
    %v1337 = vsel %vm351, %v1336, %v1326
    %v1338 = vsel %vm353, %v1337, %v1328
    %v1339 = vsel %vm355, %v1338, %v1330
    %v1340 = vsel %vm357, %v1339, %v1332
    %v1341 = vrot.slane %v579, 7
    %v1343 = vrot.slane %v651, 6
    %v1345 = vrot.slane %v723, 5
    %v1347 = vrot.slane %v795, 4
    %v1349 = vrot.slane %v867, 3
    %v1351 = vrot.slane %v939, 2
    %v1353 = vrot.slane %v1011, 1
    %v1355 = vsel %vm345, %v1341, %v1343
    %v1356 = vsel %vm347, %v1355, %v1345
    %v1357 = vsel %vm349, %v1356, %v1347
    %v1358 = vsel %vm351, %v1357, %v1349
    %v1359 = vsel %vm353, %v1358, %v1351
    %v1360 = vsel %vm355, %v1359, %v1353
    %v1361 = vsel %vm357, %v1360, %v1083
    %1363 = vrot.lane.b32.xlu0 %v1361, 32
    %v1364 = vpop.permute.xlu0 %1363
    %1366 = vmatpush.msra.mxu0 0.0
    %1367 = vmatpush.msra.mxu0 0.0
    %1368 = vmatpush.msra.mxu0 0.0
    %1369 = vmatpush.msra.mxu0 0.0
    %1370 = vmatpush.msra.mxu0 0.0
    %1371 = vmatpush.msra.mxu0 0.0
    %1372 = vmatpush.msra.mxu0 0.0
    %1373 = vmatpush.msra.mxu0 0.0
    %1374 = vmatpush.msra.mxu0 0.0
    %1375 = vmatpush.msra.mxu0 0.0
    %1376 = vmatpush.msra.mxu0 0.0
    %1377 = vmatpush.msra.mxu0 0.0
    %1378 = vmatpush.msra.mxu0 0.0
    %1379 = vmatpush.msra.mxu0 0.0
    %1380 = vmatpush.msra.mxu0 0.0
    %1381 = vmatpush.msra.mxu0 %v1364
    %1382 = vmatmul.f32.gmra.mxu0 %v202
    %v1383 = vpop.f32.mrf.mxu0
    %v1384 = vadd.f32 0.0, %v1383
    %1385 = vdwg.mxu0
    %1387 = vrot.lane.b32.xlu0 %v1340, 32
    %v1388 = vpop.permute.xlu0 %1387
    %1391 = vrot.lane.b32.xlu0 %v1384, 32
    %v1392 = vpop.permute.xlu0 %1391
    %v1394 = vsel %vm228, %v1388, %v1392
    %v1395 = vmul.f32 %v1394, %v120
    %v1396 = vld [vmem:[%s4] sm:$0x1]
    %v1397 = vld [vmem:[%s5] sm:$0x1]
    %v1399 = vsel %vm518, %v1167, 0
    %v1402 = vsel %vm518, %v1319, 0
    %1404 = vmatpush.xpose.msra.mxu0 0.0
    %1405 = vmatpush.xpose.msra.mxu0 0.0
    %1406 = vmatpush.xpose.msra.mxu0 0.0
    %1407 = vmatpush.xpose.msra.mxu0 0.0
    %1408 = vmatpush.xpose.msra.mxu0 0.0
    %1409 = vmatpush.xpose.msra.mxu0 0.0
    %1410 = vmatpush.xpose.msra.mxu0 0.0
    %1411 = vmatpush.xpose.msra.mxu0 0.0
    %1412 = vmatpush.xpose.msra.mxu0 0.0
    %1413 = vmatpush.xpose.msra.mxu0 0.0
    %1414 = vmatpush.xpose.msra.mxu0 0.0
    %1415 = vmatpush.xpose.msra.mxu0 0.0
    %1416 = vmatpush.xpose.msra.mxu0 0.0
    %1417 = vmatpush.xpose.msra.mxu0 0.0
    %1418 = vmatpush.xpose.msra.mxu0 0.0
    %1419 = vmatpush.xpose.msra.mxu0 %v1402
    %1420 = vmatmul.f32.gmra.mxu0 %v1399
    %v1421 = vpop.f32.mrf.mxu0
    %v1422 = vadd.f32 0.0, %v1421
    %1423 = vdwg.mxu0
    %v1424 = vperm.slane %v1397, 0
    %v1425 = vadd.f32 %v1422, %v1424
    %v1426 = vsel %vm131, %v1425, -inf
    %1427 = vmax.xlane.f32.xlu0 %v1426
    %v1428 = vpop.xlane.xlu0 %1427
    %v1429 = vsub.f32 %v1425, %v1428
    %v1430 = vmul.f32 %v1429, 1.442695
    %v1431 = vpow.pop %v1430
    %v1432 = vsel %vm131, %v1431, 0.0
    %1433 = vadd.xlane.f32.xlu0 %v1432
    %v1434 = vpop.xlane.xlu0 %1433
    %v1435 = vrcp.pop %v1434
    %v1436 = vmul.f32 %v1434, %v1435
    %v1437 = vsub.f32 1.0, %v1436
    %v1438 = vmul.f32 %v1435, %v1437
    %v1439 = vadd.f32 %v1435, %v1438
    %vm1440 = vweird.f32 %v1434
    %vm1441 = vweird.f32 %v1435
    %vm1442 = vmor %vm1440, %vm1441
    %v1443 = vsel %vm1442, %v1435, %v1439
    %v1444 = vand.u32 2147483647, %v1434
    %vm1445 = vcmp.eq.f32.partialorder %v1444, 8.507059e+37
    %v1446 = vand.u32 %v1434, 2147483648
    %v1447 = vor.u32 1.1754944e-38, %v1446
    %v1448 = vsel %vm1445, %v1447, %v1443
    %v1449 = vmul.f32 %v1431, %v1448
    %v1451 = vsel %vm131, %v1449, 0
    %1453 = vmatpush.msra.mxu0 0.0
    %1454 = vmatpush.msra.mxu0 0.0
    %1455 = vmatpush.msra.mxu0 0.0
    %1456 = vmatpush.msra.mxu0 0.0
    %1457 = vmatpush.msra.mxu0 0.0
    %1458 = vmatpush.msra.mxu0 0.0
    %1459 = vmatpush.msra.mxu0 0.0
    %1460 = vmatpush.msra.mxu0 0.0
    %1461 = vmatpush.msra.mxu0 0.0
    %1462 = vmatpush.msra.mxu0 0.0
    %1463 = vmatpush.msra.mxu0 0.0
    %1464 = vmatpush.msra.mxu0 0.0
    %1465 = vmatpush.msra.mxu0 0.0
    %1466 = vmatpush.msra.mxu0 0.0
    %1467 = vmatpush.msra.mxu0 0.0
    %1468 = vmatpush.msra.mxu0 %v1319
    %1469 = vmatmul.f32.gmra.mxu0 %v1451
    %v1470 = vpop.f32.mrf.mxu0
    %v1471 = vadd.f32 0.0, %v1470
    %1472 = vdwg.mxu0
    %1473 = vxpose.xlu0.b32.start [1/16] %v1422, 128
    %1474 = vxpose.xlu0.b32.cont [2/16] 0.0, 128
    %1475 = vxpose.xlu0.b32.cont [3/16] 0.0, 128
    %1476 = vxpose.xlu0.b32.cont [4/16] 0.0, 128
    %1477 = vxpose.xlu0.b32.cont [5/16] 0.0, 128
    %1478 = vxpose.xlu0.b32.cont [6/16] 0.0, 128
    %1479 = vxpose.xlu0.b32.cont [7/16] 0.0, 128
    %1480 = vxpose.xlu0.b32.cont [8/16] 0.0, 128
    %1481 = vxpose.xlu0.b32.cont [9/16] 0.0, 128
    %1482 = vxpose.xlu0.b32.cont [10/16] 0.0, 128
    %1483 = vxpose.xlu0.b32.cont [11/16] 0.0, 128
    %1484 = vxpose.xlu0.b32.cont [12/16] 0.0, 128
    %1485 = vxpose.xlu0.b32.cont [13/16] 0.0, 128
    %1486 = vxpose.xlu0.b32.cont [14/16] 0.0, 128
    %1487 = vxpose.xlu0.b32.cont [15/16] 0.0, 128
    %1488 = vxpose.xlu0.b32.end [16/16] 0.0, 128
    %v1489 = vpop.trf.xlu0
    %v1490 = vpop.trf.xlu0
    %v1491 = vpop.trf.xlu0
    %v1492 = vpop.trf.xlu0
    %v1493 = vpop.trf.xlu0
    %v1494 = vpop.trf.xlu0
    %v1495 = vpop.trf.xlu0
    %v1496 = vpop.trf.xlu0
    %v1497 = vpop.trf.xlu0
    %v1498 = vpop.trf.xlu0
    %v1499 = vpop.trf.xlu0
    %v1500 = vpop.trf.xlu0
    %v1501 = vpop.trf.xlu0
    %v1502 = vpop.trf.xlu0
    %v1503 = vpop.trf.xlu0
    %v1504 = vpop.trf.xlu0
    %v1505 = vperm.slane %v1396, 0
    %v1506 = vadd.f32 %v1489, %v1505
    %v1507 = vsel %vm131, %v1506, -inf
    %1508 = vmax.xlane.f32.xlu0 %v1507
    %v1509 = vpop.xlane.xlu0 %1508
    %v1510 = vsub.f32 %v1506, %v1509
    %v1511 = vmul.f32 %v1510, 1.442695
    %v1512 = vpow.pop %v1511
    %v1513 = vsel %vm131, %v1512, 0.0
    %1514 = vadd.xlane.f32.xlu0 %v1513
    %v1515 = vpop.xlane.xlu0 %1514
    %v1516 = vrcp.pop %v1515
    %v1517 = vmul.f32 %v1515, %v1516
    %v1518 = vsub.f32 1.0, %v1517
    %v1519 = vmul.f32 %v1516, %v1518
    %v1520 = vadd.f32 %v1516, %v1519
    %vm1521 = vweird.f32 %v1515
    %vm1522 = vweird.f32 %v1516
    %vm1523 = vmor %vm1521, %vm1522
    %v1524 = vsel %vm1523, %v1516, %v1520
    %v1525 = vand.u32 2147483647, %v1515
    %vm1526 = vcmp.eq.f32.partialorder %v1525, 8.507059e+37
    %v1527 = vand.u32 %v1515, 2147483648
    %v1528 = vor.u32 1.1754944e-38, %v1527
    %v1529 = vsel %vm1526, %v1528, %v1524
    %v1530 = vmul.f32 %v1512, %v1529
    %v1532 = vsel %vm131, %v1530, 0
    %1534 = vmatpush.msra.mxu0 0.0
    %1535 = vmatpush.msra.mxu0 0.0
    %1536 = vmatpush.msra.mxu0 0.0
    %1537 = vmatpush.msra.mxu0 0.0
    %1538 = vmatpush.msra.mxu0 0.0
    %1539 = vmatpush.msra.mxu0 0.0
    %1540 = vmatpush.msra.mxu0 0.0
    %1541 = vmatpush.msra.mxu0 0.0
    %1542 = vmatpush.msra.mxu0 0.0
    %1543 = vmatpush.msra.mxu0 0.0
    %1544 = vmatpush.msra.mxu0 0.0
    %1545 = vmatpush.msra.mxu0 0.0
    %1546 = vmatpush.msra.mxu0 0.0
    %1547 = vmatpush.msra.mxu0 0.0
    %1548 = vmatpush.msra.mxu0 0.0
    %1549 = vmatpush.msra.mxu0 %v1167
    %1550 = vmatmul.f32.gmra.mxu0 %v1532
    %v1551 = vpop.f32.mrf.mxu0
    %v1552 = vadd.f32 0.0, %v1551
    %1553 = vdwg.mxu0
    %v1554 = vsub.f32 %v1167, %v1471
    %v1555 = vmul.f32 %v1167, %v1471
    %1557 = vrot.lane.b32.xlu0 %v1471, 64
    %v1558 = vpop.permute.xlu0 %1557
    %1561 = vrot.lane.b32.xlu0 %v1555, 64
    %v1562 = vpop.permute.xlu0 %1561
    %v1564 = vsel %vm518, %v1167, %v1558
    %v1565 = vsel %vm518, %v1554, %v1562
    %v1566 = vsub.f32 %v1319, %v1552
    %v1567 = vmul.f32 %v1319, %v1552
    %1569 = vrot.lane.b32.xlu0 %v1552, 64
    %v1570 = vpop.permute.xlu0 %1569
    %1573 = vrot.lane.b32.xlu0 %v1567, 64
    %v1574 = vpop.permute.xlu0 %1573
    %v1576 = vsel %vm518, %v1319, %v1570
    %v1577 = vsel %vm518, %v1566, %v1574
    %1578 = vmatpush.msra.mxu0 0.0
    %1579 = vmatpush.msra.mxu0 0.0
    %1580 = vmatpush.msra.mxu0 0.0
    %1581 = vmatpush.msra.mxu0 0.0
    %1582 = vmatpush.msra.mxu0 0.0
    %1583 = vmatpush.msra.mxu0 0.0
    %1584 = vmatpush.msra.mxu0 0.0
    %1585 = vmatpush.msra.mxu0 0.0
    %1586 = vmatpush.msra.mxu0 0.0
    %1587 = vmatpush.msra.mxu0 0.0
    %1588 = vmatpush.msra.mxu0 0.0
    %1589 = vmatpush.msra.mxu0 0.0
    %1590 = vmatpush.msra.mxu0 0.0
    %1591 = vmatpush.msra.mxu0 0.0
    %1592 = vmatpush.msra.mxu0 0.0
    %1593 = vmatpush.msra.mxu0 %v1564
    %1594 = vmatmul.f32.gmra.mxu0 %v133
    %v1595 = vpop.f32.mrf.mxu0
    %v1596 = vadd.f32 0.0, %v1595
    %1597 = vdwg.mxu0
    %1598 = vmatpush.msra.mxu0 0.0
    %1599 = vmatpush.msra.mxu0 0.0
    %1600 = vmatpush.msra.mxu0 0.0
    %1601 = vmatpush.msra.mxu0 0.0
    %1602 = vmatpush.msra.mxu0 0.0
    %1603 = vmatpush.msra.mxu0 0.0
    %1604 = vmatpush.msra.mxu0 0.0
    %1605 = vmatpush.msra.mxu0 0.0
    %1606 = vmatpush.msra.mxu0 0.0
    %1607 = vmatpush.msra.mxu0 0.0
    %1608 = vmatpush.msra.mxu0 0.0
    %1609 = vmatpush.msra.mxu0 0.0
    %1610 = vmatpush.msra.mxu0 0.0
    %1611 = vmatpush.msra.mxu0 0.0
    %1612 = vmatpush.msra.mxu0 0.0
    %1613 = vmatpush.msra.mxu0 %v1565
    %1614 = vmatmul.f32.gmra.mxu0 %v133
    %v1615 = vpop.f32.mrf.mxu0
    %v1616 = vadd.f32 0.0, %v1615
    %1617 = vdwg.mxu0
    %1618 = vmatpush.msra.mxu0 0.0
    %1619 = vmatpush.msra.mxu0 0.0
    %1620 = vmatpush.msra.mxu0 0.0
    %1621 = vmatpush.msra.mxu0 0.0
    %1622 = vmatpush.msra.mxu0 0.0
    %1623 = vmatpush.msra.mxu0 0.0
    %1624 = vmatpush.msra.mxu0 0.0
    %1625 = vmatpush.msra.mxu0 0.0
    %1626 = vmatpush.msra.mxu0 0.0
    %1627 = vmatpush.msra.mxu0 0.0
    %1628 = vmatpush.msra.mxu0 0.0
    %1629 = vmatpush.msra.mxu0 0.0
    %1630 = vmatpush.msra.mxu0 0.0
    %1631 = vmatpush.msra.mxu0 0.0
    %1632 = vmatpush.msra.mxu0 0.0
    %1633 = vmatpush.msra.mxu0 %v1576
    %1634 = vmatmul.f32.gmra.mxu0 %v179
    %v1635 = vpop.f32.mrf.mxu0
    %v1636 = vadd.f32 0.0, %v1635
    %1637 = vdwg.mxu0
    %1638 = vmatpush.msra.mxu0 0.0
    %1639 = vmatpush.msra.mxu0 0.0
    %1640 = vmatpush.msra.mxu0 0.0
    %1641 = vmatpush.msra.mxu0 0.0
    %1642 = vmatpush.msra.mxu0 0.0
    %1643 = vmatpush.msra.mxu0 0.0
    %1644 = vmatpush.msra.mxu0 0.0
    %1645 = vmatpush.msra.mxu0 0.0
    %1646 = vmatpush.msra.mxu0 0.0
    %1647 = vmatpush.msra.mxu0 0.0
    %1648 = vmatpush.msra.mxu0 0.0
    %1649 = vmatpush.msra.mxu0 0.0
    %1650 = vmatpush.msra.mxu0 0.0
    %1651 = vmatpush.msra.mxu0 0.0
    %1652 = vmatpush.msra.mxu0 0.0
    %1653 = vmatpush.msra.mxu0 %v1577
    %1654 = vmatmul.f32.gmra.mxu0 %v179
    %v1655 = vpop.f32.mrf.mxu0
    %v1656 = vadd.f32 0.0, %v1655
    %1657 = vdwg.mxu0
    %v1658 = vld [vmem:[%s4 + $0x1] sm:$0x1]
    %v1659 = vld [vmem:[%s5 + $0x1] sm:$0x1]
    %v1661 = vsel %vm518, %v1243, 0
    %v1664 = vsel %vm518, %v1395, 0
    %1666 = vmatpush.xpose.msra.mxu0 0.0
    %1667 = vmatpush.xpose.msra.mxu0 0.0
    %1668 = vmatpush.xpose.msra.mxu0 0.0
    %1669 = vmatpush.xpose.msra.mxu0 0.0
    %1670 = vmatpush.xpose.msra.mxu0 0.0
    %1671 = vmatpush.xpose.msra.mxu0 0.0
    %1672 = vmatpush.xpose.msra.mxu0 0.0
    %1673 = vmatpush.xpose.msra.mxu0 0.0
    %1674 = vmatpush.xpose.msra.mxu0 0.0
    %1675 = vmatpush.xpose.msra.mxu0 0.0
    %1676 = vmatpush.xpose.msra.mxu0 0.0
    %1677 = vmatpush.xpose.msra.mxu0 0.0
    %1678 = vmatpush.xpose.msra.mxu0 0.0
    %1679 = vmatpush.xpose.msra.mxu0 0.0
    %1680 = vmatpush.xpose.msra.mxu0 0.0
    %1681 = vmatpush.xpose.msra.mxu0 %v1664
    %1682 = vmatmul.f32.gmra.mxu0 %v1661
    %v1683 = vpop.f32.mrf.mxu0
    %v1684 = vadd.f32 0.0, %v1683
    %1685 = vdwg.mxu0
    %v1686 = vperm.slane %v1659, 0
    %v1687 = vadd.f32 %v1684, %v1686
    %v1688 = vsel %vm131, %v1687, -inf
    %1689 = vmax.xlane.f32.xlu0 %v1688
    %v1690 = vpop.xlane.xlu0 %1689
    %v1691 = vsub.f32 %v1687, %v1690
    %v1692 = vmul.f32 %v1691, 1.442695
    %v1693 = vpow.pop %v1692
    %v1694 = vsel %vm131, %v1693, 0.0
    %1695 = vadd.xlane.f32.xlu0 %v1694
    %v1696 = vpop.xlane.xlu0 %1695
    %v1697 = vrcp.pop %v1696
    %v1698 = vmul.f32 %v1696, %v1697
    %v1699 = vsub.f32 1.0, %v1698
    %v1700 = vmul.f32 %v1697, %v1699
    %v1701 = vadd.f32 %v1697, %v1700
    %vm1702 = vweird.f32 %v1696
    %vm1703 = vweird.f32 %v1697
    %vm1704 = vmor %vm1702, %vm1703
    %v1705 = vsel %vm1704, %v1697, %v1701
    %v1706 = vand.u32 2147483647, %v1696
    %vm1707 = vcmp.eq.f32.partialorder %v1706, 8.507059e+37
    %v1708 = vand.u32 %v1696, 2147483648
    %v1709 = vor.u32 1.1754944e-38, %v1708
    %v1710 = vsel %vm1707, %v1709, %v1705
    %v1711 = vmul.f32 %v1693, %v1710
    %v1713 = vsel %vm131, %v1711, 0
    %1715 = vmatpush.msra.mxu0 0.0
    %1716 = vmatpush.msra.mxu0 0.0
    %1717 = vmatpush.msra.mxu0 0.0
    %1718 = vmatpush.msra.mxu0 0.0
    %1719 = vmatpush.msra.mxu0 0.0
    %1720 = vmatpush.msra.mxu0 0.0
    %1721 = vmatpush.msra.mxu0 0.0
    %1722 = vmatpush.msra.mxu0 0.0
    %1723 = vmatpush.msra.mxu0 0.0
    %1724 = vmatpush.msra.mxu0 0.0
    %1725 = vmatpush.msra.mxu0 0.0
    %1726 = vmatpush.msra.mxu0 0.0
    %1727 = vmatpush.msra.mxu0 0.0
    %1728 = vmatpush.msra.mxu0 0.0
    %1729 = vmatpush.msra.mxu0 0.0
    %1730 = vmatpush.msra.mxu0 %v1395
    %1731 = vmatmul.f32.gmra.mxu0 %v1713
    %v1732 = vpop.f32.mrf.mxu0
    %v1733 = vadd.f32 0.0, %v1732
    %1734 = vdwg.mxu0
    %1735 = vxpose.xlu0.b32.start [1/16] %v1684, 128
    %1736 = vxpose.xlu0.b32.cont [2/16] 0.0, 128
    %1737 = vxpose.xlu0.b32.cont [3/16] 0.0, 128
    %1738 = vxpose.xlu0.b32.cont [4/16] 0.0, 128
    %1739 = vxpose.xlu0.b32.cont [5/16] 0.0, 128
    %1740 = vxpose.xlu0.b32.cont [6/16] 0.0, 128
    %1741 = vxpose.xlu0.b32.cont [7/16] 0.0, 128
    %1742 = vxpose.xlu0.b32.cont [8/16] 0.0, 128
    %1743 = vxpose.xlu0.b32.cont [9/16] 0.0, 128
    %1744 = vxpose.xlu0.b32.cont [10/16] 0.0, 128
    %1745 = vxpose.xlu0.b32.cont [11/16] 0.0, 128
    %1746 = vxpose.xlu0.b32.cont [12/16] 0.0, 128
    %1747 = vxpose.xlu0.b32.cont [13/16] 0.0, 128
    %1748 = vxpose.xlu0.b32.cont [14/16] 0.0, 128
    %1749 = vxpose.xlu0.b32.cont [15/16] 0.0, 128
    %1750 = vxpose.xlu0.b32.end [16/16] 0.0, 128
    %v1751 = vpop.trf.xlu0
    %v1752 = vpop.trf.xlu0
    %v1753 = vpop.trf.xlu0
    %v1754 = vpop.trf.xlu0
    %v1755 = vpop.trf.xlu0
    %v1756 = vpop.trf.xlu0
    %v1757 = vpop.trf.xlu0
    %v1758 = vpop.trf.xlu0
    %v1759 = vpop.trf.xlu0
    %v1760 = vpop.trf.xlu0
    %v1761 = vpop.trf.xlu0
    %v1762 = vpop.trf.xlu0
    %v1763 = vpop.trf.xlu0
    %v1764 = vpop.trf.xlu0
    %v1765 = vpop.trf.xlu0
    %v1766 = vpop.trf.xlu0
    %v1767 = vperm.slane %v1658, 0
    %v1768 = vadd.f32 %v1751, %v1767
    %v1769 = vsel %vm131, %v1768, -inf
    %1770 = vmax.xlane.f32.xlu0 %v1769
    %v1771 = vpop.xlane.xlu0 %1770
    %v1772 = vsub.f32 %v1768, %v1771
    %v1773 = vmul.f32 %v1772, 1.442695
    %v1774 = vpow.pop %v1773
    %v1775 = vsel %vm131, %v1774, 0.0
    %1776 = vadd.xlane.f32.xlu0 %v1775
    %v1777 = vpop.xlane.xlu0 %1776
    %v1778 = vrcp.pop %v1777
    %v1779 = vmul.f32 %v1777, %v1778
    %v1780 = vsub.f32 1.0, %v1779
    %v1781 = vmul.f32 %v1778, %v1780
    %v1782 = vadd.f32 %v1778, %v1781
    %vm1783 = vweird.f32 %v1777
    %vm1784 = vweird.f32 %v1778
    %vm1785 = vmor %vm1783, %vm1784
    %v1786 = vsel %vm1785, %v1778, %v1782
    %v1787 = vand.u32 2147483647, %v1777
    %vm1788 = vcmp.eq.f32.partialorder %v1787, 8.507059e+37
    %v1789 = vand.u32 %v1777, 2147483648
    %v1790 = vor.u32 1.1754944e-38, %v1789
    %v1791 = vsel %vm1788, %v1790, %v1786
    %v1792 = vmul.f32 %v1774, %v1791
    %v1794 = vsel %vm131, %v1792, 0
    %1796 = vmatpush.msra.mxu0 0.0
    %1797 = vmatpush.msra.mxu0 0.0
    %1798 = vmatpush.msra.mxu0 0.0
    %1799 = vmatpush.msra.mxu0 0.0
    %1800 = vmatpush.msra.mxu0 0.0
    %1801 = vmatpush.msra.mxu0 0.0
    %1802 = vmatpush.msra.mxu0 0.0
    %1803 = vmatpush.msra.mxu0 0.0
    %1804 = vmatpush.msra.mxu0 0.0
    %1805 = vmatpush.msra.mxu0 0.0
    %1806 = vmatpush.msra.mxu0 0.0
    %1807 = vmatpush.msra.mxu0 0.0
    %1808 = vmatpush.msra.mxu0 0.0
    %1809 = vmatpush.msra.mxu0 0.0
    %1810 = vmatpush.msra.mxu0 0.0
    %1811 = vmatpush.msra.mxu0 %v1243
    %1812 = vmatmul.f32.gmra.mxu0 %v1794
    %v1813 = vpop.f32.mrf.mxu0
    %v1814 = vadd.f32 0.0, %v1813
    %1815 = vdwg.mxu0
    %v1816 = vsub.f32 %v1243, %v1733
    %v1817 = vmul.f32 %v1243, %v1733
    %1819 = vrot.lane.b32.xlu0 %v1733, 64
    %v1820 = vpop.permute.xlu0 %1819
    %1823 = vrot.lane.b32.xlu0 %v1817, 64
    %v1824 = vpop.permute.xlu0 %1823
    %v1826 = vsel %vm518, %v1243, %v1820
    %v1827 = vsel %vm518, %v1816, %v1824
    %v1828 = vsub.f32 %v1395, %v1814
    %v1829 = vmul.f32 %v1395, %v1814
    %1831 = vrot.lane.b32.xlu0 %v1814, 64
    %v1832 = vpop.permute.xlu0 %1831
    %1835 = vrot.lane.b32.xlu0 %v1829, 64
    %v1836 = vpop.permute.xlu0 %1835
    %v1838 = vsel %vm518, %v1395, %v1832
    %v1839 = vsel %vm518, %v1828, %v1836
    %1840 = vmatpush.msra.mxu0 0.0
    %1841 = vmatpush.msra.mxu0 0.0
    %1842 = vmatpush.msra.mxu0 0.0
    %1843 = vmatpush.msra.mxu0 0.0
    %1844 = vmatpush.msra.mxu0 0.0
    %1845 = vmatpush.msra.mxu0 0.0
    %1846 = vmatpush.msra.mxu0 0.0
    %1847 = vmatpush.msra.mxu0 0.0
    %1848 = vmatpush.msra.mxu0 0.0
    %1849 = vmatpush.msra.mxu0 0.0
    %1850 = vmatpush.msra.mxu0 0.0
    %1851 = vmatpush.msra.mxu0 0.0
    %1852 = vmatpush.msra.mxu0 0.0
    %1853 = vmatpush.msra.mxu0 0.0
    %1854 = vmatpush.msra.mxu0 0.0
    %1855 = vmatpush.msra.mxu0 %v1826
    %1856 = vmatmul.f32.gmra.mxu0 %v156
    %v1857 = vpop.f32.mrf.mxu0
    %v1858 = vadd.f32 0.0, %v1857
    %1859 = vdwg.mxu0
    %1860 = vmatpush.msra.mxu0 0.0
    %1861 = vmatpush.msra.mxu0 0.0
    %1862 = vmatpush.msra.mxu0 0.0
    %1863 = vmatpush.msra.mxu0 0.0
    %1864 = vmatpush.msra.mxu0 0.0
    %1865 = vmatpush.msra.mxu0 0.0
    %1866 = vmatpush.msra.mxu0 0.0
    %1867 = vmatpush.msra.mxu0 0.0
    %1868 = vmatpush.msra.mxu0 0.0
    %1869 = vmatpush.msra.mxu0 0.0
    %1870 = vmatpush.msra.mxu0 0.0
    %1871 = vmatpush.msra.mxu0 0.0
    %1872 = vmatpush.msra.mxu0 0.0
    %1873 = vmatpush.msra.mxu0 0.0
    %1874 = vmatpush.msra.mxu0 0.0
    %1875 = vmatpush.msra.mxu0 %v1827
    %1876 = vmatmul.f32.gmra.mxu0 %v156
    %v1877 = vpop.f32.mrf.mxu0
    %v1878 = vadd.f32 0.0, %v1877
    %1879 = vdwg.mxu0
    %1880 = vmatpush.msra.mxu0 0.0
    %1881 = vmatpush.msra.mxu0 0.0
    %1882 = vmatpush.msra.mxu0 0.0
    %1883 = vmatpush.msra.mxu0 0.0
    %1884 = vmatpush.msra.mxu0 0.0
    %1885 = vmatpush.msra.mxu0 0.0
    %1886 = vmatpush.msra.mxu0 0.0
    %1887 = vmatpush.msra.mxu0 0.0
    %1888 = vmatpush.msra.mxu0 0.0
    %1889 = vmatpush.msra.mxu0 0.0
    %1890 = vmatpush.msra.mxu0 0.0
    %1891 = vmatpush.msra.mxu0 0.0
    %1892 = vmatpush.msra.mxu0 0.0
    %1893 = vmatpush.msra.mxu0 0.0
    %1894 = vmatpush.msra.mxu0 0.0
    %1895 = vmatpush.msra.mxu0 %v1838
    %1896 = vmatmul.f32.gmra.mxu0 %v202
    %v1897 = vpop.f32.mrf.mxu0
    %v1898 = vadd.f32 0.0, %v1897
    %1899 = vdwg.mxu0
    %1900 = vmatpush.msra.mxu0 0.0
    %1901 = vmatpush.msra.mxu0 0.0
    %1902 = vmatpush.msra.mxu0 0.0
    %1903 = vmatpush.msra.mxu0 0.0
    %1904 = vmatpush.msra.mxu0 0.0
    %1905 = vmatpush.msra.mxu0 0.0
    %1906 = vmatpush.msra.mxu0 0.0
    %1907 = vmatpush.msra.mxu0 0.0
    %1908 = vmatpush.msra.mxu0 0.0
    %1909 = vmatpush.msra.mxu0 0.0
    %1910 = vmatpush.msra.mxu0 0.0
    %1911 = vmatpush.msra.mxu0 0.0
    %1912 = vmatpush.msra.mxu0 0.0
    %1913 = vmatpush.msra.mxu0 0.0
    %1914 = vmatpush.msra.mxu0 0.0
    %1915 = vmatpush.msra.mxu0 %v1839
    %1916 = vmatmul.f32.gmra.mxu0 %v202
    %v1917 = vpop.f32.mrf.mxu0
    %v1918 = vadd.f32 0.0, %v1917
    %1919 = vdwg.mxu0
    %v1920 = vld [vmem:[%s10] sm:$0xff]
    %v1921 = vld [vmem:[%s10 + $0x8] sm:$0xff]
    %v1922 = vld [vmem:[%s10 + $0x10] sm:$0xff]
    %v1923 = vld [vmem:[%s10 + $0x18] sm:$0xff]
    %v1924 = vld [vmem:[%s10 + $0x20] sm:$0xff]
    %v1925 = vld [vmem:[%s10 + $0x28] sm:$0xff]
    %v1926 = vld [vmem:[%s10 + $0x30] sm:$0xff]
    %v1927 = vld [vmem:[%s10 + $0x38] sm:$0xff]
    %v1928 = vld [vmem:[%s10 + $0x40] sm:$0xff]
    %v1929 = vld [vmem:[%s10 + $0x48] sm:$0xff]
    %v1930 = vld [vmem:[%s10 + $0x50] sm:$0xff]
    %v1931 = vld [vmem:[%s10 + $0x58] sm:$0xff]
    %v1932 = vld [vmem:[%s10 + $0x60] sm:$0xff]
    %v1933 = vld [vmem:[%s10 + $0x68] sm:$0xff]
    %v1934 = vld [vmem:[%s10 + $0x70] sm:$0xff]
    %v1935 = vld [vmem:[%s10 + $0x78] sm:$0xff]
    %v1936 = vld [vmem:[%s10 + $0x80] sm:$0xff]
    %v1937 = vld [vmem:[%s10 + $0x88] sm:$0xff]
    %v1938 = vld [vmem:[%s10 + $0x90] sm:$0xff]
    %v1939 = vld [vmem:[%s10 + $0x98] sm:$0xff]
    %v1940 = vld [vmem:[%s10 + $0xa0] sm:$0xff]
    %v1941 = vld [vmem:[%s10 + $0xa8] sm:$0xff]
    %v1942 = vld [vmem:[%s10 + $0xb0] sm:$0xff]
    %v1943 = vld [vmem:[%s10 + $0xb8] sm:$0xff]
    %v1944 = vld [vmem:[%s10 + $0xc0] sm:$0xff]
    %v1945 = vld [vmem:[%s10 + $0xc8] sm:$0xff]
    %v1946 = vld [vmem:[%s10 + $0xd0] sm:$0xff]
    %v1947 = vld [vmem:[%s10 + $0xd8] sm:$0xff]
    %v1948 = vld [vmem:[%s10 + $0xe0] sm:$0xff]
    %v1949 = vld [vmem:[%s10 + $0xe8] sm:$0xff]
    %v1950 = vld [vmem:[%s10 + $0xf0] sm:$0xff]
    %v1951 = vld [vmem:[%s10 + $0xf8] sm:$0xff]
    %1952 = vmatpush.msra.mxu0 %v1935
    %1953 = vmatpush.msra.mxu0 %v1934
    %1954 = vmatpush.msra.mxu0 %v1933
    %1955 = vmatpush.msra.mxu0 %v1932
    %1956 = vmatpush.msra.mxu0 %v1931
    %1957 = vmatpush.msra.mxu0 %v1930
    %1958 = vmatpush.msra.mxu0 %v1929
    %1959 = vmatpush.msra.mxu0 %v1928
    %1960 = vmatpush.msra.mxu0 %v1927
    %1961 = vmatpush.msra.mxu0 %v1926
    %1962 = vmatpush.msra.mxu0 %v1925
    %1963 = vmatpush.msra.mxu0 %v1924
    %1964 = vmatpush.msra.mxu0 %v1923
    %1965 = vmatpush.msra.mxu0 %v1922
    %1966 = vmatpush.msra.mxu0 %v1921
    %1967 = vmatpush.msra.mxu0 %v1920
    %1968 = vmatmul.f32.gmra.mxu0 %v1564
    %v1969 = vpop.f32.mrf.mxu0
    %v1970 = vadd.f32 0.0, %v1969
    %1971 = vmatmul.f32.gmra.mxu0 %v1826
    %v1972 = vpop.f32.mrf.mxu0
    %v1973 = vadd.f32 0.0, %v1972
    %1974 = vmatmul.f32.gmra.mxu0 %v1576
    %v1975 = vpop.f32.mrf.mxu0
    %v1976 = vadd.f32 0.0, %v1975
    %1977 = vmatmul.f32.gmra.mxu0 %v1838
    %v1978 = vpop.f32.mrf.mxu0
    %v1979 = vadd.f32 0.0, %v1978
    %1980 = vdwg.mxu0
    %1981 = vmatpush.msra.mxu0 %v1951
    %1982 = vmatpush.msra.mxu0 %v1950
    %1983 = vmatpush.msra.mxu0 %v1949
    %1984 = vmatpush.msra.mxu0 %v1948
    %1985 = vmatpush.msra.mxu0 %v1947
    %1986 = vmatpush.msra.mxu0 %v1946
    %1987 = vmatpush.msra.mxu0 %v1945
    %1988 = vmatpush.msra.mxu0 %v1944
    %1989 = vmatpush.msra.mxu0 %v1943
    %1990 = vmatpush.msra.mxu0 %v1942
    %1991 = vmatpush.msra.mxu0 %v1941
    %1992 = vmatpush.msra.mxu0 %v1940
    %1993 = vmatpush.msra.mxu0 %v1939
    %1994 = vmatpush.msra.mxu0 %v1938
    %1995 = vmatpush.msra.mxu0 %v1937
    %1996 = vmatpush.msra.mxu0 %v1936
    %1997 = vmatmul.f32.gmra.mxu0 %v1565
    %v1998 = vpop.f32.mrf.mxu0
    %v1999 = vadd.f32 %v1970, %v1998
    %2000 = vmatmul.f32.gmra.mxu0 %v1827
    %v2001 = vpop.f32.mrf.mxu0
    %v2002 = vadd.f32 %v1973, %v2001
    %2003 = vmatmul.f32.gmra.mxu0 %v1577
    %v2004 = vpop.f32.mrf.mxu0
    %v2005 = vadd.f32 %v1976, %v2004
    %2006 = vmatmul.f32.gmra.mxu0 %v1839
    %v2007 = vpop.f32.mrf.mxu0
    %v2008 = vadd.f32 %v1979, %v2007
    %2009 = vdwg.mxu0
    %v2010 = vld [vmem:[%s11] sm:$0xff]
    %v2011 = vld [vmem:[%s11 + $0x8] sm:$0xff]
    %v2012 = vld [vmem:[%s11 + $0x10] sm:$0xff]
    %v2013 = vld [vmem:[%s11 + $0x18] sm:$0xff]
    %v2014 = vld [vmem:[%s11 + $0x20] sm:$0xff]
    %v2015 = vld [vmem:[%s11 + $0x28] sm:$0xff]
    %v2016 = vld [vmem:[%s11 + $0x30] sm:$0xff]
    %v2017 = vld [vmem:[%s11 + $0x38] sm:$0xff]
    %v2018 = vld [vmem:[%s11 + $0x40] sm:$0xff]
    %v2019 = vld [vmem:[%s11 + $0x48] sm:$0xff]
    %v2020 = vld [vmem:[%s11 + $0x50] sm:$0xff]
    %v2021 = vld [vmem:[%s11 + $0x58] sm:$0xff]
    %v2022 = vld [vmem:[%s11 + $0x60] sm:$0xff]
    %v2023 = vld [vmem:[%s11 + $0x68] sm:$0xff]
    %v2024 = vld [vmem:[%s11 + $0x70] sm:$0xff]
    %v2025 = vld [vmem:[%s11 + $0x78] sm:$0xff]
    %v2026 = vld [vmem:[%s11 + $0x80] sm:$0xff]
    %v2027 = vld [vmem:[%s11 + $0x88] sm:$0xff]
    %v2028 = vld [vmem:[%s11 + $0x90] sm:$0xff]
    %v2029 = vld [vmem:[%s11 + $0x98] sm:$0xff]
    %v2030 = vld [vmem:[%s11 + $0xa0] sm:$0xff]
    %v2031 = vld [vmem:[%s11 + $0xa8] sm:$0xff]
    %v2032 = vld [vmem:[%s11 + $0xb0] sm:$0xff]
    %v2033 = vld [vmem:[%s11 + $0xb8] sm:$0xff]
    %v2034 = vld [vmem:[%s11 + $0xc0] sm:$0xff]
    %v2035 = vld [vmem:[%s11 + $0xc8] sm:$0xff]
    %v2036 = vld [vmem:[%s11 + $0xd0] sm:$0xff]
    %v2037 = vld [vmem:[%s11 + $0xd8] sm:$0xff]
    %v2038 = vld [vmem:[%s11 + $0xe0] sm:$0xff]
    %v2039 = vld [vmem:[%s11 + $0xe8] sm:$0xff]
    %v2040 = vld [vmem:[%s11 + $0xf0] sm:$0xff]
    %v2041 = vld [vmem:[%s11 + $0xf8] sm:$0xff]
    %2042 = vmatpush.msra.mxu0 %v2025
    %2043 = vmatpush.msra.mxu0 %v2024
    %2044 = vmatpush.msra.mxu0 %v2023
    %2045 = vmatpush.msra.mxu0 %v2022
    %2046 = vmatpush.msra.mxu0 %v2021
    %2047 = vmatpush.msra.mxu0 %v2020
    %2048 = vmatpush.msra.mxu0 %v2019
    %2049 = vmatpush.msra.mxu0 %v2018
    %2050 = vmatpush.msra.mxu0 %v2017
    %2051 = vmatpush.msra.mxu0 %v2016
    %2052 = vmatpush.msra.mxu0 %v2015
    %2053 = vmatpush.msra.mxu0 %v2014
    %2054 = vmatpush.msra.mxu0 %v2013
    %2055 = vmatpush.msra.mxu0 %v2012
    %2056 = vmatpush.msra.mxu0 %v2011
    %2057 = vmatpush.msra.mxu0 %v2010
    %2058 = vmatmul.f32.gmra.mxu0 %v1596
    %v2059 = vpop.f32.mrf.mxu0
    %v2060 = vadd.f32 0.0, %v2059
    %2061 = vmatmul.f32.gmra.mxu0 %v1858
    %v2062 = vpop.f32.mrf.mxu0
    %v2063 = vadd.f32 0.0, %v2062
    %2064 = vmatmul.f32.gmra.mxu0 %v1636
    %v2065 = vpop.f32.mrf.mxu0
    %v2066 = vadd.f32 0.0, %v2065
    %2067 = vmatmul.f32.gmra.mxu0 %v1898
    %v2068 = vpop.f32.mrf.mxu0
    %v2069 = vadd.f32 0.0, %v2068
    %2070 = vdwg.mxu0
    %2071 = vmatpush.msra.mxu0 %v2041
    %2072 = vmatpush.msra.mxu0 %v2040
    %2073 = vmatpush.msra.mxu0 %v2039
    %2074 = vmatpush.msra.mxu0 %v2038
    %2075 = vmatpush.msra.mxu0 %v2037
    %2076 = vmatpush.msra.mxu0 %v2036
    %2077 = vmatpush.msra.mxu0 %v2035
    %2078 = vmatpush.msra.mxu0 %v2034
    %2079 = vmatpush.msra.mxu0 %v2033
    %2080 = vmatpush.msra.mxu0 %v2032
    %2081 = vmatpush.msra.mxu0 %v2031
    %2082 = vmatpush.msra.mxu0 %v2030
    %2083 = vmatpush.msra.mxu0 %v2029
    %2084 = vmatpush.msra.mxu0 %v2028
    %2085 = vmatpush.msra.mxu0 %v2027
    %2086 = vmatpush.msra.mxu0 %v2026
    %2087 = vmatmul.f32.gmra.mxu0 %v1616
    %v2088 = vpop.f32.mrf.mxu0
    %v2089 = vadd.f32 %v2060, %v2088
    %2090 = vmatmul.f32.gmra.mxu0 %v1878
    %v2091 = vpop.f32.mrf.mxu0
    %v2092 = vadd.f32 %v2063, %v2091
    %2093 = vmatmul.f32.gmra.mxu0 %v1656
    %v2094 = vpop.f32.mrf.mxu0
    %v2095 = vadd.f32 %v2066, %v2094
    %2096 = vmatmul.f32.gmra.mxu0 %v1918
    %v2097 = vpop.f32.mrf.mxu0
    %v2098 = vadd.f32 %v2069, %v2097
    %2099 = vdwg.mxu0
    %v2100 = vld [vmem:[%s13] sm:$0xff]
    %v2101 = vld [vmem:[%s12] sm:$0xff]
    %v2102 = vld [vmem:[%s12 + $0x8] sm:$0xff]
    %v2103 = vld [vmem:[%s12 + $0x10] sm:$0xff]
    %v2104 = vld [vmem:[%s12 + $0x18] sm:$0xff]
    %v2105 = vld [vmem:[%s12 + $0x20] sm:$0xff]
    %v2106 = vld [vmem:[%s12 + $0x28] sm:$0xff]
    %v2107 = vld [vmem:[%s12 + $0x30] sm:$0xff]
    %v2108 = vld [vmem:[%s12 + $0x38] sm:$0xff]
    %v2110 = vrot.slane %v2002, 7
    %v2113 = vrot.slane %v2005, 6
    %v2116 = vrot.slane %v2008, 5
    %v2119 = vrot.slane %v2089, 4
    %v2122 = vrot.slane %v2092, 3
    %v2125 = vrot.slane %v2095, 2
    %v2128 = vrot.slane %v2098, 1
    %v2130 = vsel %vm345, %v1999, %v2110
    %v2131 = vsel %vm347, %v2130, %v2113
    %v2132 = vsel %vm349, %v2131, %v2116
    %v2133 = vsel %vm351, %v2132, %v2119
    %v2134 = vsel %vm353, %v2133, %v2122
    %v2135 = vsel %vm355, %v2134, %v2125
    %v2136 = vsel %vm357, %v2135, %v2128
    %v2137 = vadd.f32 %v2136, %v2100
    %v2139 = vrot.slane %v1999, 1
    %v2141 = vrot.slane %v2005, 7
    %v2143 = vrot.slane %v2008, 6
    %v2145 = vrot.slane %v2089, 5
    %v2147 = vrot.slane %v2092, 4
    %v2149 = vrot.slane %v2095, 3
    %v2151 = vrot.slane %v2098, 2
    %v2153 = vsel %vm345, %v2139, %v2002
    %v2154 = vsel %vm347, %v2153, %v2141
    %v2155 = vsel %vm349, %v2154, %v2143
    %v2156 = vsel %vm351, %v2155, %v2145
    %v2157 = vsel %vm353, %v2156, %v2147
    %v2158 = vsel %vm355, %v2157, %v2149
    %v2159 = vsel %vm357, %v2158, %v2151
    %v2160 = vadd.f32 %v2159, %v2100
    %v2161 = vrot.slane %v1999, 2
    %v2163 = vrot.slane %v2002, 1
    %v2165 = vrot.slane %v2008, 7
    %v2167 = vrot.slane %v2089, 6
    %v2169 = vrot.slane %v2092, 5
    %v2171 = vrot.slane %v2095, 4
    %v2173 = vrot.slane %v2098, 3
    %v2175 = vsel %vm345, %v2161, %v2163
    %v2176 = vsel %vm347, %v2175, %v2005
    %v2177 = vsel %vm349, %v2176, %v2165
    %v2178 = vsel %vm351, %v2177, %v2167
    %v2179 = vsel %vm353, %v2178, %v2169
    %v2180 = vsel %vm355, %v2179, %v2171
    %v2181 = vsel %vm357, %v2180, %v2173
    %v2182 = vadd.f32 %v2181, %v2100
    %v2183 = vrot.slane %v1999, 3
    %v2185 = vrot.slane %v2002, 2
    %v2187 = vrot.slane %v2005, 1
    %v2189 = vrot.slane %v2089, 7
    %v2191 = vrot.slane %v2092, 6
    %v2193 = vrot.slane %v2095, 5
    %v2195 = vrot.slane %v2098, 4
    %v2197 = vsel %vm345, %v2183, %v2185
    %v2198 = vsel %vm347, %v2197, %v2187
    %v2199 = vsel %vm349, %v2198, %v2008
    %v2200 = vsel %vm351, %v2199, %v2189
    %v2201 = vsel %vm353, %v2200, %v2191
    %v2202 = vsel %vm355, %v2201, %v2193
    %v2203 = vsel %vm357, %v2202, %v2195
    %v2204 = vadd.f32 %v2203, %v2100
    %v2205 = vrot.slane %v1999, 4
    %v2207 = vrot.slane %v2002, 3
    %v2209 = vrot.slane %v2005, 2
    %v2211 = vrot.slane %v2008, 1
    %v2213 = vrot.slane %v2092, 7
    %v2215 = vrot.slane %v2095, 6
    %v2217 = vrot.slane %v2098, 5
    %v2219 = vsel %vm345, %v2205, %v2207
    %v2220 = vsel %vm347, %v2219, %v2209
    %v2221 = vsel %vm349, %v2220, %v2211
    %v2222 = vsel %vm351, %v2221, %v2089
    %v2223 = vsel %vm353, %v2222, %v2213
    %v2224 = vsel %vm355, %v2223, %v2215
    %v2225 = vsel %vm357, %v2224, %v2217
    %v2226 = vadd.f32 %v2225, %v2100
    %v2227 = vrot.slane %v1999, 5
    %v2229 = vrot.slane %v2002, 4
    %v2231 = vrot.slane %v2005, 3
    %v2233 = vrot.slane %v2008, 2
    %v2235 = vrot.slane %v2089, 1
    %v2237 = vrot.slane %v2095, 7
    %v2239 = vrot.slane %v2098, 6
    %v2241 = vsel %vm345, %v2227, %v2229
    %v2242 = vsel %vm347, %v2241, %v2231
    %v2243 = vsel %vm349, %v2242, %v2233
    %v2244 = vsel %vm351, %v2243, %v2235
    %v2245 = vsel %vm353, %v2244, %v2092
    %v2246 = vsel %vm355, %v2245, %v2237
    %v2247 = vsel %vm357, %v2246, %v2239
    %v2248 = vadd.f32 %v2247, %v2100
    %v2249 = vrot.slane %v1999, 6
    %v2251 = vrot.slane %v2002, 5
    %v2253 = vrot.slane %v2005, 4
    %v2255 = vrot.slane %v2008, 3
    %v2257 = vrot.slane %v2089, 2
    %v2259 = vrot.slane %v2092, 1
    %v2261 = vrot.slane %v2098, 7
    %v2263 = vsel %vm345, %v2249, %v2251
    %v2264 = vsel %vm347, %v2263, %v2253
    %v2265 = vsel %vm349, %v2264, %v2255
    %v2266 = vsel %vm351, %v2265, %v2257
    %v2267 = vsel %vm353, %v2266, %v2259
    %v2268 = vsel %vm355, %v2267, %v2095
    %v2269 = vsel %vm357, %v2268, %v2261
    %v2270 = vadd.f32 %v2269, %v2100
    %v2271 = vrot.slane %v1999, 7
    %v2273 = vrot.slane %v2002, 6
    %v2275 = vrot.slane %v2005, 5
    %v2277 = vrot.slane %v2008, 4
    %v2279 = vrot.slane %v2089, 3
    %v2281 = vrot.slane %v2092, 2
    %v2283 = vrot.slane %v2095, 1
    %v2285 = vsel %vm345, %v2271, %v2273
    %v2286 = vsel %vm347, %v2285, %v2275
    %v2287 = vsel %vm349, %v2286, %v2277
    %v2288 = vsel %vm351, %v2287, %v2279
    %v2289 = vsel %vm353, %v2288, %v2281
    %v2290 = vsel %vm355, %v2289, %v2283
    %v2291 = vsel %vm357, %v2290, %v2098
    %v2292 = vadd.f32 %v2291, %v2100
    %2293 = vmatpush.msra.mxu0 0.0
    %2294 = vmatpush.msra.mxu0 0.0
    %2295 = vmatpush.msra.mxu0 0.0
    %2296 = vmatpush.msra.mxu0 0.0
    %2297 = vmatpush.msra.mxu0 0.0
    %2298 = vmatpush.msra.mxu0 0.0
    %2299 = vmatpush.msra.mxu0 0.0
    %2300 = vmatpush.msra.mxu0 0.0
    %2301 = vmatpush.msra.mxu0 %v2108
    %2302 = vmatpush.msra.mxu0 %v2107
    %2303 = vmatpush.msra.mxu0 %v2106
    %2304 = vmatpush.msra.mxu0 %v2105
    %2305 = vmatpush.msra.mxu0 %v2104
    %2306 = vmatpush.msra.mxu0 %v2103
    %2307 = vmatpush.msra.mxu0 %v2102
    %2308 = vmatpush.msra.mxu0 %v2101
    %2309 = vmatmul.f32.gmra.mxu0 %v520
    %v2310 = vpop.f32.mrf.mxu0
    %v2311 = vadd.f32 0.0, %v2310
    %2312 = vdwg.mxu0
    %v2313 = vadd.f32 %v2137, %v2311
    %v2314 = vxor.u32 %v2313, 2147483648
    %v2315 = vmul.f32 %v2314, 1.442695
    %v2316 = vpow.pop %v2315
    %v2317 = vadd.f32 %v2316, 1.0
    %v2318 = vrcp.pop %v2317
    %v2319 = vmul.f32 %v2317, %v2318
    %v2320 = vsub.f32 1.0, %v2319
    %v2321 = vmul.f32 %v2318, %v2320
    %v2322 = vadd.f32 %v2318, %v2321
    %vm2323 = vweird.f32 %v2317
    %vm2324 = vweird.f32 %v2318
    %vm2325 = vmor %vm2323, %vm2324
    %v2326 = vsel %vm2325, %v2318, %v2322
    %v2327 = vand.u32 2147483647, %v2317
    %vm2328 = vcmp.eq.f32.partialorder %v2327, 8.507059e+37
    %v2329 = vand.u32 %v2317, 2147483648
    %v2330 = vor.u32 1.1754944e-38, %v2329
    %v2331 = vsel %vm2328, %v2330, %v2326
    %v2332 = vmul.f32 1.0, %v2331
    %v2333 = vtanh.pop %v2313
    %v2334 = vmul.f32 %v2332, 0.0
    %2336 = vrot.lane.b32.xlu0 %v2333, 64
    %v2337 = vpop.permute.xlu0 %2336
    %v2339 = vmul.f32 %v2332, %v2337
    %2341 = vrot.lane.b32.xlu0 %v2339, 32
    %v2342 = vpop.permute.xlu0 %2341
    %v2344 = vadd.f32 %v2334, %v2342
    %v2345 = vtanh.pop %v2344
    %2347 = vrot.lane.b32.xlu0 %v2345, 64
    %v2348 = vpop.permute.xlu0 %2347
    %v2350 = vmul.f32 %v2332, %v2348
    %v2351 = vmul.f32 %v2350, %v123
    %v2352 = vmul.f32 %v2350, %v124
    %2354 = vrot.lane.b32.xlu0 %v2351, 32
    %v2355 = vpop.permute.xlu0 %2354
    %2358 = vrot.lane.b32.xlu0 %v2352, 64
    %v2359 = vpop.permute.xlu0 %2358
    %v2361 = vsel %vm228, %v2355, %v2359
    %v2363 = vsel %vm518, %v2361, 0
    %2365 = vmatpush.msra.mxu0 0.0
    %2366 = vmatpush.msra.mxu0 0.0
    %2367 = vmatpush.msra.mxu0 0.0
    %2368 = vmatpush.msra.mxu0 0.0
    %2369 = vmatpush.msra.mxu0 0.0
    %2370 = vmatpush.msra.mxu0 0.0
    %2371 = vmatpush.msra.mxu0 0.0
    %2372 = vmatpush.msra.mxu0 0.0
    %2373 = vmatpush.msra.mxu0 %v2108
    %2374 = vmatpush.msra.mxu0 %v2107
    %2375 = vmatpush.msra.mxu0 %v2106
    %2376 = vmatpush.msra.mxu0 %v2105
    %2377 = vmatpush.msra.mxu0 %v2104
    %2378 = vmatpush.msra.mxu0 %v2103
    %2379 = vmatpush.msra.mxu0 %v2102
    %2380 = vmatpush.msra.mxu0 %v2101
    %2381 = vmatmul.f32.gmra.mxu0 %v2363
    %v2382 = vpop.f32.mrf.mxu0
    %v2383 = vadd.f32 0.0, %v2382
    %2384 = vdwg.mxu0
    %v2385 = vadd.f32 %v2160, %v2383
    %v2386 = vxor.u32 %v2385, 2147483648
    %v2387 = vmul.f32 %v2386, 1.442695
    %v2388 = vpow.pop %v2387
    %v2389 = vadd.f32 %v2388, 1.0
    %v2390 = vrcp.pop %v2389
    %v2391 = vmul.f32 %v2389, %v2390
    %v2392 = vsub.f32 1.0, %v2391
    %v2393 = vmul.f32 %v2390, %v2392
    %v2394 = vadd.f32 %v2390, %v2393
    %vm2395 = vweird.f32 %v2389
    %vm2396 = vweird.f32 %v2390
    %vm2397 = vmor %vm2395, %vm2396
    %v2398 = vsel %vm2397, %v2390, %v2394
    %v2399 = vand.u32 2147483647, %v2389
    %vm2400 = vcmp.eq.f32.partialorder %v2399, 8.507059e+37
    %v2401 = vand.u32 %v2389, 2147483648
    %v2402 = vor.u32 1.1754944e-38, %v2401
    %v2403 = vsel %vm2400, %v2402, %v2398
    %v2404 = vmul.f32 1.0, %v2403
    %v2405 = vtanh.pop %v2385
    %v2406 = vmul.f32 %v2404, %v2344
    %2408 = vrot.lane.b32.xlu0 %v2405, 64
    %v2409 = vpop.permute.xlu0 %2408
    %v2411 = vmul.f32 %v2404, %v2409
    %2413 = vrot.lane.b32.xlu0 %v2411, 32
    %v2414 = vpop.permute.xlu0 %2413
    %v2416 = vadd.f32 %v2406, %v2414
    %v2417 = vtanh.pop %v2416
    %2419 = vrot.lane.b32.xlu0 %v2417, 64
    %v2420 = vpop.permute.xlu0 %2419
    %v2422 = vmul.f32 %v2404, %v2420
    %v2423 = vmul.f32 %v2422, %v123
    %v2424 = vmul.f32 %v2422, %v124
    %2426 = vrot.lane.b32.xlu0 %v2423, 32
    %v2427 = vpop.permute.xlu0 %2426
    %2430 = vrot.lane.b32.xlu0 %v2424, 64
    %v2431 = vpop.permute.xlu0 %2430
    %v2433 = vsel %vm228, %v2427, %v2431
    %v2435 = vsel %vm518, %v2433, 0
    %2437 = vmatpush.msra.mxu0 0.0
    %2438 = vmatpush.msra.mxu0 0.0
    %2439 = vmatpush.msra.mxu0 0.0
    %2440 = vmatpush.msra.mxu0 0.0
    %2441 = vmatpush.msra.mxu0 0.0
    %2442 = vmatpush.msra.mxu0 0.0
    %2443 = vmatpush.msra.mxu0 0.0
    %2444 = vmatpush.msra.mxu0 0.0
    %2445 = vmatpush.msra.mxu0 %v2108
    %2446 = vmatpush.msra.mxu0 %v2107
    %2447 = vmatpush.msra.mxu0 %v2106
    %2448 = vmatpush.msra.mxu0 %v2105
    %2449 = vmatpush.msra.mxu0 %v2104
    %2450 = vmatpush.msra.mxu0 %v2103
    %2451 = vmatpush.msra.mxu0 %v2102
    %2452 = vmatpush.msra.mxu0 %v2101
    %2453 = vmatmul.f32.gmra.mxu0 %v2435
    %v2454 = vpop.f32.mrf.mxu0
    %v2455 = vadd.f32 0.0, %v2454
    %2456 = vdwg.mxu0
    %v2457 = vadd.f32 %v2182, %v2455
    %v2458 = vxor.u32 %v2457, 2147483648
    %v2459 = vmul.f32 %v2458, 1.442695
    %v2460 = vpow.pop %v2459
    %v2461 = vadd.f32 %v2460, 1.0
    %v2462 = vrcp.pop %v2461
    %v2463 = vmul.f32 %v2461, %v2462
    %v2464 = vsub.f32 1.0, %v2463
    %v2465 = vmul.f32 %v2462, %v2464
    %v2466 = vadd.f32 %v2462, %v2465
    %vm2467 = vweird.f32 %v2461
    %vm2468 = vweird.f32 %v2462
    %vm2469 = vmor %vm2467, %vm2468
    %v2470 = vsel %vm2469, %v2462, %v2466
    %v2471 = vand.u32 2147483647, %v2461
    %vm2472 = vcmp.eq.f32.partialorder %v2471, 8.507059e+37
    %v2473 = vand.u32 %v2461, 2147483648
    %v2474 = vor.u32 1.1754944e-38, %v2473
    %v2475 = vsel %vm2472, %v2474, %v2470
    %v2476 = vmul.f32 1.0, %v2475
    %v2477 = vtanh.pop %v2457
    %v2478 = vmul.f32 %v2476, %v2416
    %2480 = vrot.lane.b32.xlu0 %v2477, 64
    %v2481 = vpop.permute.xlu0 %2480
    %v2483 = vmul.f32 %v2476, %v2481
    %2485 = vrot.lane.b32.xlu0 %v2483, 32
    %v2486 = vpop.permute.xlu0 %2485
    %v2488 = vadd.f32 %v2478, %v2486
    %v2489 = vtanh.pop %v2488
    %2491 = vrot.lane.b32.xlu0 %v2489, 64
    %v2492 = vpop.permute.xlu0 %2491
    %v2494 = vmul.f32 %v2476, %v2492
    %v2495 = vmul.f32 %v2494, %v123
    %v2496 = vmul.f32 %v2494, %v124
    %2498 = vrot.lane.b32.xlu0 %v2495, 32
    %v2499 = vpop.permute.xlu0 %2498
    %2502 = vrot.lane.b32.xlu0 %v2496, 64
    %v2503 = vpop.permute.xlu0 %2502
    %v2505 = vsel %vm228, %v2499, %v2503
    %v2507 = vsel %vm518, %v2505, 0
    %2509 = vmatpush.msra.mxu0 0.0
    %2510 = vmatpush.msra.mxu0 0.0
    %2511 = vmatpush.msra.mxu0 0.0
    %2512 = vmatpush.msra.mxu0 0.0
    %2513 = vmatpush.msra.mxu0 0.0
    %2514 = vmatpush.msra.mxu0 0.0
    %2515 = vmatpush.msra.mxu0 0.0
    %2516 = vmatpush.msra.mxu0 0.0
    %2517 = vmatpush.msra.mxu0 %v2108
    %2518 = vmatpush.msra.mxu0 %v2107
    %2519 = vmatpush.msra.mxu0 %v2106
    %2520 = vmatpush.msra.mxu0 %v2105
    %2521 = vmatpush.msra.mxu0 %v2104
    %2522 = vmatpush.msra.mxu0 %v2103
    %2523 = vmatpush.msra.mxu0 %v2102
    %2524 = vmatpush.msra.mxu0 %v2101
    %2525 = vmatmul.f32.gmra.mxu0 %v2507
    %v2526 = vpop.f32.mrf.mxu0
    %v2527 = vadd.f32 0.0, %v2526
    %2528 = vdwg.mxu0
    %v2529 = vadd.f32 %v2204, %v2527
    %v2530 = vxor.u32 %v2529, 2147483648
    %v2531 = vmul.f32 %v2530, 1.442695
    %v2532 = vpow.pop %v2531
    %v2533 = vadd.f32 %v2532, 1.0
    %v2534 = vrcp.pop %v2533
    %v2535 = vmul.f32 %v2533, %v2534
    %v2536 = vsub.f32 1.0, %v2535
    %v2537 = vmul.f32 %v2534, %v2536
    %v2538 = vadd.f32 %v2534, %v2537
    %vm2539 = vweird.f32 %v2533
    %vm2540 = vweird.f32 %v2534
    %vm2541 = vmor %vm2539, %vm2540
    %v2542 = vsel %vm2541, %v2534, %v2538
    %v2543 = vand.u32 2147483647, %v2533
    %vm2544 = vcmp.eq.f32.partialorder %v2543, 8.507059e+37
    %v2545 = vand.u32 %v2533, 2147483648
    %v2546 = vor.u32 1.1754944e-38, %v2545
    %v2547 = vsel %vm2544, %v2546, %v2542
    %v2548 = vmul.f32 1.0, %v2547
    %v2549 = vtanh.pop %v2529
    %v2550 = vmul.f32 %v2548, %v2488
    %2552 = vrot.lane.b32.xlu0 %v2549, 64
    %v2553 = vpop.permute.xlu0 %2552
    %v2555 = vmul.f32 %v2548, %v2553
    %2557 = vrot.lane.b32.xlu0 %v2555, 32
    %v2558 = vpop.permute.xlu0 %2557
    %v2560 = vadd.f32 %v2550, %v2558
    %v2561 = vtanh.pop %v2560
    %2563 = vrot.lane.b32.xlu0 %v2561, 64
    %v2564 = vpop.permute.xlu0 %2563
    %v2566 = vmul.f32 %v2548, %v2564
    %v2567 = vmul.f32 %v2566, %v123
    %v2568 = vmul.f32 %v2566, %v124
    %2570 = vrot.lane.b32.xlu0 %v2567, 32
    %v2571 = vpop.permute.xlu0 %2570
    %2574 = vrot.lane.b32.xlu0 %v2568, 64
    %v2575 = vpop.permute.xlu0 %2574
    %v2577 = vsel %vm228, %v2571, %v2575
    %v2579 = vsel %vm518, %v2577, 0
    %2581 = vmatpush.msra.mxu0 0.0
    %2582 = vmatpush.msra.mxu0 0.0
    %2583 = vmatpush.msra.mxu0 0.0
    %2584 = vmatpush.msra.mxu0 0.0
    %2585 = vmatpush.msra.mxu0 0.0
    %2586 = vmatpush.msra.mxu0 0.0
    %2587 = vmatpush.msra.mxu0 0.0
    %2588 = vmatpush.msra.mxu0 0.0
    %2589 = vmatpush.msra.mxu0 %v2108
    %2590 = vmatpush.msra.mxu0 %v2107
    %2591 = vmatpush.msra.mxu0 %v2106
    %2592 = vmatpush.msra.mxu0 %v2105
    %2593 = vmatpush.msra.mxu0 %v2104
    %2594 = vmatpush.msra.mxu0 %v2103
    %2595 = vmatpush.msra.mxu0 %v2102
    %2596 = vmatpush.msra.mxu0 %v2101
    %2597 = vmatmul.f32.gmra.mxu0 %v2579
    %v2598 = vpop.f32.mrf.mxu0
    %v2599 = vadd.f32 0.0, %v2598
    %2600 = vdwg.mxu0
    %v2601 = vadd.f32 %v2226, %v2599
    %v2602 = vxor.u32 %v2601, 2147483648
    %v2603 = vmul.f32 %v2602, 1.442695
    %v2604 = vpow.pop %v2603
    %v2605 = vadd.f32 %v2604, 1.0
    %v2606 = vrcp.pop %v2605
    %v2607 = vmul.f32 %v2605, %v2606
    %v2608 = vsub.f32 1.0, %v2607
    %v2609 = vmul.f32 %v2606, %v2608
    %v2610 = vadd.f32 %v2606, %v2609
    %vm2611 = vweird.f32 %v2605
    %vm2612 = vweird.f32 %v2606
    %vm2613 = vmor %vm2611, %vm2612
    %v2614 = vsel %vm2613, %v2606, %v2610
    %v2615 = vand.u32 2147483647, %v2605
    %vm2616 = vcmp.eq.f32.partialorder %v2615, 8.507059e+37
    %v2617 = vand.u32 %v2605, 2147483648
    %v2618 = vor.u32 1.1754944e-38, %v2617
    %v2619 = vsel %vm2616, %v2618, %v2614
    %v2620 = vmul.f32 1.0, %v2619
    %v2621 = vtanh.pop %v2601
    %v2622 = vmul.f32 %v2620, %v2560
    %2624 = vrot.lane.b32.xlu0 %v2621, 64
    %v2625 = vpop.permute.xlu0 %2624
    %v2627 = vmul.f32 %v2620, %v2625
    %2629 = vrot.lane.b32.xlu0 %v2627, 32
    %v2630 = vpop.permute.xlu0 %2629
    %v2632 = vadd.f32 %v2622, %v2630
    %v2633 = vtanh.pop %v2632
    %2635 = vrot.lane.b32.xlu0 %v2633, 64
    %v2636 = vpop.permute.xlu0 %2635
    %v2638 = vmul.f32 %v2620, %v2636
    %v2639 = vmul.f32 %v2638, %v123
    %v2640 = vmul.f32 %v2638, %v124
    %2642 = vrot.lane.b32.xlu0 %v2639, 32
    %v2643 = vpop.permute.xlu0 %2642
    %2646 = vrot.lane.b32.xlu0 %v2640, 64
    %v2647 = vpop.permute.xlu0 %2646
    %v2649 = vsel %vm228, %v2643, %v2647
    %v2651 = vsel %vm518, %v2649, 0
    %2653 = vmatpush.msra.mxu0 0.0
    %2654 = vmatpush.msra.mxu0 0.0
    %2655 = vmatpush.msra.mxu0 0.0
    %2656 = vmatpush.msra.mxu0 0.0
    %2657 = vmatpush.msra.mxu0 0.0
    %2658 = vmatpush.msra.mxu0 0.0
    %2659 = vmatpush.msra.mxu0 0.0
    %2660 = vmatpush.msra.mxu0 0.0
    %2661 = vmatpush.msra.mxu0 %v2108
    %2662 = vmatpush.msra.mxu0 %v2107
    %2663 = vmatpush.msra.mxu0 %v2106
    %2664 = vmatpush.msra.mxu0 %v2105
    %2665 = vmatpush.msra.mxu0 %v2104
    %2666 = vmatpush.msra.mxu0 %v2103
    %2667 = vmatpush.msra.mxu0 %v2102
    %2668 = vmatpush.msra.mxu0 %v2101
    %2669 = vmatmul.f32.gmra.mxu0 %v2651
    %v2670 = vpop.f32.mrf.mxu0
    %v2671 = vadd.f32 0.0, %v2670
    %2672 = vdwg.mxu0
    %v2673 = vadd.f32 %v2248, %v2671
    %v2674 = vxor.u32 %v2673, 2147483648
    %v2675 = vmul.f32 %v2674, 1.442695
    %v2676 = vpow.pop %v2675
    %v2677 = vadd.f32 %v2676, 1.0
    %v2678 = vrcp.pop %v2677
    %v2679 = vmul.f32 %v2677, %v2678
    %v2680 = vsub.f32 1.0, %v2679
    %v2681 = vmul.f32 %v2678, %v2680
    %v2682 = vadd.f32 %v2678, %v2681
    %vm2683 = vweird.f32 %v2677
    %vm2684 = vweird.f32 %v2678
    %vm2685 = vmor %vm2683, %vm2684
    %v2686 = vsel %vm2685, %v2678, %v2682
    %v2687 = vand.u32 2147483647, %v2677
    %vm2688 = vcmp.eq.f32.partialorder %v2687, 8.507059e+37
    %v2689 = vand.u32 %v2677, 2147483648
    %v2690 = vor.u32 1.1754944e-38, %v2689
    %v2691 = vsel %vm2688, %v2690, %v2686
    %v2692 = vmul.f32 1.0, %v2691
    %v2693 = vtanh.pop %v2673
    %v2694 = vmul.f32 %v2692, %v2632
    %2696 = vrot.lane.b32.xlu0 %v2693, 64
    %v2697 = vpop.permute.xlu0 %2696
    %v2699 = vmul.f32 %v2692, %v2697
    %2701 = vrot.lane.b32.xlu0 %v2699, 32
    %v2702 = vpop.permute.xlu0 %2701
    %v2704 = vadd.f32 %v2694, %v2702
    %v2705 = vtanh.pop %v2704
    %2707 = vrot.lane.b32.xlu0 %v2705, 64
    %v2708 = vpop.permute.xlu0 %2707
    %v2710 = vmul.f32 %v2692, %v2708
    %v2711 = vmul.f32 %v2710, %v123
    %v2712 = vmul.f32 %v2710, %v124
    %2714 = vrot.lane.b32.xlu0 %v2711, 32
    %v2715 = vpop.permute.xlu0 %2714
    %2718 = vrot.lane.b32.xlu0 %v2712, 64
    %v2719 = vpop.permute.xlu0 %2718
    %v2721 = vsel %vm228, %v2715, %v2719
    %v2723 = vsel %vm518, %v2721, 0
    %2725 = vmatpush.msra.mxu0 0.0
    %2726 = vmatpush.msra.mxu0 0.0
    %2727 = vmatpush.msra.mxu0 0.0
    %2728 = vmatpush.msra.mxu0 0.0
    %2729 = vmatpush.msra.mxu0 0.0
    %2730 = vmatpush.msra.mxu0 0.0
    %2731 = vmatpush.msra.mxu0 0.0
    %2732 = vmatpush.msra.mxu0 0.0
    %2733 = vmatpush.msra.mxu0 %v2108
    %2734 = vmatpush.msra.mxu0 %v2107
    %2735 = vmatpush.msra.mxu0 %v2106
    %2736 = vmatpush.msra.mxu0 %v2105
    %2737 = vmatpush.msra.mxu0 %v2104
    %2738 = vmatpush.msra.mxu0 %v2103
    %2739 = vmatpush.msra.mxu0 %v2102
    %2740 = vmatpush.msra.mxu0 %v2101
    %2741 = vmatmul.f32.gmra.mxu0 %v2723
    %v2742 = vpop.f32.mrf.mxu0
    %v2743 = vadd.f32 0.0, %v2742
    %2744 = vdwg.mxu0
    %v2745 = vadd.f32 %v2270, %v2743
    %v2746 = vxor.u32 %v2745, 2147483648
    %v2747 = vmul.f32 %v2746, 1.442695
    %v2748 = vpow.pop %v2747
    %v2749 = vadd.f32 %v2748, 1.0
    %v2750 = vrcp.pop %v2749
    %v2751 = vmul.f32 %v2749, %v2750
    %v2752 = vsub.f32 1.0, %v2751
    %v2753 = vmul.f32 %v2750, %v2752
    %v2754 = vadd.f32 %v2750, %v2753
    %vm2755 = vweird.f32 %v2749
    %vm2756 = vweird.f32 %v2750
    %vm2757 = vmor %vm2755, %vm2756
    %v2758 = vsel %vm2757, %v2750, %v2754
    %v2759 = vand.u32 2147483647, %v2749
    %vm2760 = vcmp.eq.f32.partialorder %v2759, 8.507059e+37
    %v2761 = vand.u32 %v2749, 2147483648
    %v2762 = vor.u32 1.1754944e-38, %v2761
    %v2763 = vsel %vm2760, %v2762, %v2758
    %v2764 = vmul.f32 1.0, %v2763
    %v2765 = vtanh.pop %v2745
    %v2766 = vmul.f32 %v2764, %v2704
    %2768 = vrot.lane.b32.xlu0 %v2765, 64
    %v2769 = vpop.permute.xlu0 %2768
    %v2771 = vmul.f32 %v2764, %v2769
    %2773 = vrot.lane.b32.xlu0 %v2771, 32
    %v2774 = vpop.permute.xlu0 %2773
    %v2776 = vadd.f32 %v2766, %v2774
    %v2777 = vtanh.pop %v2776
    %2779 = vrot.lane.b32.xlu0 %v2777, 64
    %v2780 = vpop.permute.xlu0 %2779
    %v2782 = vmul.f32 %v2764, %v2780
    %v2783 = vmul.f32 %v2782, %v123
    %v2784 = vmul.f32 %v2782, %v124
    %2786 = vrot.lane.b32.xlu0 %v2783, 32
    %v2787 = vpop.permute.xlu0 %2786
    %2790 = vrot.lane.b32.xlu0 %v2784, 64
    %v2791 = vpop.permute.xlu0 %2790
    %v2793 = vsel %vm228, %v2787, %v2791
    %v2795 = vsel %vm518, %v2793, 0
    %2797 = vmatpush.msra.mxu0 0.0
    %2798 = vmatpush.msra.mxu0 0.0
    %2799 = vmatpush.msra.mxu0 0.0
    %2800 = vmatpush.msra.mxu0 0.0
    %2801 = vmatpush.msra.mxu0 0.0
    %2802 = vmatpush.msra.mxu0 0.0
    %2803 = vmatpush.msra.mxu0 0.0
    %2804 = vmatpush.msra.mxu0 0.0
    %2805 = vmatpush.msra.mxu0 %v2108
    %2806 = vmatpush.msra.mxu0 %v2107
    %2807 = vmatpush.msra.mxu0 %v2106
    %2808 = vmatpush.msra.mxu0 %v2105
    %2809 = vmatpush.msra.mxu0 %v2104
    %2810 = vmatpush.msra.mxu0 %v2103
    %2811 = vmatpush.msra.mxu0 %v2102
    %2812 = vmatpush.msra.mxu0 %v2101
    %2813 = vmatmul.f32.gmra.mxu0 %v2795
    %v2814 = vpop.f32.mrf.mxu0
    %v2815 = vadd.f32 0.0, %v2814
    %2816 = vdwg.mxu0
    %v2817 = vadd.f32 %v2292, %v2815
    %v2818 = vxor.u32 %v2817, 2147483648
    %v2819 = vmul.f32 %v2818, 1.442695
    %v2820 = vpow.pop %v2819
    %v2821 = vadd.f32 %v2820, 1.0
    %v2822 = vrcp.pop %v2821
    %v2823 = vmul.f32 %v2821, %v2822
    %v2824 = vsub.f32 1.0, %v2823
    %v2825 = vmul.f32 %v2822, %v2824
    %v2826 = vadd.f32 %v2822, %v2825
    %vm2827 = vweird.f32 %v2821
    %vm2828 = vweird.f32 %v2822
    %vm2829 = vmor %vm2827, %vm2828
    %v2830 = vsel %vm2829, %v2822, %v2826
    %v2831 = vand.u32 2147483647, %v2821
    %vm2832 = vcmp.eq.f32.partialorder %v2831, 8.507059e+37
    %v2833 = vand.u32 %v2821, 2147483648
    %v2834 = vor.u32 1.1754944e-38, %v2833
    %v2835 = vsel %vm2832, %v2834, %v2830
    %v2836 = vmul.f32 1.0, %v2835
    %v2837 = vtanh.pop %v2817
    %v2838 = vmul.f32 %v2836, %v2776
    %2840 = vrot.lane.b32.xlu0 %v2837, 64
    %v2841 = vpop.permute.xlu0 %2840
    %v2843 = vmul.f32 %v2836, %v2841
    %2845 = vrot.lane.b32.xlu0 %v2843, 32
    %v2846 = vpop.permute.xlu0 %2845
    %v2848 = vadd.f32 %v2838, %v2846
    %v2849 = vtanh.pop %v2848
    %2851 = vrot.lane.b32.xlu0 %v2849, 64
    %v2852 = vpop.permute.xlu0 %2851
    %v2854 = vmul.f32 %v2836, %v2852
    %v2856 = vrot.slane %v2422, 7
    %v2859 = vrot.slane %v2494, 6
    %v2862 = vrot.slane %v2566, 5
    %v2865 = vrot.slane %v2638, 4
    %v2868 = vrot.slane %v2710, 3
    %v2871 = vrot.slane %v2782, 2
    %v2874 = vrot.slane %v2854, 1
    %v2876 = vsel %vm345, %v2350, %v2856
    %v2877 = vsel %vm347, %v2876, %v2859
    %v2878 = vsel %vm349, %v2877, %v2862
    %v2879 = vsel %vm351, %v2878, %v2865
    %v2880 = vsel %vm353, %v2879, %v2868
    %v2881 = vsel %vm355, %v2880, %v2871
    %v2882 = vsel %vm357, %v2881, %v2874
    %v2884 = vrot.slane %v2350, 4
    %v2886 = vrot.slane %v2422, 3
    %v2888 = vrot.slane %v2494, 2
    %v2890 = vrot.slane %v2566, 1
    %v2892 = vrot.slane %v2710, 7
    %v2894 = vrot.slane %v2782, 6
    %v2896 = vrot.slane %v2854, 5
    %v2898 = vsel %vm345, %v2884, %v2886
    %v2899 = vsel %vm347, %v2898, %v2888
    %v2900 = vsel %vm349, %v2899, %v2890
    %v2901 = vsel %vm351, %v2900, %v2638
    %v2902 = vsel %vm353, %v2901, %v2892
    %v2903 = vsel %vm355, %v2902, %v2894
    %v2904 = vsel %vm357, %v2903, %v2896
    %2906 = vrot.lane.b32.xlu0 %v2904, 32
    %v2907 = vpop.permute.xlu0 %2906
    %2909 = vmatpush.msra.mxu0 0.0
    %2910 = vmatpush.msra.mxu0 0.0
    %2911 = vmatpush.msra.mxu0 0.0
    %2912 = vmatpush.msra.mxu0 0.0
    %2913 = vmatpush.msra.mxu0 0.0
    %2914 = vmatpush.msra.mxu0 0.0
    %2915 = vmatpush.msra.mxu0 0.0
    %2916 = vmatpush.msra.mxu0 0.0
    %2917 = vmatpush.msra.mxu0 0.0
    %2918 = vmatpush.msra.mxu0 0.0
    %2919 = vmatpush.msra.mxu0 0.0
    %2920 = vmatpush.msra.mxu0 0.0
    %2921 = vmatpush.msra.mxu0 0.0
    %2922 = vmatpush.msra.mxu0 0.0
    %2923 = vmatpush.msra.mxu0 0.0
    %2924 = vmatpush.msra.mxu0 %v2907
    %2925 = vmatmul.f32.gmra.mxu0 %v133
    %v2926 = vpop.f32.mrf.mxu0
    %v2927 = vadd.f32 0.0, %v2926
    %2928 = vdwg.mxu0
    %2930 = vrot.lane.b32.xlu0 %v2882, 32
    %v2931 = vpop.permute.xlu0 %2930
    %2934 = vrot.lane.b32.xlu0 %v2927, 32
    %v2935 = vpop.permute.xlu0 %2934
    %v2937 = vsel %vm228, %v2931, %v2935
    %v2938 = vmul.f32 %v2937, %v84
    %v2939 = vrot.slane %v2350, 1
    %v2941 = vrot.slane %v2494, 7
    %v2943 = vrot.slane %v2566, 6
    %v2945 = vrot.slane %v2638, 5
    %v2947 = vrot.slane %v2710, 4
    %v2949 = vrot.slane %v2782, 3
    %v2951 = vrot.slane %v2854, 2
    %v2953 = vsel %vm345, %v2939, %v2422
    %v2954 = vsel %vm347, %v2953, %v2941
    %v2955 = vsel %vm349, %v2954, %v2943
    %v2956 = vsel %vm351, %v2955, %v2945
    %v2957 = vsel %vm353, %v2956, %v2947
    %v2958 = vsel %vm355, %v2957, %v2949
    %v2959 = vsel %vm357, %v2958, %v2951
    %v2960 = vrot.slane %v2350, 5
    %v2962 = vrot.slane %v2422, 4
    %v2964 = vrot.slane %v2494, 3
    %v2966 = vrot.slane %v2566, 2
    %v2968 = vrot.slane %v2638, 1
    %v2970 = vrot.slane %v2782, 7
    %v2972 = vrot.slane %v2854, 6
    %v2974 = vsel %vm345, %v2960, %v2962
    %v2975 = vsel %vm347, %v2974, %v2964
    %v2976 = vsel %vm349, %v2975, %v2966
    %v2977 = vsel %vm351, %v2976, %v2968
    %v2978 = vsel %vm353, %v2977, %v2710
    %v2979 = vsel %vm355, %v2978, %v2970
    %v2980 = vsel %vm357, %v2979, %v2972
    %2982 = vrot.lane.b32.xlu0 %v2980, 32
    %v2983 = vpop.permute.xlu0 %2982
    %2985 = vmatpush.msra.mxu0 0.0
    %2986 = vmatpush.msra.mxu0 0.0
    %2987 = vmatpush.msra.mxu0 0.0
    %2988 = vmatpush.msra.mxu0 0.0
    %2989 = vmatpush.msra.mxu0 0.0
    %2990 = vmatpush.msra.mxu0 0.0
    %2991 = vmatpush.msra.mxu0 0.0
    %2992 = vmatpush.msra.mxu0 0.0
    %2993 = vmatpush.msra.mxu0 0.0
    %2994 = vmatpush.msra.mxu0 0.0
    %2995 = vmatpush.msra.mxu0 0.0
    %2996 = vmatpush.msra.mxu0 0.0
    %2997 = vmatpush.msra.mxu0 0.0
    %2998 = vmatpush.msra.mxu0 0.0
    %2999 = vmatpush.msra.mxu0 0.0
    %3000 = vmatpush.msra.mxu0 %v2983
    %3001 = vmatmul.f32.gmra.mxu0 %v156
    %v3002 = vpop.f32.mrf.mxu0
    %v3003 = vadd.f32 0.0, %v3002
    %3004 = vdwg.mxu0
    %3006 = vrot.lane.b32.xlu0 %v2959, 32
    %v3007 = vpop.permute.xlu0 %3006
    %3010 = vrot.lane.b32.xlu0 %v3003, 32
    %v3011 = vpop.permute.xlu0 %3010
    %v3013 = vsel %vm228, %v3007, %v3011
    %v3014 = vmul.f32 %v3013, %v108
    %v3015 = vrot.slane %v2350, 2
    %v3017 = vrot.slane %v2422, 1
    %v3019 = vrot.slane %v2566, 7
    %v3021 = vrot.slane %v2638, 6
    %v3023 = vrot.slane %v2710, 5
    %v3025 = vrot.slane %v2782, 4
    %v3027 = vrot.slane %v2854, 3
    %v3029 = vsel %vm345, %v3015, %v3017
    %v3030 = vsel %vm347, %v3029, %v2494
    %v3031 = vsel %vm349, %v3030, %v3019
    %v3032 = vsel %vm351, %v3031, %v3021
    %v3033 = vsel %vm353, %v3032, %v3023
    %v3034 = vsel %vm355, %v3033, %v3025
    %v3035 = vsel %vm357, %v3034, %v3027
    %v3036 = vrot.slane %v2350, 6
    %v3038 = vrot.slane %v2422, 5
    %v3040 = vrot.slane %v2494, 4
    %v3042 = vrot.slane %v2566, 3
    %v3044 = vrot.slane %v2638, 2
    %v3046 = vrot.slane %v2710, 1
    %v3048 = vrot.slane %v2854, 7
    %v3050 = vsel %vm345, %v3036, %v3038
    %v3051 = vsel %vm347, %v3050, %v3040
    %v3052 = vsel %vm349, %v3051, %v3042
    %v3053 = vsel %vm351, %v3052, %v3044
    %v3054 = vsel %vm353, %v3053, %v3046
    %v3055 = vsel %vm355, %v3054, %v2782
    %v3056 = vsel %vm357, %v3055, %v3048
    %3058 = vrot.lane.b32.xlu0 %v3056, 32
    %v3059 = vpop.permute.xlu0 %3058
    %3061 = vmatpush.msra.mxu0 0.0
    %3062 = vmatpush.msra.mxu0 0.0
    %3063 = vmatpush.msra.mxu0 0.0
    %3064 = vmatpush.msra.mxu0 0.0
    %3065 = vmatpush.msra.mxu0 0.0
    %3066 = vmatpush.msra.mxu0 0.0
    %3067 = vmatpush.msra.mxu0 0.0
    %3068 = vmatpush.msra.mxu0 0.0
    %3069 = vmatpush.msra.mxu0 0.0
    %3070 = vmatpush.msra.mxu0 0.0
    %3071 = vmatpush.msra.mxu0 0.0
    %3072 = vmatpush.msra.mxu0 0.0
    %3073 = vmatpush.msra.mxu0 0.0
    %3074 = vmatpush.msra.mxu0 0.0
    %3075 = vmatpush.msra.mxu0 0.0
    %3076 = vmatpush.msra.mxu0 %v3059
    %3077 = vmatmul.f32.gmra.mxu0 %v179
    %v3078 = vpop.f32.mrf.mxu0
    %v3079 = vadd.f32 0.0, %v3078
    %3080 = vdwg.mxu0
    %3082 = vrot.lane.b32.xlu0 %v3035, 32
    %v3083 = vpop.permute.xlu0 %3082
    %3086 = vrot.lane.b32.xlu0 %v3079, 32
    %v3087 = vpop.permute.xlu0 %3086
    %v3089 = vsel %vm228, %v3083, %v3087
    %v3090 = vmul.f32 %v3089, %v96
    %v3091 = vrot.slane %v2350, 3
    %v3093 = vrot.slane %v2422, 2
    %v3095 = vrot.slane %v2494, 1
    %v3097 = vrot.slane %v2638, 7
    %v3099 = vrot.slane %v2710, 6
    %v3101 = vrot.slane %v2782, 5
    %v3103 = vrot.slane %v2854, 4
    %v3105 = vsel %vm345, %v3091, %v3093
    %v3106 = vsel %vm347, %v3105, %v3095
    %v3107 = vsel %vm349, %v3106, %v2566
    %v3108 = vsel %vm351, %v3107, %v3097
    %v3109 = vsel %vm353, %v3108, %v3099
    %v3110 = vsel %vm355, %v3109, %v3101
    %v3111 = vsel %vm357, %v3110, %v3103
    %v3112 = vrot.slane %v2350, 7
    %v3114 = vrot.slane %v2422, 6
    %v3116 = vrot.slane %v2494, 5
    %v3118 = vrot.slane %v2566, 4
    %v3120 = vrot.slane %v2638, 3
    %v3122 = vrot.slane %v2710, 2
    %v3124 = vrot.slane %v2782, 1
    %v3126 = vsel %vm345, %v3112, %v3114
    %v3127 = vsel %vm347, %v3126, %v3116
    %v3128 = vsel %vm349, %v3127, %v3118
    %v3129 = vsel %vm351, %v3128, %v3120
    %v3130 = vsel %vm353, %v3129, %v3122
    %v3131 = vsel %vm355, %v3130, %v3124
    %v3132 = vsel %vm357, %v3131, %v2854
    %3134 = vrot.lane.b32.xlu0 %v3132, 32
    %v3135 = vpop.permute.xlu0 %3134
    %3137 = vmatpush.msra.mxu0 0.0
    %3138 = vmatpush.msra.mxu0 0.0
    %3139 = vmatpush.msra.mxu0 0.0
    %3140 = vmatpush.msra.mxu0 0.0
    %3141 = vmatpush.msra.mxu0 0.0
    %3142 = vmatpush.msra.mxu0 0.0
    %3143 = vmatpush.msra.mxu0 0.0
    %3144 = vmatpush.msra.mxu0 0.0
    %3145 = vmatpush.msra.mxu0 0.0
    %3146 = vmatpush.msra.mxu0 0.0
    %3147 = vmatpush.msra.mxu0 0.0
    %3148 = vmatpush.msra.mxu0 0.0
    %3149 = vmatpush.msra.mxu0 0.0
    %3150 = vmatpush.msra.mxu0 0.0
    %3151 = vmatpush.msra.mxu0 0.0
    %3152 = vmatpush.msra.mxu0 %v3135
    %3153 = vmatmul.f32.gmra.mxu0 %v202
    %v3154 = vpop.f32.mrf.mxu0
    %v3155 = vadd.f32 0.0, %v3154
    %3156 = vdwg.mxu0
    %3158 = vrot.lane.b32.xlu0 %v3111, 32
    %v3159 = vpop.permute.xlu0 %3158
    %3162 = vrot.lane.b32.xlu0 %v3155, 32
    %v3163 = vpop.permute.xlu0 %3162
    %v3165 = vsel %vm228, %v3159, %v3163
    %v3166 = vmul.f32 %v3165, %v120
    %v3167 = vsel %vm518, %v2938, 0.0
    %v3168 = vrot.slane %v3167, 4
    %v3169 = vadd.f32 %v3167, %v3168
    %v3170 = vrot.slane %v3169, 2
    %v3171 = vadd.f32 %v3169, %v3170
    %v3172 = vrot.slane %v3171, 1
    %v3173 = vadd.f32 %v3171, %v3172
    %v3174 = vrcp.pop 8.0
    %v3175 = vmul.f32 8.0, %v3174
    %v3176 = vsub.f32 1.0, %v3175
    %v3177 = vmul.f32 %v3174, %v3176
    %v3178 = vadd.f32 %v3174, %v3177
    %vm3179 = vweird.f32 %v3174
    %v3180 = vsel %vm3179, %v3174, %v3178
    %v3181 = vmul.f32 %v3173, %v3180
    %v3182 = vsel %vm518, %v2938, -inf
    %v3183 = vrot.slane %v3182, 4
    %v3184 = vmax.f32 %v3182, %v3183
    %v3185 = vrot.slane %v3184, 2
    %v3186 = vmax.f32 %v3184, %v3185
    %v3187 = vrot.slane %v3186, 1
    %v3188 = vmax.f32 %v3186, %v3187
    %3190 = vrot.lane.b32.xlu0 %v3188, 64
    %v3191 = vpop.permute.xlu0 %3190
    %v3193 = vsel %vm518, %v3181, %v3191
    %v3194 = vsel %vm518, %v3090, 0.0
    %v3195 = vrot.slane %v3194, 4
    %v3196 = vadd.f32 %v3194, %v3195
    %v3197 = vrot.slane %v3196, 2
    %v3198 = vadd.f32 %v3196, %v3197
    %v3199 = vrot.slane %v3198, 1
    %v3200 = vadd.f32 %v3198, %v3199
    %v3201 = vmul.f32 %v3200, %v3180
    %v3202 = vsel %vm518, %v3090, -inf
    %v3203 = vrot.slane %v3202, 4
    %v3204 = vmax.f32 %v3202, %v3203
    %v3205 = vrot.slane %v3204, 2
    %v3206 = vmax.f32 %v3204, %v3205
    %v3207 = vrot.slane %v3206, 1
    %v3208 = vmax.f32 %v3206, %v3207
    %3210 = vrot.lane.b32.xlu0 %v3208, 64
    %v3211 = vpop.permute.xlu0 %3210
    %v3213 = vsel %vm518, %v3201, %v3211
    %v3214 = vsel %vm518, %v3014, 0.0
    %v3215 = vrot.slane %v3214, 4
    %v3216 = vadd.f32 %v3214, %v3215
    %v3217 = vrot.slane %v3216, 2
    %v3218 = vadd.f32 %v3216, %v3217
    %v3219 = vrot.slane %v3218, 1
    %v3220 = vadd.f32 %v3218, %v3219
    %v3221 = vmul.f32 %v3220, %v3180
    %v3222 = vsel %vm518, %v3014, -inf
    %v3223 = vrot.slane %v3222, 4
    %v3224 = vmax.f32 %v3222, %v3223
    %v3225 = vrot.slane %v3224, 2
    %v3226 = vmax.f32 %v3224, %v3225
    %v3227 = vrot.slane %v3226, 1
    %v3228 = vmax.f32 %v3226, %v3227
    %3230 = vrot.lane.b32.xlu0 %v3228, 64
    %v3231 = vpop.permute.xlu0 %3230
    %v3233 = vsel %vm518, %v3221, %v3231
    %v3234 = vsel %vm518, %v3166, 0.0
    %v3235 = vrot.slane %v3234, 4
    %v3236 = vadd.f32 %v3234, %v3235
    %v3237 = vrot.slane %v3236, 2
    %v3238 = vadd.f32 %v3236, %v3237
    %v3239 = vrot.slane %v3238, 1
    %v3240 = vadd.f32 %v3238, %v3239
    %v3241 = vmul.f32 %v3240, %v3180
    %v3242 = vsel %vm518, %v3166, -inf
    %v3243 = vrot.slane %v3242, 4
    %v3244 = vmax.f32 %v3242, %v3243
    %v3245 = vrot.slane %v3244, 2
    %v3246 = vmax.f32 %v3244, %v3245
    %v3247 = vrot.slane %v3246, 1
    %v3248 = vmax.f32 %v3246, %v3247
    %3250 = vrot.lane.b32.xlu0 %v3248, 64
    %v3251 = vpop.permute.xlu0 %3250
    %v3253 = vsel %vm518, %v3241, %v3251
    %v3256 = vrot.slane %v3233, 7
    %v3257 = vrot.slane %v3253, 7
    %v3260 = vsel %vm345, %v3193, %v3256
    %v3261 = vsel %vm345, %v3213, %v3257
    %v3262 = vld [vmem:[%s14] sm:$0xff]
    %v3263 = vld [vmem:[%s14 + $0x8] sm:$0xff]
    %v3264 = vld [vmem:[%s14 + $0x10] sm:$0xff]
    %v3265 = vld [vmem:[%s14 + $0x18] sm:$0xff]
    %v3266 = vld [vmem:[%s14 + $0x20] sm:$0xff]
    %v3267 = vld [vmem:[%s14 + $0x28] sm:$0xff]
    %v3268 = vld [vmem:[%s14 + $0x30] sm:$0xff]
    %v3269 = vld [vmem:[%s14 + $0x38] sm:$0xff]
    %v3270 = vld [vmem:[%s14 + $0x40] sm:$0xff]
    %v3271 = vld [vmem:[%s14 + $0x48] sm:$0xff]
    %v3272 = vld [vmem:[%s14 + $0x50] sm:$0xff]
    %v3273 = vld [vmem:[%s14 + $0x58] sm:$0xff]
    %v3274 = vld [vmem:[%s14 + $0x60] sm:$0xff]
    %v3275 = vld [vmem:[%s14 + $0x68] sm:$0xff]
    %v3276 = vld [vmem:[%s14 + $0x70] sm:$0xff]
    %v3277 = vld [vmem:[%s14 + $0x78] sm:$0xff]
    %v3278 = vld [vmem:[%s14 + $0x80] sm:$0xff]
    %v3279 = vld [vmem:[%s14 + $0x88] sm:$0xff]
    %v3280 = vld [vmem:[%s14 + $0x90] sm:$0xff]
    %v3281 = vld [vmem:[%s14 + $0x98] sm:$0xff]
    %v3282 = vld [vmem:[%s14 + $0xa0] sm:$0xff]
    %v3283 = vld [vmem:[%s14 + $0xa8] sm:$0xff]
    %v3284 = vld [vmem:[%s14 + $0xb0] sm:$0xff]
    %v3285 = vld [vmem:[%s14 + $0xb8] sm:$0xff]
    %v3286 = vld [vmem:[%s14 + $0xc0] sm:$0xff]
    %v3287 = vld [vmem:[%s14 + $0xc8] sm:$0xff]
    %v3288 = vld [vmem:[%s14 + $0xd0] sm:$0xff]
    %v3289 = vld [vmem:[%s14 + $0xd8] sm:$0xff]
    %v3290 = vld [vmem:[%s14 + $0xe0] sm:$0xff]
    %v3291 = vld [vmem:[%s14 + $0xe8] sm:$0xff]
    %v3292 = vld [vmem:[%s14 + $0xf0] sm:$0xff]
    %v3293 = vld [vmem:[%s14 + $0xf8] sm:$0xff]
    %v3294 = vld [vmem:[%s15] sm:$0x1]
    %v3296 = vperm.slane %v3294, 0
    %3298 = vmatpush.msra.mxu0 %v3277
    %3299 = vmatpush.msra.mxu0 %v3276
    %3300 = vmatpush.msra.mxu0 %v3275
    %3301 = vmatpush.msra.mxu0 %v3274
    %3302 = vmatpush.msra.mxu0 %v3273
    %3303 = vmatpush.msra.mxu0 %v3272
    %3304 = vmatpush.msra.mxu0 %v3271
    %3305 = vmatpush.msra.mxu0 %v3270
    %3306 = vmatpush.msra.mxu0 %v3269
    %3307 = vmatpush.msra.mxu0 %v3268
    %3308 = vmatpush.msra.mxu0 %v3267
    %3309 = vmatpush.msra.mxu0 %v3266
    %3310 = vmatpush.msra.mxu0 %v3265
    %3311 = vmatpush.msra.mxu0 %v3264
    %3312 = vmatpush.msra.mxu0 %v3263
    %3313 = vmatpush.msra.mxu0 %v3262
    %3314 = vmatmul.f32.gmra.mxu0 %v3260
    %v3315 = vpop.f32.mrf.mxu0
    %v3316 = vadd.f32 %v3296, %v3315
    %3317 = vdwg.mxu0
    %3318 = vmatpush.msra.mxu0 %v3293
    %3319 = vmatpush.msra.mxu0 %v3292
    %3320 = vmatpush.msra.mxu0 %v3291
    %3321 = vmatpush.msra.mxu0 %v3290
    %3322 = vmatpush.msra.mxu0 %v3289
    %3323 = vmatpush.msra.mxu0 %v3288
    %3324 = vmatpush.msra.mxu0 %v3287
    %3325 = vmatpush.msra.mxu0 %v3286
    %3326 = vmatpush.msra.mxu0 %v3285
    %3327 = vmatpush.msra.mxu0 %v3284
    %3328 = vmatpush.msra.mxu0 %v3283
    %3329 = vmatpush.msra.mxu0 %v3282
    %3330 = vmatpush.msra.mxu0 %v3281
    %3331 = vmatpush.msra.mxu0 %v3280
    %3332 = vmatpush.msra.mxu0 %v3279
    %3333 = vmatpush.msra.mxu0 %v3278
    %3334 = vmatmul.f32.gmra.mxu0 %v3261
    %v3335 = vpop.f32.mrf.mxu0
    %v3336 = vadd.f32 %v3316, %v3335
    %3337 = vdwg.mxu0
    %v3338 = vmax.f32 %v3336, 0.0
    %v3339 = vld [vmem:[%s16] sm:$0xff]
    %v3340 = vld [vmem:[%s16 + $0x8] sm:$0xff]
    %v3341 = vld [vmem:[%s16 + $0x10] sm:$0xff]
    %v3342 = vld [vmem:[%s16 + $0x18] sm:$0xff]
    %v3343 = vld [vmem:[%s17] sm:$0x1]
    %v3345 = vperm.slane %v3343, 0
    %v3348 = vsel %vm228, %v3338, 0
    %3350 = vmatpush.msra.mxu0 0.0
    %3351 = vmatpush.msra.mxu0 0.0
    %3352 = vmatpush.msra.mxu0 0.0
    %3353 = vmatpush.msra.mxu0 0.0
    %3354 = vmatpush.msra.mxu0 0.0
    %3355 = vmatpush.msra.mxu0 0.0
    %3356 = vmatpush.msra.mxu0 0.0
    %3357 = vmatpush.msra.mxu0 0.0
    %3358 = vmatpush.msra.mxu0 0.0
    %3359 = vmatpush.msra.mxu0 0.0
    %3360 = vmatpush.msra.mxu0 0.0
    %3361 = vmatpush.msra.mxu0 0.0
    %3362 = vmatpush.msra.mxu0 %v3342
    %3363 = vmatpush.msra.mxu0 %v3341
    %3364 = vmatpush.msra.mxu0 %v3340
    %3365 = vmatpush.msra.mxu0 %v3339
    %3366 = vmatmul.f32.gmra.mxu0 %v3348
    %v3367 = vpop.f32.mrf.mxu0
    %v3368 = vadd.f32 %v3345, %v3367
    %3369 = vdwg.mxu0
    %vm3370 = vcmask 9216
    %3371 = vst.msk [vmem:[#allocation5] sm:$0x3] %vm3370, %v3368
    // Predicated region
    $region66: #{esim_forward_pallas.1} parent=1 // pred_check
      _
    $region67: #{esim_forward_pallas.1} parent=1 // pred_check_branch
      %3373 = sbr.rel (0) target = $region69
    $region68: #{esim_forward_pallas.1} parent=1 // pred_region
      %3375 = vsyncadd [#allocation6], 0
      %s3377 = sshll.u32 [#allocation5], 4
      %s3378 = int_to_ptr.vmem [resolvable:$true] %s3377
      %s3379 = sshll.u32 %s18, 4
      %s3380 = int_to_ptr.hbm [resolvable:$true] %s3379
      %3382 = dma.vmem_to_hbm [thread:$0]  %s3378, 32, %s3380, [#allocation6]
    $region69: #{esim_forward_pallas.1} parent=1 // pred_fallthru
      _
    // Predicated region
    $region70: #{esim_forward_pallas.1} parent=1 // pred_check
      _
    $region71: #{esim_forward_pallas.1} parent=1 // pred_check_branch
      %3384 = sbr.rel (0) target = $region73
    $region72: #{esim_forward_pallas.1} parent=1 // pred_region
      %3386 = dma.done [#allocation6], 32
    $region73: #{esim_forward_pallas.1} parent=1 // pred_fallthru
      _
    %3387 = vsyncpa [#allocation6], 1

</llo_original>
